<compile_context>
chip_gen: v6e
topology: v6e:2x2x1
jax: 0.10.0
libtpu: 0.0.40
codegen_flags: <defaults>
</compile_context>

<pallas_src>
import math

import numpy as np
import jax
import jax.numpy as jnp
from jax import lax
from jax.experimental import pallas as pl
from jax.experimental.pallas import tpu as pltpu

# ---- small GPT-2-style config (real GPT-2: 768 hidden / 12 heads / 12 layers / 50257 vocab) ----
BATCH = 2
SEQ = 8
HIDDEN = 32
N_HEADS = 4
HEAD_DIM = HIDDEN // N_HEADS
FF = 4 * HIDDEN
N_LAYERS = 2
VOCAB = 256
LN_EPS = 1e-5
NEG_INF = float(jnp.finfo(jnp.float32).min)

STACK_ORDER = (
    "ln1_g", "ln1_b", "attn_w", "attn_b", "proj_w", "proj_b",
    "ln2_g", "ln2_b", "fc_w", "fc_b", "fc2_w", "fc2_b",
    "gate_w", "gate_b",
)


# ---------------------------------- shared math helpers ----------------------------------------
def _layernorm(x, g, b):
    mu = jnp.mean(x, axis=-1, keepdims=True)
    var = jnp.mean(jnp.square(x - mu), axis=-1, keepdims=True)
    return (x - mu) * lax.rsqrt(var + LN_EPS) * g + b


def _gelu_new(x):  # GPT-2 "gelu_new" (tanh approximation)
    return 0.5 * x * (1.0 + jnp.tanh(0.7978845608028654 * (x + 0.044715 * x * x * x)))


# ------------------------------------- fused kernel math ---------------------------------------
def _fused_layer(x, mask_all, ln1_g, ln1_b, attn_w, attn_b, proj_w, proj_b,
                 ln2_g, ln2_b, fc_w, fc_b, fc2_w, fc2_b, gate_w, gate_b):
    """One PhaseControlledTransformerLayer, batch collapsed.

    x: (B*T, H).  mask_all: (N_HEADS*B, T, T) fused causal+additive mask.
    """
    # gate from layer input (alpha/beta folded into gate_w/gate_b); H-reduction on the MXU.
    gate = jnp.cos(jnp.dot(x, gate_w, preferred_element_type=jnp.float32) + gate_b)  # (B*T, 1)

    # --- attention block ---
    h = _layernorm(x, ln1_g, ln1_b)
    qkv = jnp.dot(h, attn_w, preferred_element_type=jnp.float32) + attn_b            # (B*T, 3H)
    q = qkv[:, 0 * HIDDEN:1 * HIDDEN].reshape(BATCH, SEQ, HIDDEN)
    k = qkv[:, 1 * HIDDEN:2 * HIDDEN].reshape(BATCH, SEQ, HIDDEN)
    v = qkv[:, 2 * HIDDEN:3 * HIDDEN].reshape(BATCH, SEQ, HIDDEN)

    # stack heads along the leading axis: index s = head * BATCH + b
    q_all = jnp.concatenate(
        [q[..., hh * HEAD_DIM:(hh + 1) * HEAD_DIM] for hh in range(N_HEADS)], axis=0)
    k_all = jnp.concatenate(
        [k[..., hh * HEAD_DIM:(hh + 1) * HEAD_DIM] for hh in range(N_HEADS)], axis=0)
    v_all = jnp.concatenate(
        [v[..., hh * HEAD_DIM:(hh + 1) * HEAD_DIM] for hh in range(N_HEADS)], axis=0)

    scale = 1.0 / math.sqrt(HEAD_DIM)
    s = jnp.einsum('sqd,skd->sqk', q_all, k_all,
                   preferred_element_type=jnp.float32) * scale                       # (NH*B, T, T)
    s = s + mask_all                                                                 # fused masks
    s = s - jnp.max(s, axis=-1, keepdims=True)
    p = jnp.exp(s)
    p = p * pl.reciprocal(jnp.sum(p, axis=-1, keepdims=True), approx=True)
    ctx_all = jnp.einsum('sqk,skd->sqd', p, v_all,
                         preferred_element_type=jnp.float32)                         # (NH*B, T, HD)

    # unstack heads back onto the feature (lane) dim -> (B, T, H) -> (B*T, H)
    ctx = jnp.concatenate(
        [ctx_all[hh * BATCH:(hh + 1) * BATCH] for hh in range(N_HEADS)], axis=-1)
    ctx = ctx.reshape(BATCH * SEQ, HIDDEN)

    # single output projection over concatenated heads
    x = x + jnp.dot(ctx, proj_w, preferred_element_type=jnp.float32) + proj_b

    # --- MLP block ---
    h2 = _layernorm(x, ln2_g, ln2_b)
    ff = _gelu_new(jnp.dot(h2, fc_w, preferred_element_type=jnp.float32) + fc_b)
    x = x + jnp.dot(ff, fc2_w, preferred_element_type=jnp.float32) + fc2_b

    # --- phase-controlled gating ---
    return x * gate


def _head_math(x, lnf_g, lnf_b, wte_t):
    return jnp.dot(_layernorm(x, lnf_g, lnf_b), wte_t, preferred_element_type=jnp.float32)


def fused_forward_kernel(x_ref, mask_ref, *rest):
    """rest = 14 stacked layer-param refs, lnf_g, lnf_b, wte_t, out_ref."""
    nlp = len(STACK_ORDER)
    layer_refs = rest[:nlp]
    lnf_g_ref, lnf_b_ref, wte_t_ref, out_ref = rest[nlp:]

    x = x_ref[...]          # (B*T, H)
    mask_all = mask_ref[...]  # (N_HEADS*B, T, T)

    for l in range(N_LAYERS):        # static unroll over layers, all resident in VMEM
        layer_params = [r[l] for r in layer_refs]
        x = _fused_layer(x, mask_all, *layer_params)

    out_ref[...] = _head_math(x, lnf_g_ref[...], lnf_b_ref[...],
                              wte_t_ref[...]).astype(out_ref.dtype)


# ------------------------------------- wrapper / launch ----------------------------------------
def _full_spec(arr):
    nd = arr.ndim
    return pl.BlockSpec(arr.shape, lambda b, _nd=nd: (0,) * _nd)


def language_model_forward(params, input_ids, attention_mask):
    B, T = input_ids.shape
    # glue: embedding gather + positional embeds (not the hot path)
    x = params["wte"][input_ids] + params["wpe"][jnp.arange(T)][None, :, :]      # (B, T, H)
    x = x.reshape(B * T, HIDDEN).astype(jnp.float32)

    # fused causal + additive attention mask, precomputed once, tiled per head (head-major)
    addmask = (1.0 - attention_mask.astype(jnp.float32)) * NEG_INF               # (B, T)
    causal = jnp.asarray(np.tril(np.ones((T, T), dtype=bool)))
    causal_add = jnp.where(causal, 0.0, NEG_INF).astype(jnp.float32)             # (T, T)
    mask_comb = causal_add[None, :, :] + addmask[:, None, :]                     # (B, T, T)
    mask_all = jnp.concatenate([mask_comb] * N_HEADS, axis=0)                    # (NH*B, T, T)

    stacked = {name: jnp.stack([lyr[name] for lyr in params["layers"]], axis=0)
               for name in STACK_ORDER}
    wte_t = params["wte"].T                                                      # (H, V), tied head

    args = ([x, mask_all] + [stacked[n] for n in STACK_ORDER]
            + [params["lnf_g"], params["lnf_b"], wte_t])
    in_specs = [_full_spec(a) for a in args]

    out = pl.pallas_call(
        fused_forward_kernel,
        out_shape=jax.ShapeDtypeStruct((B * T, VOCAB), jnp.float32),
        grid=(1,),
        in_specs=in_specs,
        out_specs=pl.BlockSpec((B * T, VOCAB), lambda b: (0, 0)),
        compiler_params=pltpu.CompilerParams(dimension_semantics=("arbitrary",)),
    )(*args)
    return out.reshape(B, T, VOCAB)


# ----------------------------------- parameters & reference ------------------------------------
def init_params(key):
    keys = iter(jax.random.split(key, 32))

    def nrm(shape, scale=0.02):
        return (scale * jax.random.normal(next(keys), shape)).astype(jnp.float32)

    params = {
        "wte": nrm((VOCAB, HIDDEN)),
        "wpe": nrm((SEQ, HIDDEN)),
        "lnf_g": jnp.ones((1, HIDDEN), jnp.float32),
        "lnf_b": jnp.zeros((1, HIDDEN), jnp.float32),
        "layers": [],
    }
    # single shared ContentDependentGating module (alpha/beta scalars, proj is Linear(H, 1))
    alpha = jax.random.normal(next(keys), (1, 1)).astype(jnp.float32)
    beta = jax.random.normal(next(keys), (1, 1)).astype(jnp.float32)
    gproj_w = nrm((HIDDEN, 1))
    gproj_b = jnp.zeros((1, 1), jnp.float32)
    gate_w = alpha * gproj_w                 # fold: cos(alpha*(x@Wg+bg)+beta) = cos(x@(alpha*Wg)+(alpha*bg+beta))
    gate_b = alpha * gproj_b + beta          # (1, 1)

    for _ in range(N_LAYERS):
        params["layers"].append({
            "ln1_g": jnp.ones((1, HIDDEN), jnp.float32),
            "ln1_b": jnp.zeros((1, HIDDEN), jnp.float32),
            "attn_w": nrm((HIDDEN, 3 * HIDDEN)),       # GPT-2 Conv1D convention: x @ W + b
            "attn_b": jnp.zeros((1, 3 * HIDDEN), jnp.float32),
            "proj_w": nrm((HIDDEN, HIDDEN)),
            "proj_b": jnp.zeros((1, HIDDEN), jnp.float32),
            "ln2_g": jnp.ones((1, HIDDEN), jnp.float32),
            "ln2_b": jnp.zeros((1, HIDDEN), jnp.float32),
            "fc_w": nrm((HIDDEN, FF)),
            "fc_b": jnp.zeros((1, FF), jnp.float32),
            "fc2_w": nrm((FF, HIDDEN)),
            "fc2_b": jnp.zeros((1, HIDDEN), jnp.float32),
            "gate_w": gate_w,                          # (H, 1)
            "gate_b": gate_b,                          # (1, 1)
        })
    return params


def reference_forward(params, input_ids, attention_mask):
    """Independent pure-JAX reference mirroring the PyTorch structure (per-batch / per-head)."""
    B, T = input_ids.shape
    x = params["wte"][input_ids] + params["wpe"][jnp.arange(T)][None, :, :]      # (B, T, H)
    addmask = (1.0 - attention_mask.astype(jnp.float32)) * NEG_INF               # (B, T)
    causal = jnp.asarray(np.tril(np.ones((T, T), dtype=bool)))
    scale = 1.0 / math.sqrt(HEAD_DIM)

    for p in params["layers"]:
        gate = jnp.cos(x @ p["gate_w"] + p["gate_b"])                            # (B, T, 1)

        h = _layernorm(x, p["ln1_g"], p["ln1_b"])
        qkv = h @ p["attn_w"] + p["attn_b"]
        q, k, v = jnp.split(qkv, 3, axis=-1)
        ctxs = []
        for b in range(B):
            head_ctx = []
            for hh in range(N_HEADS):
                sl = slice(hh * HEAD_DIM, (hh + 1) * HEAD_DIM)
                s = (q[b][:, sl] @ k[b][:, sl].T) * scale
                s = jnp.where(causal, s, NEG_INF)                                # HF-style causal mask
                s = s + addmask[b][None, :]                                      # additive key mask
                s = s - jnp.max(s, axis=-1, keepdims=True)
                e = jnp.exp(s)
                pmat = e / jnp.sum(e, axis=-1, keepdims=True)
                head_ctx.append(pmat @ v[b][:, sl])
            ctxs.append(jnp.concatenate(head_ctx, axis=-1))
        ctx = jnp.stack(ctxs)                                                    # (B, T, H)
        x = x + ctx @ p["proj_w"] + p["proj_b"]

        h2 = _layernorm(x, p["ln2_g"], p["ln2_b"])
        ff = _gelu_new(h2 @ p["fc_w"] + p["fc_b"])
        x = x + ff @ p["fc2_w"] + p["fc2_b"]

        x = x * gate

    return _layernorm(x, params["lnf_g"], params["lnf_b"]) @ params["wte"].T


if __name__ == "__main__":
    key = jax.random.PRNGKey(0)
    pkey, ikey = jax.random.split(key)
    params = init_params(pkey)

    input_ids = jax.random.randint(ikey, (BATCH, SEQ), 0, VOCAB, dtype=jnp.int32)
    attention_mask = jnp.ones((BATCH, SEQ), jnp.float32)

    logits = language_model_forward(params, input_ids, attention_mask)
    logits = jax.block_until_ready(logits)
    assert logits.shape == (BATCH, SEQ, VOCAB)

    ref = reference_forward(params, input_ids, attention_mask)
    np.testing.assert_allclose(np.asarray(logits), np.asarray(ref), atol=2e-3, rtol=2e-3)
    print("KERNEL_OK")
</pallas_src>

<mosaic_0001>
module attributes {stable_mosaic.version = 11 : i64} {
  func.func @fused_forward_kernel(%arg0: i32, %arg1: memref<16x32xf32, #tpu.memory_space<vmem>>, %arg2: memref<8x8x8xf32, #tpu.memory_space<vmem>>, %arg3: memref<2x1x32xf32, #tpu.memory_space<vmem>>, %arg4: memref<2x1x32xf32, #tpu.memory_space<vmem>>, %arg5: memref<2x32x96xf32, #tpu.memory_space<vmem>>, %arg6: memref<2x1x96xf32, #tpu.memory_space<vmem>>, %arg7: memref<2x32x32xf32, #tpu.memory_space<vmem>>, %arg8: memref<2x1x32xf32, #tpu.memory_space<vmem>>, %arg9: memref<2x1x32xf32, #tpu.memory_space<vmem>>, %arg10: memref<2x1x32xf32, #tpu.memory_space<vmem>>, %arg11: memref<2x32x128xf32, #tpu.memory_space<vmem>>, %arg12: memref<2x1x128xf32, #tpu.memory_space<vmem>>, %arg13: memref<2x128x32xf32, #tpu.memory_space<vmem>>, %arg14: memref<2x1x32xf32, #tpu.memory_space<vmem>>, %arg15: memref<2x32x1xf32, #tpu.memory_space<vmem>>, %arg16: memref<2x1x1xf32, #tpu.memory_space<vmem>>, %arg17: memref<1x32xf32, #tpu.memory_space<vmem>>, %arg18: memref<1x32xf32, #tpu.memory_space<vmem>>, %arg19: memref<32x256xf32, #tpu.memory_space<vmem>>, %arg20: memref<16x256xf32, #tpu.memory_space<vmem>>) attributes {dimension_semantics = [#tpu.dimension_semantics<arbitrary>], iteration_bounds = array<i64: 1>, scalar_prefetch = 0 : i64, scratch_operands = 0 : i64, tpu.core_type = #tpu.core_type<tc>, window_params = [{pipeline_mode = #tpu.pipeline_mode<synchronous>, transform_indices = @transform_0, window_bounds = array<i64: 16, 32>}, {pipeline_mode = #tpu.pipeline_mode<synchronous>, transform_indices = @transform_1, window_bounds = array<i64: 8, 8, 8>}, {pipeline_mode = #tpu.pipeline_mode<synchronous>, transform_indices = @transform_2, window_bounds = array<i64: 2, 1, 32>}, {pipeline_mode = #tpu.pipeline_mode<synchronous>, transform_indices = @transform_3, window_bounds = array<i64: 2, 1, 32>}, {pipeline_mode = #tpu.pipeline_mode<synchronous>, transform_indices = @transform_4, window_bounds = array<i64: 2, 32, 96>}, {pipeline_mode = #tpu.pipeline_mode<synchronous>, transform_indices = @transform_5, window_bounds = array<i64: 2, 1, 96>}, {pipeline_mode = #tpu.pipeline_mode<synchronous>, transform_indices = @transform_6, window_bounds = array<i64: 2, 32, 32>}, {pipeline_mode = #tpu.pipeline_mode<synchronous>, transform_indices = @transform_7, window_bounds = array<i64: 2, 1, 32>}, {pipeline_mode = #tpu.pipeline_mode<synchronous>, transform_indices = @transform_8, window_bounds = array<i64: 2, 1, 32>}, {pipeline_mode = #tpu.pipeline_mode<synchronous>, transform_indices = @transform_9, window_bounds = array<i64: 2, 1, 32>}, {pipeline_mode = #tpu.pipeline_mode<synchronous>, transform_indices = @transform_10, window_bounds = array<i64: 2, 32, 128>}, {pipeline_mode = #tpu.pipeline_mode<synchronous>, transform_indices = @transform_11, window_bounds = array<i64: 2, 1, 128>}, {pipeline_mode = #tpu.pipeline_mode<synchronous>, transform_indices = @transform_12, window_bounds = array<i64: 2, 128, 32>}, {pipeline_mode = #tpu.pipeline_mode<synchronous>, transform_indices = @transform_13, window_bounds = array<i64: 2, 1, 32>}, {pipeline_mode = #tpu.pipeline_mode<synchronous>, transform_indices = @transform_14, window_bounds = array<i64: 2, 32, 1>}, {pipeline_mode = #tpu.pipeline_mode<synchronous>, transform_indices = @transform_15, window_bounds = array<i64: 2, 1, 1>}, {pipeline_mode = #tpu.pipeline_mode<synchronous>, transform_indices = @transform_16, window_bounds = array<i64: 1, 32>}, {pipeline_mode = #tpu.pipeline_mode<synchronous>, transform_indices = @transform_17, window_bounds = array<i64: 1, 32>}, {pipeline_mode = #tpu.pipeline_mode<synchronous>, transform_indices = @transform_18, window_bounds = array<i64: 32, 256>}, {pipeline_mode = #tpu.pipeline_mode<synchronous>, transform_indices = @transform_19, window_bounds = array<i64: 16, 256>}]} {
    %c0 = arith.constant 0 : index
    %c0_0 = arith.constant 0 : index
    %0 = vector.load %arg1[%c0, %c0_0] : memref<16x32xf32, #tpu.memory_space<vmem>>, vector<16x32xf32>
    %c0_1 = arith.constant 0 : index
    %c0_2 = arith.constant 0 : index
    %c0_3 = arith.constant 0 : index
    %1 = vector.load %arg2[%c0_1, %c0_2, %c0_3] : memref<8x8x8xf32, #tpu.memory_space<vmem>>, vector<8x8x8xf32>
    %c0_4 = arith.constant 0 : index
    %c0_5 = arith.constant 0 : index
    %c0_6 = arith.constant 0 : index
    %2 = vector.load %arg3[%c0_4, %c0_5, %c0_6] : memref<2x1x32xf32, #tpu.memory_space<vmem>>, vector<1x1x32xf32>
    %3 = vector.shape_cast %2 : vector<1x1x32xf32> to vector<1x32xf32>
    %c0_7 = arith.constant 0 : index
    %c0_8 = arith.constant 0 : index
    %c0_9 = arith.constant 0 : index
    %4 = vector.load %arg4[%c0_7, %c0_8, %c0_9] : memref<2x1x32xf32, #tpu.memory_space<vmem>>, vector<1x1x32xf32>
    %5 = vector.shape_cast %4 : vector<1x1x32xf32> to vector<1x32xf32>
    %c0_10 = arith.constant 0 : index
    %c0_11 = arith.constant 0 : index
    %c0_12 = arith.constant 0 : index
    %6 = vector.load %arg5[%c0_10, %c0_11, %c0_12] : memref<2x32x96xf32, #tpu.memory_space<vmem>>, vector<1x32x96xf32>
    %7 = vector.shape_cast %6 : vector<1x32x96xf32> to vector<32x96xf32>
    %c0_13 = arith.constant 0 : index
    %c0_14 = arith.constant 0 : index
    %c0_15 = arith.constant 0 : index
    %8 = vector.load %arg6[%c0_13, %c0_14, %c0_15] : memref<2x1x96xf32, #tpu.memory_space<vmem>>, vector<1x1x96xf32>
    %9 = vector.shape_cast %8 : vector<1x1x96xf32> to vector<1x96xf32>
    %c0_16 = arith.constant 0 : index
    %c0_17 = arith.constant 0 : index
    %c0_18 = arith.constant 0 : index
    %10 = vector.load %arg7[%c0_16, %c0_17, %c0_18] : memref<2x32x32xf32, #tpu.memory_space<vmem>>, vector<1x32x32xf32>
    %11 = vector.shape_cast %10 : vector<1x32x32xf32> to vector<32x32xf32>
    %c0_19 = arith.constant 0 : index
    %c0_20 = arith.constant 0 : index
    %c0_21 = arith.constant 0 : index
    %12 = vector.load %arg8[%c0_19, %c0_20, %c0_21] : memref<2x1x32xf32, #tpu.memory_space<vmem>>, vector<1x1x32xf32>
    %13 = vector.shape_cast %12 : vector<1x1x32xf32> to vector<1x32xf32>
    %c0_22 = arith.constant 0 : index
    %c0_23 = arith.constant 0 : index
    %c0_24 = arith.constant 0 : index
    %14 = vector.load %arg9[%c0_22, %c0_23, %c0_24] : memref<2x1x32xf32, #tpu.memory_space<vmem>>, vector<1x1x32xf32>
    %15 = vector.shape_cast %14 : vector<1x1x32xf32> to vector<1x32xf32>
    %c0_25 = arith.constant 0 : index
    %c0_26 = arith.constant 0 : index
    %c0_27 = arith.constant 0 : index
    %16 = vector.load %arg10[%c0_25, %c0_26, %c0_27] : memref<2x1x32xf32, #tpu.memory_space<vmem>>, vector<1x1x32xf32>
    %17 = vector.shape_cast %16 : vector<1x1x32xf32> to vector<1x32xf32>
    %c0_28 = arith.constant 0 : index
    %c0_29 = arith.constant 0 : index
    %c0_30 = arith.constant 0 : index
    %18 = vector.load %arg11[%c0_28, %c0_29, %c0_30] : memref<2x32x128xf32, #tpu.memory_space<vmem>>, vector<1x32x128xf32>
    %19 = vector.shape_cast %18 : vector<1x32x128xf32> to vector<32x128xf32>
    %c0_31 = arith.constant 0 : index
    %c0_32 = arith.constant 0 : index
    %c0_33 = arith.constant 0 : index
    %20 = vector.load %arg12[%c0_31, %c0_32, %c0_33] : memref<2x1x128xf32, #tpu.memory_space<vmem>>, vector<1x1x128xf32>
    %21 = vector.shape_cast %20 : vector<1x1x128xf32> to vector<1x128xf32>
    %c0_34 = arith.constant 0 : index
    %c0_35 = arith.constant 0 : index
    %c0_36 = arith.constant 0 : index
    %22 = vector.load %arg13[%c0_34, %c0_35, %c0_36] : memref<2x128x32xf32, #tpu.memory_space<vmem>>, vector<1x128x32xf32>
    %23 = vector.shape_cast %22 : vector<1x128x32xf32> to vector<128x32xf32>
    %c0_37 = arith.constant 0 : index
    %c0_38 = arith.constant 0 : index
    %c0_39 = arith.constant 0 : index
    %24 = vector.load %arg14[%c0_37, %c0_38, %c0_39] : memref<2x1x32xf32, #tpu.memory_space<vmem>>, vector<1x1x32xf32>
    %25 = vector.shape_cast %24 : vector<1x1x32xf32> to vector<1x32xf32>
    %c0_40 = arith.constant 0 : index
    %c0_41 = arith.constant 0 : index
    %c0_42 = arith.constant 0 : index
    %26 = vector.load %arg15[%c0_40, %c0_41, %c0_42] : memref<2x32x1xf32, #tpu.memory_space<vmem>>, vector<1x32x1xf32>
    %27 = vector.shape_cast %26 : vector<1x32x1xf32> to vector<32x1xf32>
    %c0_43 = arith.constant 0 : index
    %c0_44 = arith.constant 0 : index
    %c0_45 = arith.constant 0 : index
    %28 = vector.load %arg16[%c0_43, %c0_44, %c0_45] : memref<2x1x1xf32, #tpu.memory_space<vmem>>, vector<1x1x1xf32>
    %29 = vector.shape_cast %28 : vector<1x1x1xf32> to vector<1x1xf32>
    %cst = arith.constant dense<0.000000e+00> : vector<16x1xf32>
    %30 = tpu.matmul %0, %27, %cst {dimension_numbers = #tpu.dot_dimension_numbers<[1], [0], [0], [1], [0, 0, 1, 1], [], []>} : vector<16x32xf32>, vector<32x1xf32>, vector<16x1xf32> -> vector<16x1xf32>
    %31 = vector.broadcast %29 : vector<1x1xf32> to vector<16x1xf32>
    %32 = arith.addf %30, %31 : vector<16x1xf32>
    %33 = math.cos %32 : vector<16x1xf32>
    %cst_46 = arith.constant dense<0.000000e+00> : vector<16xf32>
    %34 = vector.multi_reduction <add>, %0, %cst_46 [1] : vector<16x32xf32> to vector<16xf32>
    %35 = vector.shape_cast %34 : vector<16xf32> to vector<16x1xf32>
    %cst_47 = arith.constant 3.200000e+01 : f32
    %36 = vector.broadcast %cst_47 : f32 to vector<16x1xf32>
    %37 = arith.divf %35, %36 : vector<16x1xf32>
    %38 = vector.broadcast %37 : vector<16x1xf32> to vector<16x32xf32>
    %39 = arith.subf %0, %38 : vector<16x32xf32>
    %40 = arith.mulf %39, %39 : vector<16x32xf32>
    %cst_48 = arith.constant dense<0.000000e+00> : vector<16xf32>
    %41 = vector.multi_reduction <add>, %40, %cst_48 [1] : vector<16x32xf32> to vector<16xf32>
    %42 = vector.shape_cast %41 : vector<16xf32> to vector<16x1xf32>
    %cst_49 = arith.constant 3.200000e+01 : f32
    %43 = vector.broadcast %cst_49 : f32 to vector<16x1xf32>
    %44 = arith.divf %42, %43 : vector<16x1xf32>
    %45 = vector.broadcast %37 : vector<16x1xf32> to vector<16x32xf32>
    %46 = arith.subf %0, %45 : vector<16x32xf32>
    %cst_50 = arith.constant 9.99999974E-6 : f32
    %47 = vector.broadcast %cst_50 : f32 to vector<16x1xf32>
    %48 = arith.addf %44, %47 : vector<16x1xf32>
    %49 = math.rsqrt %48 : vector<16x1xf32>
    %50 = vector.broadcast %49 : vector<16x1xf32> to vector<16x32xf32>
    %51 = arith.mulf %46, %50 : vector<16x32xf32>
    %52 = vector.broadcast %3 : vector<1x32xf32> to vector<16x32xf32>
    %53 = arith.mulf %51, %52 : vector<16x32xf32>
    %54 = vector.broadcast %5 : vector<1x32xf32> to vector<16x32xf32>
    %55 = arith.addf %53, %54 : vector<16x32xf32>
    %cst_51 = arith.constant dense<0.000000e+00> : vector<16x96xf32>
    %56 = tpu.matmul %55, %7, %cst_51 {dimension_numbers = #tpu.dot_dimension_numbers<[1], [0], [0], [1], [0, 0, 1, 1], [], []>} : vector<16x32xf32>, vector<32x96xf32>, vector<16x96xf32> -> vector<16x96xf32>
    %57 = vector.broadcast %9 : vector<1x96xf32> to vector<16x96xf32>
    %58 = arith.addf %56, %57 : vector<16x96xf32>
    %59 = vector.extract_strided_slice %58 {offsets = [0, 0], sizes = [16, 32], strides = [1, 1]} : vector<16x96xf32> to vector<16x32xf32>
    %60 = vector.shape_cast %59 : vector<16x32xf32> to vector<2x8x32xf32>
    %61 = vector.extract_strided_slice %58 {offsets = [0, 32], sizes = [16, 32], strides = [1, 1]} : vector<16x96xf32> to vector<16x32xf32>
    %62 = vector.shape_cast %61 : vector<16x32xf32> to vector<2x8x32xf32>
    %63 = vector.extract_strided_slice %58 {offsets = [0, 64], sizes = [16, 32], strides = [1, 1]} : vector<16x96xf32> to vector<16x32xf32>
    %64 = vector.shape_cast %63 : vector<16x32xf32> to vector<2x8x32xf32>
    %65 = vector.extract_strided_slice %60 {offsets = [0, 0, 0], sizes = [2, 8, 8], strides = [1, 1, 1]} : vector<2x8x32xf32> to vector<2x8x8xf32>
    %66 = vector.extract_strided_slice %60 {offsets = [0, 0, 8], sizes = [2, 8, 8], strides = [1, 1, 1]} : vector<2x8x32xf32> to vector<2x8x8xf32>
    %67 = vector.extract_strided_slice %60 {offsets = [0, 0, 16], sizes = [2, 8, 8], strides = [1, 1, 1]} : vector<2x8x32xf32> to vector<2x8x8xf32>
    %68 = vector.extract_strided_slice %60 {offsets = [0, 0, 24], sizes = [2, 8, 8], strides = [1, 1, 1]} : vector<2x8x32xf32> to vector<2x8x8xf32>
    %69 = tpu.concatenate %65, %66, %67, %68 in 0 : vector<2x8x8xf32>, vector<2x8x8xf32>, vector<2x8x8xf32>, vector<2x8x8xf32> -> vector<8x8x8xf32>
    %70 = vector.extract_strided_slice %62 {offsets = [0, 0, 0], sizes = [2, 8, 8], strides = [1, 1, 1]} : vector<2x8x32xf32> to vector<2x8x8xf32>
    %71 = vector.extract_strided_slice %62 {offsets = [0, 0, 8], sizes = [2, 8, 8], strides = [1, 1, 1]} : vector<2x8x32xf32> to vector<2x8x8xf32>
    %72 = vector.extract_strided_slice %62 {offsets = [0, 0, 16], sizes = [2, 8, 8], strides = [1, 1, 1]} : vector<2x8x32xf32> to vector<2x8x8xf32>
    %73 = vector.extract_strided_slice %62 {offsets = [0, 0, 24], sizes = [2, 8, 8], strides = [1, 1, 1]} : vector<2x8x32xf32> to vector<2x8x8xf32>
    %74 = tpu.concatenate %70, %71, %72, %73 in 0 : vector<2x8x8xf32>, vector<2x8x8xf32>, vector<2x8x8xf32>, vector<2x8x8xf32> -> vector<8x8x8xf32>
    %75 = vector.extract_strided_slice %64 {offsets = [0, 0, 0], sizes = [2, 8, 8], strides = [1, 1, 1]} : vector<2x8x32xf32> to vector<2x8x8xf32>
    %76 = vector.extract_strided_slice %64 {offsets = [0, 0, 8], sizes = [2, 8, 8], strides = [1, 1, 1]} : vector<2x8x32xf32> to vector<2x8x8xf32>
    %77 = vector.extract_strided_slice %64 {offsets = [0, 0, 16], sizes = [2, 8, 8], strides = [1, 1, 1]} : vector<2x8x32xf32> to vector<2x8x8xf32>
    %78 = vector.extract_strided_slice %64 {offsets = [0, 0, 24], sizes = [2, 8, 8], strides = [1, 1, 1]} : vector<2x8x32xf32> to vector<2x8x8xf32>
    %79 = tpu.concatenate %75, %76, %77, %78 in 0 : vector<2x8x8xf32>, vector<2x8x8xf32>, vector<2x8x8xf32>, vector<2x8x8xf32> -> vector<8x8x8xf32>
    "tpu.trace_start"() <{level = 10 : i32, message = "sqd,skd->sqk"}> : () -> ()
    %cst_52 = arith.constant dense<0.000000e+00> : vector<8x8x8xf32>
    %80 = tpu.matmul %69, %74, %cst_52 {dimension_numbers = #tpu.dot_dimension_numbers<[2], [2], [1], [1], [0, 0, 0, 1, 1, 1], [0], [0]>} : vector<8x8x8xf32>, vector<8x8x8xf32>, vector<8x8x8xf32> -> vector<8x8x8xf32>
    "tpu.trace_stop"() : () -> ()
    %cst_53 = arith.constant 0.353553385 : f32
    %81 = vector.broadcast %cst_53 : f32 to vector<8x8x8xf32>
    %82 = arith.mulf %80, %81 : vector<8x8x8xf32>
    %83 = arith.addf %82, %1 : vector<8x8x8xf32>
    %cst_54 = arith.constant dense<0xFF800000> : vector<8x8xf32>
    %84 = vector.multi_reduction <maximumf>, %83, %cst_54 [2] : vector<8x8x8xf32> to vector<8x8xf32>
    %85 = vector.shape_cast %84 : vector<8x8xf32> to vector<8x8x1xf32>
    %86 = vector.broadcast %85 : vector<8x8x1xf32> to vector<8x8x8xf32>
    %87 = arith.subf %83, %86 : vector<8x8x8xf32>
    %88 = math.exp %87 : vector<8x8x8xf32>
    %cst_55 = arith.constant dense<0.000000e+00> : vector<8x8xf32>
    %89 = vector.multi_reduction <add>, %88, %cst_55 [2] : vector<8x8x8xf32> to vector<8x8xf32>
    %90 = vector.shape_cast %89 : vector<8x8xf32> to vector<8x8x1xf32>
    %91 = tpu.reciprocal %90 {approx = true} : vector<8x8x1xf32> -> vector<8x8x1xf32>
    %92 = vector.broadcast %91 : vector<8x8x1xf32> to vector<8x8x8xf32>
    %93 = arith.mulf %88, %92 : vector<8x8x8xf32>
    "tpu.trace_start"() <{level = 10 : i32, message = "sqk,skd->sqd"}> : () -> ()
    %cst_56 = arith.constant dense<0.000000e+00> : vector<8x8x8xf32>
    %94 = tpu.matmul %93, %79, %cst_56 {dimension_numbers = #tpu.dot_dimension_numbers<[2], [1], [1], [2], [0, 0, 0, 1, 1, 2], [0], [0]>} : vector<8x8x8xf32>, vector<8x8x8xf32>, vector<8x8x8xf32> -> vector<8x8x8xf32>
    "tpu.trace_stop"() : () -> ()
    %95 = vector.extract_strided_slice %94 {offsets = [0, 0, 0], sizes = [2, 8, 8], strides = [1, 1, 1]} : vector<8x8x8xf32> to vector<2x8x8xf32>
    %96 = vector.extract_strided_slice %94 {offsets = [2, 0, 0], sizes = [2, 8, 8], strides = [1, 1, 1]} : vector<8x8x8xf32> to vector<2x8x8xf32>
    %97 = vector.extract_strided_slice %94 {offsets = [4, 0, 0], sizes = [2, 8, 8], strides = [1, 1, 1]} : vector<8x8x8xf32> to vector<2x8x8xf32>
    %98 = vector.extract_strided_slice %94 {offsets = [6, 0, 0], sizes = [2, 8, 8], strides = [1, 1, 1]} : vector<8x8x8xf32> to vector<2x8x8xf32>
    %99 = tpu.concatenate %95, %96, %97, %98 in 2 : vector<2x8x8xf32>, vector<2x8x8xf32>, vector<2x8x8xf32>, vector<2x8x8xf32> -> vector<2x8x32xf32>
    %100 = vector.shape_cast %99 : vector<2x8x32xf32> to vector<16x32xf32>
    %cst_57 = arith.constant dense<0.000000e+00> : vector<16x32xf32>
    %101 = tpu.matmul %100, %11, %cst_57 {dimension_numbers = #tpu.dot_dimension_numbers<[1], [0], [0], [1], [0, 0, 1, 1], [], []>} : vector<16x32xf32>, vector<32x32xf32>, vector<16x32xf32> -> vector<16x32xf32>
    %102 = arith.addf %0, %101 : vector<16x32xf32>
    %103 = vector.broadcast %13 : vector<1x32xf32> to vector<16x32xf32>
    %104 = arith.addf %102, %103 : vector<16x32xf32>
    %cst_58 = arith.constant dense<0.000000e+00> : vector<16xf32>
    %105 = vector.multi_reduction <add>, %104, %cst_58 [1] : vector<16x32xf32> to vector<16xf32>
    %106 = vector.shape_cast %105 : vector<16xf32> to vector<16x1xf32>
    %cst_59 = arith.constant 3.200000e+01 : f32
    %107 = vector.broadcast %cst_59 : f32 to vector<16x1xf32>
    %108 = arith.divf %106, %107 : vector<16x1xf32>
    %109 = vector.broadcast %108 : vector<16x1xf32> to vector<16x32xf32>
    %110 = arith.subf %104, %109 : vector<16x32xf32>
    %111 = arith.mulf %110, %110 : vector<16x32xf32>
    %cst_60 = arith.constant dense<0.000000e+00> : vector<16xf32>
    %112 = vector.multi_reduction <add>, %111, %cst_60 [1] : vector<16x32xf32> to vector<16xf32>
    %113 = vector.shape_cast %112 : vector<16xf32> to vector<16x1xf32>
    %cst_61 = arith.constant 3.200000e+01 : f32
    %114 = vector.broadcast %cst_61 : f32 to vector<16x1xf32>
    %115 = arith.divf %113, %114 : vector<16x1xf32>
    %116 = vector.broadcast %108 : vector<16x1xf32> to vector<16x32xf32>
    %117 = arith.subf %104, %116 : vector<16x32xf32>
    %cst_62 = arith.constant 9.99999974E-6 : f32
    %118 = vector.broadcast %cst_62 : f32 to vector<16x1xf32>
    %119 = arith.addf %115, %118 : vector<16x1xf32>
    %120 = math.rsqrt %119 : vector<16x1xf32>
    %121 = vector.broadcast %120 : vector<16x1xf32> to vector<16x32xf32>
    %122 = arith.mulf %117, %121 : vector<16x32xf32>
    %123 = vector.broadcast %15 : vector<1x32xf32> to vector<16x32xf32>
    %124 = arith.mulf %122, %123 : vector<16x32xf32>
    %125 = vector.broadcast %17 : vector<1x32xf32> to vector<16x32xf32>
    %126 = arith.addf %124, %125 : vector<16x32xf32>
    %cst_63 = arith.constant dense<0.000000e+00> : vector<16x128xf32>
    %127 = tpu.matmul %126, %19, %cst_63 {dimension_numbers = #tpu.dot_dimension_numbers<[1], [0], [0], [1], [0, 0, 1, 1], [], []>} : vector<16x32xf32>, vector<32x128xf32>, vector<16x128xf32> -> vector<16x128xf32>
    %128 = vector.broadcast %21 : vector<1x128xf32> to vector<16x128xf32>
    %129 = arith.addf %127, %128 : vector<16x128xf32>
    %cst_64 = arith.constant 5.000000e-01 : f32
    %130 = vector.broadcast %cst_64 : f32 to vector<16x128xf32>
    %131 = arith.mulf %130, %129 : vector<16x128xf32>
    %cst_65 = arith.constant 4.471500e-02 : f32
    %132 = vector.broadcast %cst_65 : f32 to vector<16x128xf32>
    %133 = arith.mulf %132, %129 : vector<16x128xf32>
    %134 = arith.mulf %133, %129 : vector<16x128xf32>
    %135 = arith.mulf %134, %129 : vector<16x128xf32>
    %136 = arith.addf %129, %135 : vector<16x128xf32>
    %cst_66 = arith.constant 0.797884583 : f32
    %137 = vector.broadcast %cst_66 : f32 to vector<16x128xf32>
    %138 = arith.mulf %137, %136 : vector<16x128xf32>
    %139 = math.tanh %138 : vector<16x128xf32>
    %cst_67 = arith.constant 1.000000e+00 : f32
    %140 = vector.broadcast %cst_67 : f32 to vector<16x128xf32>
    %141 = arith.addf %140, %139 : vector<16x128xf32>
    %142 = arith.mulf %131, %141 : vector<16x128xf32>
    %cst_68 = arith.constant dense<0.000000e+00> : vector<16x32xf32>
    %143 = tpu.matmul %142, %23, %cst_68 {dimension_numbers = #tpu.dot_dimension_numbers<[1], [0], [0], [1], [0, 0, 1, 1], [], []>} : vector<16x128xf32>, vector<128x32xf32>, vector<16x32xf32> -> vector<16x32xf32>
    %144 = arith.addf %104, %143 : vector<16x32xf32>
    %145 = vector.broadcast %25 : vector<1x32xf32> to vector<16x32xf32>
    %146 = arith.addf %144, %145 : vector<16x32xf32>
    %147 = vector.broadcast %33 : vector<16x1xf32> to vector<16x32xf32>
    %148 = arith.mulf %146, %147 : vector<16x32xf32>
    %c1 = arith.constant 1 : index
    %c0_69 = arith.constant 0 : index
    %c0_70 = arith.constant 0 : index
    %149 = vector.load %arg3[%c1, %c0_69, %c0_70] : memref<2x1x32xf32, #tpu.memory_space<vmem>>, vector<1x1x32xf32>
    %150 = vector.shape_cast %149 : vector<1x1x32xf32> to vector<1x32xf32>
    %c1_71 = arith.constant 1 : index
    %c0_72 = arith.constant 0 : index
    %c0_73 = arith.constant 0 : index
    %151 = vector.load %arg4[%c1_71, %c0_72, %c0_73] : memref<2x1x32xf32, #tpu.memory_space<vmem>>, vector<1x1x32xf32>
    %152 = vector.shape_cast %151 : vector<1x1x32xf32> to vector<1x32xf32>
    %c1_74 = arith.constant 1 : index
    %c0_75 = arith.constant 0 : index
    %c0_76 = arith.constant 0 : index
    %153 = vector.load %arg5[%c1_74, %c0_75, %c0_76] : memref<2x32x96xf32, #tpu.memory_space<vmem>>, vector<1x32x96xf32>
    %154 = vector.shape_cast %153 : vector<1x32x96xf32> to vector<32x96xf32>
    %c1_77 = arith.constant 1 : index
    %c0_78 = arith.constant 0 : index
    %c0_79 = arith.constant 0 : index
    %155 = vector.load %arg6[%c1_77, %c0_78, %c0_79] : memref<2x1x96xf32, #tpu.memory_space<vmem>>, vector<1x1x96xf32>
    %156 = vector.shape_cast %155 : vector<1x1x96xf32> to vector<1x96xf32>
    %c1_80 = arith.constant 1 : index
    %c0_81 = arith.constant 0 : index
    %c0_82 = arith.constant 0 : index
    %157 = vector.load %arg7[%c1_80, %c0_81, %c0_82] : memref<2x32x32xf32, #tpu.memory_space<vmem>>, vector<1x32x32xf32>
    %158 = vector.shape_cast %157 : vector<1x32x32xf32> to vector<32x32xf32>
    %c1_83 = arith.constant 1 : index
    %c0_84 = arith.constant 0 : index
    %c0_85 = arith.constant 0 : index
    %159 = vector.load %arg8[%c1_83, %c0_84, %c0_85] : memref<2x1x32xf32, #tpu.memory_space<vmem>>, vector<1x1x32xf32>
    %160 = vector.shape_cast %159 : vector<1x1x32xf32> to vector<1x32xf32>
    %c1_86 = arith.constant 1 : index
    %c0_87 = arith.constant 0 : index
    %c0_88 = arith.constant 0 : index
    %161 = vector.load %arg9[%c1_86, %c0_87, %c0_88] : memref<2x1x32xf32, #tpu.memory_space<vmem>>, vector<1x1x32xf32>
    %162 = vector.shape_cast %161 : vector<1x1x32xf32> to vector<1x32xf32>
    %c1_89 = arith.constant 1 : index
    %c0_90 = arith.constant 0 : index
    %c0_91 = arith.constant 0 : index
    %163 = vector.load %arg10[%c1_89, %c0_90, %c0_91] : memref<2x1x32xf32, #tpu.memory_space<vmem>>, vector<1x1x32xf32>
    %164 = vector.shape_cast %163 : vector<1x1x32xf32> to vector<1x32xf32>
    %c1_92 = arith.constant 1 : index
    %c0_93 = arith.constant 0 : index
    %c0_94 = arith.constant 0 : index
    %165 = vector.load %arg11[%c1_92, %c0_93, %c0_94] : memref<2x32x128xf32, #tpu.memory_space<vmem>>, vector<1x32x128xf32>
    %166 = vector.shape_cast %165 : vector<1x32x128xf32> to vector<32x128xf32>
    %c1_95 = arith.constant 1 : index
    %c0_96 = arith.constant 0 : index
    %c0_97 = arith.constant 0 : index
    %167 = vector.load %arg12[%c1_95, %c0_96, %c0_97] : memref<2x1x128xf32, #tpu.memory_space<vmem>>, vector<1x1x128xf32>
    %168 = vector.shape_cast %167 : vector<1x1x128xf32> to vector<1x128xf32>
    %c1_98 = arith.constant 1 : index
    %c0_99 = arith.constant 0 : index
    %c0_100 = arith.constant 0 : index
    %169 = vector.load %arg13[%c1_98, %c0_99, %c0_100] : memref<2x128x32xf32, #tpu.memory_space<vmem>>, vector<1x128x32xf32>
    %170 = vector.shape_cast %169 : vector<1x128x32xf32> to vector<128x32xf32>
    %c1_101 = arith.constant 1 : index
    %c0_102 = arith.constant 0 : index
    %c0_103 = arith.constant 0 : index
    %171 = vector.load %arg14[%c1_101, %c0_102, %c0_103] : memref<2x1x32xf32, #tpu.memory_space<vmem>>, vector<1x1x32xf32>
    %172 = vector.shape_cast %171 : vector<1x1x32xf32> to vector<1x32xf32>
    %c1_104 = arith.constant 1 : index
    %c0_105 = arith.constant 0 : index
    %c0_106 = arith.constant 0 : index
    %173 = vector.load %arg15[%c1_104, %c0_105, %c0_106] : memref<2x32x1xf32, #tpu.memory_space<vmem>>, vector<1x32x1xf32>
    %174 = vector.shape_cast %173 : vector<1x32x1xf32> to vector<32x1xf32>
    %c1_107 = arith.constant 1 : index
    %c0_108 = arith.constant 0 : index
    %c0_109 = arith.constant 0 : index
    %175 = vector.load %arg16[%c1_107, %c0_108, %c0_109] : memref<2x1x1xf32, #tpu.memory_space<vmem>>, vector<1x1x1xf32>
    %176 = vector.shape_cast %175 : vector<1x1x1xf32> to vector<1x1xf32>
    %cst_110 = arith.constant dense<0.000000e+00> : vector<16x1xf32>
    %177 = tpu.matmul %148, %174, %cst_110 {dimension_numbers = #tpu.dot_dimension_numbers<[1], [0], [0], [1], [0, 0, 1, 1], [], []>} : vector<16x32xf32>, vector<32x1xf32>, vector<16x1xf32> -> vector<16x1xf32>
    %178 = vector.broadcast %176 : vector<1x1xf32> to vector<16x1xf32>
    %179 = arith.addf %177, %178 : vector<16x1xf32>
    %180 = math.cos %179 : vector<16x1xf32>
    %cst_111 = arith.constant dense<0.000000e+00> : vector<16xf32>
    %181 = vector.multi_reduction <add>, %148, %cst_111 [1] : vector<16x32xf32> to vector<16xf32>
    %182 = vector.shape_cast %181 : vector<16xf32> to vector<16x1xf32>
    %cst_112 = arith.constant 3.200000e+01 : f32
    %183 = vector.broadcast %cst_112 : f32 to vector<16x1xf32>
    %184 = arith.divf %182, %183 : vector<16x1xf32>
    %185 = vector.broadcast %184 : vector<16x1xf32> to vector<16x32xf32>
    %186 = arith.subf %148, %185 : vector<16x32xf32>
    %187 = arith.mulf %186, %186 : vector<16x32xf32>
    %cst_113 = arith.constant dense<0.000000e+00> : vector<16xf32>
    %188 = vector.multi_reduction <add>, %187, %cst_113 [1] : vector<16x32xf32> to vector<16xf32>
    %189 = vector.shape_cast %188 : vector<16xf32> to vector<16x1xf32>
    %cst_114 = arith.constant 3.200000e+01 : f32
    %190 = vector.broadcast %cst_114 : f32 to vector<16x1xf32>
    %191 = arith.divf %189, %190 : vector<16x1xf32>
    %192 = vector.broadcast %184 : vector<16x1xf32> to vector<16x32xf32>
    %193 = arith.subf %148, %192 : vector<16x32xf32>
    %cst_115 = arith.constant 9.99999974E-6 : f32
    %194 = vector.broadcast %cst_115 : f32 to vector<16x1xf32>
    %195 = arith.addf %191, %194 : vector<16x1xf32>
    %196 = math.rsqrt %195 : vector<16x1xf32>
    %197 = vector.broadcast %196 : vector<16x1xf32> to vector<16x32xf32>
    %198 = arith.mulf %193, %197 : vector<16x32xf32>
    %199 = vector.broadcast %150 : vector<1x32xf32> to vector<16x32xf32>
    %200 = arith.mulf %198, %199 : vector<16x32xf32>
    %201 = vector.broadcast %152 : vector<1x32xf32> to vector<16x32xf32>
    %202 = arith.addf %200, %201 : vector<16x32xf32>
    %cst_116 = arith.constant dense<0.000000e+00> : vector<16x96xf32>
    %203 = tpu.matmul %202, %154, %cst_116 {dimension_numbers = #tpu.dot_dimension_numbers<[1], [0], [0], [1], [0, 0, 1, 1], [], []>} : vector<16x32xf32>, vector<32x96xf32>, vector<16x96xf32> -> vector<16x96xf32>
    %204 = vector.broadcast %156 : vector<1x96xf32> to vector<16x96xf32>
    %205 = arith.addf %203, %204 : vector<16x96xf32>
    %206 = vector.extract_strided_slice %205 {offsets = [0, 0], sizes = [16, 32], strides = [1, 1]} : vector<16x96xf32> to vector<16x32xf32>
    %207 = vector.shape_cast %206 : vector<16x32xf32> to vector<2x8x32xf32>
    %208 = vector.extract_strided_slice %205 {offsets = [0, 32], sizes = [16, 32], strides = [1, 1]} : vector<16x96xf32> to vector<16x32xf32>
    %209 = vector.shape_cast %208 : vector<16x32xf32> to vector<2x8x32xf32>
    %210 = vector.extract_strided_slice %205 {offsets = [0, 64], sizes = [16, 32], strides = [1, 1]} : vector<16x96xf32> to vector<16x32xf32>
    %211 = vector.shape_cast %210 : vector<16x32xf32> to vector<2x8x32xf32>
    %212 = vector.extract_strided_slice %207 {offsets = [0, 0, 0], sizes = [2, 8, 8], strides = [1, 1, 1]} : vector<2x8x32xf32> to vector<2x8x8xf32>
    %213 = vector.extract_strided_slice %207 {offsets = [0, 0, 8], sizes = [2, 8, 8], strides = [1, 1, 1]} : vector<2x8x32xf32> to vector<2x8x8xf32>
    %214 = vector.extract_strided_slice %207 {offsets = [0, 0, 16], sizes = [2, 8, 8], strides = [1, 1, 1]} : vector<2x8x32xf32> to vector<2x8x8xf32>
    %215 = vector.extract_strided_slice %207 {offsets = [0, 0, 24], sizes = [2, 8, 8], strides = [1, 1, 1]} : vector<2x8x32xf32> to vector<2x8x8xf32>
    %216 = tpu.concatenate %212, %213, %214, %215 in 0 : vector<2x8x8xf32>, vector<2x8x8xf32>, vector<2x8x8xf32>, vector<2x8x8xf32> -> vector<8x8x8xf32>
    %217 = vector.extract_strided_slice %209 {offsets = [0, 0, 0], sizes = [2, 8, 8], strides = [1, 1, 1]} : vector<2x8x32xf32> to vector<2x8x8xf32>
    %218 = vector.extract_strided_slice %209 {offsets = [0, 0, 8], sizes = [2, 8, 8], strides = [1, 1, 1]} : vector<2x8x32xf32> to vector<2x8x8xf32>
    %219 = vector.extract_strided_slice %209 {offsets = [0, 0, 16], sizes = [2, 8, 8], strides = [1, 1, 1]} : vector<2x8x32xf32> to vector<2x8x8xf32>
    %220 = vector.extract_strided_slice %209 {offsets = [0, 0, 24], sizes = [2, 8, 8], strides = [1, 1, 1]} : vector<2x8x32xf32> to vector<2x8x8xf32>
    %221 = tpu.concatenate %217, %218, %219, %220 in 0 : vector<2x8x8xf32>, vector<2x8x8xf32>, vector<2x8x8xf32>, vector<2x8x8xf32> -> vector<8x8x8xf32>
    %222 = vector.extract_strided_slice %211 {offsets = [0, 0, 0], sizes = [2, 8, 8], strides = [1, 1, 1]} : vector<2x8x32xf32> to vector<2x8x8xf32>
    %223 = vector.extract_strided_slice %211 {offsets = [0, 0, 8], sizes = [2, 8, 8], strides = [1, 1, 1]} : vector<2x8x32xf32> to vector<2x8x8xf32>
    %224 = vector.extract_strided_slice %211 {offsets = [0, 0, 16], sizes = [2, 8, 8], strides = [1, 1, 1]} : vector<2x8x32xf32> to vector<2x8x8xf32>
    %225 = vector.extract_strided_slice %211 {offsets = [0, 0, 24], sizes = [2, 8, 8], strides = [1, 1, 1]} : vector<2x8x32xf32> to vector<2x8x8xf32>
    %226 = tpu.concatenate %222, %223, %224, %225 in 0 : vector<2x8x8xf32>, vector<2x8x8xf32>, vector<2x8x8xf32>, vector<2x8x8xf32> -> vector<8x8x8xf32>
    "tpu.trace_start"() <{level = 10 : i32, message = "sqd,skd->sqk"}> : () -> ()
    %cst_117 = arith.constant dense<0.000000e+00> : vector<8x8x8xf32>
    %227 = tpu.matmul %216, %221, %cst_117 {dimension_numbers = #tpu.dot_dimension_numbers<[2], [2], [1], [1], [0, 0, 0, 1, 1, 1], [0], [0]>} : vector<8x8x8xf32>, vector<8x8x8xf32>, vector<8x8x8xf32> -> vector<8x8x8xf32>
    "tpu.trace_stop"() : () -> ()
    %cst_118 = arith.constant 0.353553385 : f32
    %228 = vector.broadcast %cst_118 : f32 to vector<8x8x8xf32>
    %229 = arith.mulf %227, %228 : vector<8x8x8xf32>
    %230 = arith.addf %229, %1 : vector<8x8x8xf32>
    %cst_119 = arith.constant dense<0xFF800000> : vector<8x8xf32>
    %231 = vector.multi_reduction <maximumf>, %230, %cst_119 [2] : vector<8x8x8xf32> to vector<8x8xf32>
    %232 = vector.shape_cast %231 : vector<8x8xf32> to vector<8x8x1xf32>
    %233 = vector.broadcast %232 : vector<8x8x1xf32> to vector<8x8x8xf32>
    %234 = arith.subf %230, %233 : vector<8x8x8xf32>
    %235 = math.exp %234 : vector<8x8x8xf32>
    %cst_120 = arith.constant dense<0.000000e+00> : vector<8x8xf32>
    %236 = vector.multi_reduction <add>, %235, %cst_120 [2] : vector<8x8x8xf32> to vector<8x8xf32>
    %237 = vector.shape_cast %236 : vector<8x8xf32> to vector<8x8x1xf32>
    %238 = tpu.reciprocal %237 {approx = true} : vector<8x8x1xf32> -> vector<8x8x1xf32>
    %239 = vector.broadcast %238 : vector<8x8x1xf32> to vector<8x8x8xf32>
    %240 = arith.mulf %235, %239 : vector<8x8x8xf32>
    "tpu.trace_start"() <{level = 10 : i32, message = "sqk,skd->sqd"}> : () -> ()
    %cst_121 = arith.constant dense<0.000000e+00> : vector<8x8x8xf32>
    %241 = tpu.matmul %240, %226, %cst_121 {dimension_numbers = #tpu.dot_dimension_numbers<[2], [1], [1], [2], [0, 0, 0, 1, 1, 2], [0], [0]>} : vector<8x8x8xf32>, vector<8x8x8xf32>, vector<8x8x8xf32> -> vector<8x8x8xf32>
    "tpu.trace_stop"() : () -> ()
    %242 = vector.extract_strided_slice %241 {offsets = [0, 0, 0], sizes = [2, 8, 8], strides = [1, 1, 1]} : vector<8x8x8xf32> to vector<2x8x8xf32>
    %243 = vector.extract_strided_slice %241 {offsets = [2, 0, 0], sizes = [2, 8, 8], strides = [1, 1, 1]} : vector<8x8x8xf32> to vector<2x8x8xf32>
    %244 = vector.extract_strided_slice %241 {offsets = [4, 0, 0], sizes = [2, 8, 8], strides = [1, 1, 1]} : vector<8x8x8xf32> to vector<2x8x8xf32>
    %245 = vector.extract_strided_slice %241 {offsets = [6, 0, 0], sizes = [2, 8, 8], strides = [1, 1, 1]} : vector<8x8x8xf32> to vector<2x8x8xf32>
    %246 = tpu.concatenate %242, %243, %244, %245 in 2 : vector<2x8x8xf32>, vector<2x8x8xf32>, vector<2x8x8xf32>, vector<2x8x8xf32> -> vector<2x8x32xf32>
    %247 = vector.shape_cast %246 : vector<2x8x32xf32> to vector<16x32xf32>
    %cst_122 = arith.constant dense<0.000000e+00> : vector<16x32xf32>
    %248 = tpu.matmul %247, %158, %cst_122 {dimension_numbers = #tpu.dot_dimension_numbers<[1], [0], [0], [1], [0, 0, 1, 1], [], []>} : vector<16x32xf32>, vector<32x32xf32>, vector<16x32xf32> -> vector<16x32xf32>
    %249 = arith.addf %148, %248 : vector<16x32xf32>
    %250 = vector.broadcast %160 : vector<1x32xf32> to vector<16x32xf32>
    %251 = arith.addf %249, %250 : vector<16x32xf32>
    %cst_123 = arith.constant dense<0.000000e+00> : vector<16xf32>
    %252 = vector.multi_reduction <add>, %251, %cst_123 [1] : vector<16x32xf32> to vector<16xf32>
    %253 = vector.shape_cast %252 : vector<16xf32> to vector<16x1xf32>
    %cst_124 = arith.constant 3.200000e+01 : f32
    %254 = vector.broadcast %cst_124 : f32 to vector<16x1xf32>
    %255 = arith.divf %253, %254 : vector<16x1xf32>
    %256 = vector.broadcast %255 : vector<16x1xf32> to vector<16x32xf32>
    %257 = arith.subf %251, %256 : vector<16x32xf32>
    %258 = arith.mulf %257, %257 : vector<16x32xf32>
    %cst_125 = arith.constant dense<0.000000e+00> : vector<16xf32>
    %259 = vector.multi_reduction <add>, %258, %cst_125 [1] : vector<16x32xf32> to vector<16xf32>
    %260 = vector.shape_cast %259 : vector<16xf32> to vector<16x1xf32>
    %cst_126 = arith.constant 3.200000e+01 : f32
    %261 = vector.broadcast %cst_126 : f32 to vector<16x1xf32>
    %262 = arith.divf %260, %261 : vector<16x1xf32>
    %263 = vector.broadcast %255 : vector<16x1xf32> to vector<16x32xf32>
    %264 = arith.subf %251, %263 : vector<16x32xf32>
    %cst_127 = arith.constant 9.99999974E-6 : f32
    %265 = vector.broadcast %cst_127 : f32 to vector<16x1xf32>
    %266 = arith.addf %262, %265 : vector<16x1xf32>
    %267 = math.rsqrt %266 : vector<16x1xf32>
    %268 = vector.broadcast %267 : vector<16x1xf32> to vector<16x32xf32>
    %269 = arith.mulf %264, %268 : vector<16x32xf32>
    %270 = vector.broadcast %162 : vector<1x32xf32> to vector<16x32xf32>
    %271 = arith.mulf %269, %270 : vector<16x32xf32>
    %272 = vector.broadcast %164 : vector<1x32xf32> to vector<16x32xf32>
    %273 = arith.addf %271, %272 : vector<16x32xf32>
    %cst_128 = arith.constant dense<0.000000e+00> : vector<16x128xf32>
    %274 = tpu.matmul %273, %166, %cst_128 {dimension_numbers = #tpu.dot_dimension_numbers<[1], [0], [0], [1], [0, 0, 1, 1], [], []>} : vector<16x32xf32>, vector<32x128xf32>, vector<16x128xf32> -> vector<16x128xf32>
    %275 = vector.broadcast %168 : vector<1x128xf32> to vector<16x128xf32>
    %276 = arith.addf %274, %275 : vector<16x128xf32>
    %cst_129 = arith.constant 5.000000e-01 : f32
    %277 = vector.broadcast %cst_129 : f32 to vector<16x128xf32>
    %278 = arith.mulf %277, %276 : vector<16x128xf32>
    %cst_130 = arith.constant 4.471500e-02 : f32
    %279 = vector.broadcast %cst_130 : f32 to vector<16x128xf32>
    %280 = arith.mulf %279, %276 : vector<16x128xf32>
    %281 = arith.mulf %280, %276 : vector<16x128xf32>
    %282 = arith.mulf %281, %276 : vector<16x128xf32>
    %283 = arith.addf %276, %282 : vector<16x128xf32>
    %cst_131 = arith.constant 0.797884583 : f32
    %284 = vector.broadcast %cst_131 : f32 to vector<16x128xf32>
    %285 = arith.mulf %284, %283 : vector<16x128xf32>
    %286 = math.tanh %285 : vector<16x128xf32>
    %cst_132 = arith.constant 1.000000e+00 : f32
    %287 = vector.broadcast %cst_132 : f32 to vector<16x128xf32>
    %288 = arith.addf %287, %286 : vector<16x128xf32>
    %289 = arith.mulf %278, %288 : vector<16x128xf32>
    %cst_133 = arith.constant dense<0.000000e+00> : vector<16x32xf32>
    %290 = tpu.matmul %289, %170, %cst_133 {dimension_numbers = #tpu.dot_dimension_numbers<[1], [0], [0], [1], [0, 0, 1, 1], [], []>} : vector<16x128xf32>, vector<128x32xf32>, vector<16x32xf32> -> vector<16x32xf32>
    %291 = arith.addf %251, %290 : vector<16x32xf32>
    %292 = vector.broadcast %172 : vector<1x32xf32> to vector<16x32xf32>
    %293 = arith.addf %291, %292 : vector<16x32xf32>
    %294 = vector.broadcast %180 : vector<16x1xf32> to vector<16x32xf32>
    %295 = arith.mulf %293, %294 : vector<16x32xf32>
    %c0_134 = arith.constant 0 : index
    %c0_135 = arith.constant 0 : index
    %296 = vector.load %arg17[%c0_134, %c0_135] : memref<1x32xf32, #tpu.memory_space<vmem>>, vector<1x32xf32>
    %c0_136 = arith.constant 0 : index
    %c0_137 = arith.constant 0 : index
    %297 = vector.load %arg18[%c0_136, %c0_137] : memref<1x32xf32, #tpu.memory_space<vmem>>, vector<1x32xf32>
    %c0_138 = arith.constant 0 : index
    %c0_139 = arith.constant 0 : index
    %298 = vector.load %arg19[%c0_138, %c0_139] : memref<32x256xf32, #tpu.memory_space<vmem>>, vector<32x256xf32>
    %cst_140 = arith.constant dense<0.000000e+00> : vector<16xf32>
    %299 = vector.multi_reduction <add>, %295, %cst_140 [1] : vector<16x32xf32> to vector<16xf32>
    %300 = vector.shape_cast %299 : vector<16xf32> to vector<16x1xf32>
    %cst_141 = arith.constant 3.200000e+01 : f32
    %301 = vector.broadcast %cst_141 : f32 to vector<16x1xf32>
    %302 = arith.divf %300, %301 : vector<16x1xf32>
    %303 = vector.broadcast %302 : vector<16x1xf32> to vector<16x32xf32>
    %304 = arith.subf %295, %303 : vector<16x32xf32>
    %305 = arith.mulf %304, %304 : vector<16x32xf32>
    %cst_142 = arith.constant dense<0.000000e+00> : vector<16xf32>
    %306 = vector.multi_reduction <add>, %305, %cst_142 [1] : vector<16x32xf32> to vector<16xf32>
    %307 = vector.shape_cast %306 : vector<16xf32> to vector<16x1xf32>
    %cst_143 = arith.constant 3.200000e+01 : f32
    %308 = vector.broadcast %cst_143 : f32 to vector<16x1xf32>
    %309 = arith.divf %307, %308 : vector<16x1xf32>
    %310 = vector.broadcast %302 : vector<16x1xf32> to vector<16x32xf32>
    %311 = arith.subf %295, %310 : vector<16x32xf32>
    %cst_144 = arith.constant 9.99999974E-6 : f32
    %312 = vector.broadcast %cst_144 : f32 to vector<16x1xf32>
    %313 = arith.addf %309, %312 : vector<16x1xf32>
    %314 = math.rsqrt %313 : vector<16x1xf32>
    %315 = vector.broadcast %314 : vector<16x1xf32> to vector<16x32xf32>
    %316 = arith.mulf %311, %315 : vector<16x32xf32>
    %317 = vector.broadcast %296 : vector<1x32xf32> to vector<16x32xf32>
    %318 = arith.mulf %316, %317 : vector<16x32xf32>
    %319 = vector.broadcast %297 : vector<1x32xf32> to vector<16x32xf32>
    %320 = arith.addf %318, %319 : vector<16x32xf32>
    %cst_145 = arith.constant dense<0.000000e+00> : vector<16x256xf32>
    %321 = tpu.matmul %320, %298, %cst_145 {dimension_numbers = #tpu.dot_dimension_numbers<[1], [0], [0], [1], [0, 0, 1, 1], [], []>} : vector<16x32xf32>, vector<32x256xf32>, vector<16x256xf32> -> vector<16x256xf32>
    %c0_146 = arith.constant 0 : index
    %c0_147 = arith.constant 0 : index
    %322 = vector.load %arg20[%c0_146, %c0_147] : memref<16x256xf32, #tpu.memory_space<vmem>>, vector<16x256xf32>
    tpu.vector_store %arg20[%c0_146, %c0_147], %321 {strides = array<i32>} : memref<16x256xf32, #tpu.memory_space<vmem>>, vector<16x256xf32>,
    return
  }
  func.func @transform_0(%arg0: i32) -> (i32, i32) {
    %c0_i32 = arith.constant 0 : i32
    %c0_i32_0 = arith.constant 0 : i32
    %c0_i32_1 = arith.constant 0 : i32
    return %c0_i32, %c0_i32_0 : i32, i32
  }
  func.func @transform_1(%arg0: i32) -> (i32, i32, i32) {
    %c0_i32 = arith.constant 0 : i32
    %c0_i32_0 = arith.constant 0 : i32
    %c0_i32_1 = arith.constant 0 : i32
    %c0_i32_2 = arith.constant 0 : i32
    return %c0_i32, %c0_i32_0, %c0_i32_1 : i32, i32, i32
  }
  func.func @transform_2(%arg0: i32) -> (i32, i32, i32) {
    %c0_i32 = arith.constant 0 : i32
    %c0_i32_0 = arith.constant 0 : i32
    %c0_i32_1 = arith.constant 0 : i32
    %c0_i32_2 = arith.constant 0 : i32
    return %c0_i32, %c0_i32_0, %c0_i32_1 : i32, i32, i32
  }
  func.func @transform_3(%arg0: i32) -> (i32, i32, i32) {
    %c0_i32 = arith.constant 0 : i32
    %c0_i32_0 = arith.constant 0 : i32
    %c0_i32_1 = arith.constant 0 : i32
    %c0_i32_2 = arith.constant 0 : i32
    return %c0_i32, %c0_i32_0, %c0_i32_1 : i32, i32, i32
  }
  func.func @transform_4(%arg0: i32) -> (i32, i32, i32) {
    %c0_i32 = arith.constant 0 : i32
    %c0_i32_0 = arith.constant 0 : i32
    %c0_i32_1 = arith.constant 0 : i32
    %c0_i32_2 = arith.constant 0 : i32
    return %c0_i32, %c0_i32_0, %c0_i32_1 : i32, i32, i32
  }
  func.func @transform_5(%arg0: i32) -> (i32, i32, i32) {
    %c0_i32 = arith.constant 0 : i32
    %c0_i32_0 = arith.constant 0 : i32
    %c0_i32_1 = arith.constant 0 : i32
    %c0_i32_2 = arith.constant 0 : i32
    return %c0_i32, %c0_i32_0, %c0_i32_1 : i32, i32, i32
  }
  func.func @transform_6(%arg0: i32) -> (i32, i32, i32) {
    %c0_i32 = arith.constant 0 : i32
    %c0_i32_0 = arith.constant 0 : i32
    %c0_i32_1 = arith.constant 0 : i32
    %c0_i32_2 = arith.constant 0 : i32
    return %c0_i32, %c0_i32_0, %c0_i32_1 : i32, i32, i32
  }
  func.func @transform_7(%arg0: i32) -> (i32, i32, i32) {
    %c0_i32 = arith.constant 0 : i32
    %c0_i32_0 = arith.constant 0 : i32
    %c0_i32_1 = arith.constant 0 : i32
    %c0_i32_2 = arith.constant 0 : i32
    return %c0_i32, %c0_i32_0, %c0_i32_1 : i32, i32, i32
  }
  func.func @transform_8(%arg0: i32) -> (i32, i32, i32) {
    %c0_i32 = arith.constant 0 : i32
    %c0_i32_0 = arith.constant 0 : i32
    %c0_i32_1 = arith.constant 0 : i32
    %c0_i32_2 = arith.constant 0 : i32
    return %c0_i32, %c0_i32_0, %c0_i32_1 : i32, i32, i32
  }
  func.func @transform_9(%arg0: i32) -> (i32, i32, i32) {
    %c0_i32 = arith.constant 0 : i32
    %c0_i32_0 = arith.constant 0 : i32
    %c0_i32_1 = arith.constant 0 : i32
    %c0_i32_2 = arith.constant 0 : i32
    return %c0_i32, %c0_i32_0, %c0_i32_1 : i32, i32, i32
  }
  func.func @transform_10(%arg0: i32) -> (i32, i32, i32) {
    %c0_i32 = arith.constant 0 : i32
    %c0_i32_0 = arith.constant 0 : i32
    %c0_i32_1 = arith.constant 0 : i32
    %c0_i32_2 = arith.constant 0 : i32
    return %c0_i32, %c0_i32_0, %c0_i32_1 : i32, i32, i32
  }
  func.func @transform_11(%arg0: i32) -> (i32, i32, i32) {
    %c0_i32 = arith.constant 0 : i32
    %c0_i32_0 = arith.constant 0 : i32
    %c0_i32_1 = arith.constant 0 : i32
    %c0_i32_2 = arith.constant 0 : i32
    return %c0_i32, %c0_i32_0, %c0_i32_1 : i32, i32, i32
  }
  func.func @transform_12(%arg0: i32) -> (i32, i32, i32) {
    %c0_i32 = arith.constant 0 : i32
    %c0_i32_0 = arith.constant 0 : i32
    %c0_i32_1 = arith.constant 0 : i32
    %c0_i32_2 = arith.constant 0 : i32
    return %c0_i32, %c0_i32_0, %c0_i32_1 : i32, i32, i32
  }
  func.func @transform_13(%arg0: i32) -> (i32, i32, i32) {
    %c0_i32 = arith.constant 0 : i32
    %c0_i32_0 = arith.constant 0 : i32
    %c0_i32_1 = arith.constant 0 : i32
    %c0_i32_2 = arith.constant 0 : i32
    return %c0_i32, %c0_i32_0, %c0_i32_1 : i32, i32, i32
  }
  func.func @transform_14(%arg0: i32) -> (i32, i32, i32) {
    %c0_i32 = arith.constant 0 : i32
    %c0_i32_0 = arith.constant 0 : i32
    %c0_i32_1 = arith.constant 0 : i32
    %c0_i32_2 = arith.constant 0 : i32
    return %c0_i32, %c0_i32_0, %c0_i32_1 : i32, i32, i32
  }
  func.func @transform_15(%arg0: i32) -> (i32, i32, i32) {
    %c0_i32 = arith.constant 0 : i32
    %c0_i32_0 = arith.constant 0 : i32
    %c0_i32_1 = arith.constant 0 : i32
    %c0_i32_2 = arith.constant 0 : i32
    return %c0_i32, %c0_i32_0, %c0_i32_1 : i32, i32, i32
  }
  func.func @transform_16(%arg0: i32) -> (i32, i32) {
    %c0_i32 = arith.constant 0 : i32
    %c0_i32_0 = arith.constant 0 : i32
    %c0_i32_1 = arith.constant 0 : i32
    return %c0_i32, %c0_i32_0 : i32, i32
  }
  func.func @transform_17(%arg0: i32) -> (i32, i32) {
    %c0_i32 = arith.constant 0 : i32
    %c0_i32_0 = arith.constant 0 : i32
    %c0_i32_1 = arith.constant 0 : i32
    return %c0_i32, %c0_i32_0 : i32, i32
  }
  func.func @transform_18(%arg0: i32) -> (i32, i32) {
    %c0_i32 = arith.constant 0 : i32
    %c0_i32_0 = arith.constant 0 : i32
    %c0_i32_1 = arith.constant 0 : i32
    return %c0_i32, %c0_i32_0 : i32, i32
  }
  func.func @transform_19(%arg0: i32) -> (i32, i32) {
    %c0_i32 = arith.constant 0 : i32
    %c0_i32_0 = arith.constant 0 : i32
    %c0_i32_1 = arith.constant 0 : i32
    return %c0_i32, %c0_i32_0 : i32, i32
  }
}

</mosaic_0001>

<llo_original>
// kernel: tpu_custom_call.1
$region0: #{tpu_custom_call.1}
  #allocation0 [shape = 'u32[]', space=smem, size = 0x4, offset = 0x4, fixed_abs, tag = 'smem constant byte address 0x4 - core index']
  #allocation1 [shape = 'u32[144,128]{1,0:T(1,128)}', space=vmem, size = 0x12000, scoped, tag = 'internal scratch']
  %s0 = inlined_call_operand.vmem [shape: f32[16,32], index: 0, kind: input, shape index: {}]
  %s1 = inlined_call_operand.vmem [shape: f32[8,8,8], index: 1, kind: input, shape index: {}]
  %s2 = inlined_call_operand.vmem [shape: f32[2,1,32], index: 2, kind: input, shape index: {}]
  %s3 = inlined_call_operand.vmem [shape: f32[2,1,32], index: 3, kind: input, shape index: {}]
  %s4 = inlined_call_operand.vmem [shape: f32[2,32,96], index: 4, kind: input, shape index: {}]
  %s5 = inlined_call_operand.vmem [shape: f32[2,1,96], index: 5, kind: input, shape index: {}]
  %s6 = inlined_call_operand.vmem [shape: f32[2,32,32], index: 6, kind: input, shape index: {}]
  %s7 = inlined_call_operand.vmem [shape: f32[2,1,32], index: 7, kind: input, shape index: {}]
  %s8 = inlined_call_operand.vmem [shape: f32[2,1,32], index: 8, kind: input, shape index: {}]
  %s9 = inlined_call_operand.hbm [shape: f32[2,1,32], index: 9, kind: input, shape index: {}]
  %s10 = inlined_call_operand.vmem [shape: f32[2,32,128], index: 10, kind: input, shape index: {}]
  %s11 = inlined_call_operand.hbm [shape: f32[2,1,128], index: 11, kind: input, shape index: {}]
  %s12 = inlined_call_operand.vmem [shape: f32[2,128,32], index: 12, kind: input, shape index: {}]
  %s13 = inlined_call_operand.vmem [shape: f32[2,1,32], index: 13, kind: input, shape index: {}]
  %s14 = inlined_call_operand.vmem [shape: f32[2,32,1], index: 14, kind: input, shape index: {}]
  %s15 = inlined_call_operand.vmem [shape: f32[2,1,1], index: 15, kind: input, shape index: {}]
  %s16 = inlined_call_operand.vmem [shape: f32[1,32], index: 16, kind: input, shape index: {}]
  %s17 = inlined_call_operand.vmem [shape: f32[1,32], index: 17, kind: input, shape index: {}]
  %s18 = inlined_call_operand.vmem [shape: f32[32,256], index: 18, kind: input, shape index: {}]
  %s19 = inlined_call_operand.hbm [shape: f32[16,256], index: 19, kind: output, shape index: {}]
  %s20 = sld [smem:[#allocation0]]
  $region94: #{tpu_custom_call.1} parent=0
    _
  %s22 = ssub.s32 1, %s20
  %s23 = scalar_select 0, %s22, %s20
  $region1: #{tpu_custom_call.1} parent=0
    #allocation2 [shape = 'u8[1024]{0}', space=vmem, size = 0x400, scoped, tag = 'input window, operand 9, single buffered']
    #allocation3 [shape = 's32[1]{0}', space=sflag, size = 0x4, scoped, tag = 'scoped memory for tpu_custom_call.1']
    #allocation4 [shape = 's32[1]{0}', space=sflag, size = 0x4, scoped, tag = 'scoped memory for tpu_custom_call.1']
    #allocation5 [shape = 'u8[1024]{0}', space=vmem, size = 0x400, scoped, tag = 'input window, operand 11, single buffered']
    #allocation6 [shape = 's32[1]{0}', space=sflag, size = 0x4, scoped, tag = 'scoped memory for tpu_custom_call.1']
    #allocation7 [shape = 'u8[16384]{0}', space=vmem, size = 0x4000, scoped, tag = 'output window, operand 0, single buffered']
    %24 = vsyncpa [#allocation3], 0
    %25 = vsyncpa [#allocation6], 0
    %26 = vsyncpa [#allocation4], 0
    // Predicated region
    $region2: #{tpu_custom_call.1} parent=1 // pred_check
      _
    $region3: #{tpu_custom_call.1} parent=1 // pred_check_branch
      %28 = sbr.rel (0) target = $region5
    $region4: #{tpu_custom_call.1} parent=1 // pred_region
      _
    $region5: #{tpu_custom_call.1} parent=1 // pred_fallthru
      _
    // Predicated region
    $region6: #{tpu_custom_call.1} parent=1 // pred_check
      _
    $region7: #{tpu_custom_call.1} parent=1 // pred_check_branch
      %30 = sbr.rel (0) target = $region9
    $region8: #{tpu_custom_call.1} parent=1 // pred_region
      _
    $region9: #{tpu_custom_call.1} parent=1 // pred_fallthru
      _
    // Predicated region
    $region10: #{tpu_custom_call.1} parent=1 // pred_check
      _
    $region11: #{tpu_custom_call.1} parent=1 // pred_check_branch
      %32 = sbr.rel (0) target = $region13
    $region12: #{tpu_custom_call.1} parent=1 // pred_region
      _
    $region13: #{tpu_custom_call.1} parent=1 // pred_fallthru
      _
    // Predicated region
    $region14: #{tpu_custom_call.1} parent=1 // pred_check
      _
    $region15: #{tpu_custom_call.1} parent=1 // pred_check_branch
      %34 = sbr.rel (0) target = $region17
    $region16: #{tpu_custom_call.1} parent=1 // pred_region
      _
    $region17: #{tpu_custom_call.1} parent=1 // pred_fallthru
      _
    // Predicated region
    $region18: #{tpu_custom_call.1} parent=1 // pred_check
      _
    $region19: #{tpu_custom_call.1} parent=1 // pred_check_branch
      %36 = sbr.rel (0) target = $region21
    $region20: #{tpu_custom_call.1} parent=1 // pred_region
      _
    $region21: #{tpu_custom_call.1} parent=1 // pred_fallthru
      _
    // Predicated region
    $region22: #{tpu_custom_call.1} parent=1 // pred_check
      _
    $region23: #{tpu_custom_call.1} parent=1 // pred_check_branch
      %38 = sbr.rel (0) target = $region25
    $region24: #{tpu_custom_call.1} parent=1 // pred_region
      _
    $region25: #{tpu_custom_call.1} parent=1 // pred_fallthru
      _
    // Predicated region
    $region26: #{tpu_custom_call.1} parent=1 // pred_check
      _
    $region27: #{tpu_custom_call.1} parent=1 // pred_check_branch
      %40 = sbr.rel (0) target = $region29
    $region28: #{tpu_custom_call.1} parent=1 // pred_region
      _
    $region29: #{tpu_custom_call.1} parent=1 // pred_fallthru
      _
    // Predicated region
    $region30: #{tpu_custom_call.1} parent=1 // pred_check
      _
    $region31: #{tpu_custom_call.1} parent=1 // pred_check_branch
      %42 = sbr.rel (0) target = $region33
    $region32: #{tpu_custom_call.1} parent=1 // pred_region
      _
    $region33: #{tpu_custom_call.1} parent=1 // pred_fallthru
      _
    // Predicated region
    $region34: #{tpu_custom_call.1} parent=1 // pred_check
      _
    $region35: #{tpu_custom_call.1} parent=1 // pred_check_branch
      %44 = sbr.rel (0) target = $region37
    $region36: #{tpu_custom_call.1} parent=1 // pred_region
      _
    $region37: #{tpu_custom_call.1} parent=1 // pred_fallthru
      _
    // Predicated region
    $region38: #{tpu_custom_call.1} parent=1 // pred_check
      _
    $region39: #{tpu_custom_call.1} parent=1 // pred_check_branch
      %46 = sbr.rel (0) target = $region41
    $region40: #{tpu_custom_call.1} parent=1 // pred_region
      %s48 = ssub.s32 32, 32
      %49 = vsyncadd [#allocation3], %s48
      %s50 = sshll.u32 [#allocation2], 4
      %s51 = int_to_ptr.vmem [resolvable:$true] %s50
      %56 = dma.hbm_to_vmem [thread:$0]  %s9, 32, %s51, [#allocation3], 16, 16, 1
    $region41: #{tpu_custom_call.1} parent=1 // pred_fallthru
      _
    // Predicated region
    $region42: #{tpu_custom_call.1} parent=1 // pred_check
      _
    $region43: #{tpu_custom_call.1} parent=1 // pred_check_branch
      %58 = sbr.rel (0) target = $region45
    $region44: #{tpu_custom_call.1} parent=1 // pred_region
      _
    $region45: #{tpu_custom_call.1} parent=1 // pred_fallthru
      _
    // Predicated region
    $region46: #{tpu_custom_call.1} parent=1 // pred_check
      _
    $region47: #{tpu_custom_call.1} parent=1 // pred_check_branch
      %60 = sbr.rel (0) target = $region49
    $region48: #{tpu_custom_call.1} parent=1 // pred_region
      %s62 = ssub.s32 32, 32
      %63 = vsyncadd [#allocation6], %s62
      %s64 = sshll.u32 [#allocation5], 4
      %s65 = int_to_ptr.vmem [resolvable:$true] %s64
      %70 = dma.hbm_to_vmem [thread:$0]  %s11, 32, %s65, [#allocation6], 16, 16, 1
    $region49: #{tpu_custom_call.1} parent=1 // pred_fallthru
      _
    // Predicated region
    $region50: #{tpu_custom_call.1} parent=1 // pred_check
      _
    $region51: #{tpu_custom_call.1} parent=1 // pred_check_branch
      %72 = sbr.rel (0) target = $region53
    $region52: #{tpu_custom_call.1} parent=1 // pred_region
      _
    $region53: #{tpu_custom_call.1} parent=1 // pred_fallthru
      _
    // Predicated region
    $region54: #{tpu_custom_call.1} parent=1 // pred_check
      _
    $region55: #{tpu_custom_call.1} parent=1 // pred_check_branch
      %74 = sbr.rel (0) target = $region57
    $region56: #{tpu_custom_call.1} parent=1 // pred_region
      _
    $region57: #{tpu_custom_call.1} parent=1 // pred_fallthru
      _
    // Predicated region
    $region58: #{tpu_custom_call.1} parent=1 // pred_check
      _
    $region59: #{tpu_custom_call.1} parent=1 // pred_check_branch
      %76 = sbr.rel (0) target = $region61
    $region60: #{tpu_custom_call.1} parent=1 // pred_region
      _
    $region61: #{tpu_custom_call.1} parent=1 // pred_fallthru
      _
    // Predicated region
    $region62: #{tpu_custom_call.1} parent=1 // pred_check
      _
    $region63: #{tpu_custom_call.1} parent=1 // pred_check_branch
      %78 = sbr.rel (0) target = $region65
    $region64: #{tpu_custom_call.1} parent=1 // pred_region
      _
    $region65: #{tpu_custom_call.1} parent=1 // pred_fallthru
      _
    // Predicated region
    $region66: #{tpu_custom_call.1} parent=1 // pred_check
      _
    $region67: #{tpu_custom_call.1} parent=1 // pred_check_branch
      %80 = sbr.rel (0) target = $region69
    $region68: #{tpu_custom_call.1} parent=1 // pred_region
      _
    $region69: #{tpu_custom_call.1} parent=1 // pred_fallthru
      _
    // Predicated region
    $region70: #{tpu_custom_call.1} parent=1 // pred_check
      _
    $region71: #{tpu_custom_call.1} parent=1 // pred_check_branch
      %82 = sbr.rel (0) target = $region73
    $region72: #{tpu_custom_call.1} parent=1 // pred_region
      _
    $region73: #{tpu_custom_call.1} parent=1 // pred_fallthru
      _
    // Predicated region
    $region74: #{tpu_custom_call.1} parent=1 // pred_check
      _
    $region75: #{tpu_custom_call.1} parent=1 // pred_check_branch
      %84 = sbr.rel (0) target = $region77
    $region76: #{tpu_custom_call.1} parent=1 // pred_region
      _
    $region77: #{tpu_custom_call.1} parent=1 // pred_fallthru
      _
    // Predicated region
    $region78: #{tpu_custom_call.1} parent=1 // pred_check
      _
    $region79: #{tpu_custom_call.1} parent=1 // pred_check_branch
      %86 = sbr.rel (0) target = $region81
    $region80: #{tpu_custom_call.1} parent=1 // pred_region
      %87 = dma.done [#allocation3], 32
    $region81: #{tpu_custom_call.1} parent=1 // pred_fallthru
      _
    // Predicated region
    $region82: #{tpu_custom_call.1} parent=1 // pred_check
      _
    $region83: #{tpu_custom_call.1} parent=1 // pred_check_branch
      %89 = sbr.rel (0) target = $region85
    $region84: #{tpu_custom_call.1} parent=1 // pred_region
      %90 = dma.done [#allocation6], 32
    $region85: #{tpu_custom_call.1} parent=1 // pred_fallthru
      _
    %v91 = vld [vmem:[%s0] sm:$0xff]
    %v92 = vld [vmem:[%s0 + $0x8] sm:$0xff]
    %v93 = vld [vmem:[%s1] sm:$0xff]
    %v94 = vld [vmem:[%s1 + $0x8] sm:$0xff]
    %v95 = vld [vmem:[%s1 + $0x10] sm:$0xff]
    %v96 = vld [vmem:[%s1 + $0x18] sm:$0xff]
    %v97 = vld [vmem:[%s1 + $0x20] sm:$0xff]
    %v98 = vld [vmem:[%s1 + $0x28] sm:$0xff]
    %v99 = vld [vmem:[%s1 + $0x30] sm:$0xff]
    %v100 = vld [vmem:[%s1 + $0x38] sm:$0xff]
    %v101 = vld [vmem:[%s2] sm:$0x1]
    %v102 = vld [vmem:[%s3] sm:$0x1]
    %v103 = vld [vmem:[%s4] sm:$0xff]
    %v104 = vld [vmem:[%s4 + $0x8] sm:$0xff]
    %v105 = vld [vmem:[%s4 + $0x10] sm:$0xff]
    %v106 = vld [vmem:[%s4 + $0x18] sm:$0xff]
    %v107 = vld [vmem:[%s5] sm:$0x1]
    %v108 = vld [vmem:[%s6] sm:$0xff]
    %v109 = vld [vmem:[%s6 + $0x8] sm:$0xff]
    %v110 = vld [vmem:[%s6 + $0x10] sm:$0xff]
    %v111 = vld [vmem:[%s6 + $0x18] sm:$0xff]
    %v112 = vld [vmem:[%s7] sm:$0x1]
    %v113 = vld [vmem:[%s8] sm:$0x1]
    %v114 = vld [vmem:[#allocation2] sm:$0x1]
    %v115 = vld [vmem:[%s10] sm:$0xff]
    %v116 = vld [vmem:[%s10 + $0x8] sm:$0xff]
    %v117 = vld [vmem:[%s10 + $0x10] sm:$0xff]
    %v118 = vld [vmem:[%s10 + $0x18] sm:$0xff]
    %v119 = vld [vmem:[#allocation5] sm:$0x1]
    %v120 = vld [vmem:[%s12] sm:$0xff]
    %v121 = vld [vmem:[%s12 + $0x8] sm:$0xff]
    %v122 = vld [vmem:[%s12 + $0x10] sm:$0xff]
    %v123 = vld [vmem:[%s12 + $0x18] sm:$0xff]
    %v124 = vld [vmem:[%s12 + $0x20] sm:$0xff]
    %v125 = vld [vmem:[%s12 + $0x28] sm:$0xff]
    %v126 = vld [vmem:[%s12 + $0x30] sm:$0xff]
    %v127 = vld [vmem:[%s12 + $0x38] sm:$0xff]
    %v128 = vld [vmem:[%s12 + $0x40] sm:$0xff]
    %v129 = vld [vmem:[%s12 + $0x48] sm:$0xff]
    %v130 = vld [vmem:[%s12 + $0x50] sm:$0xff]
    %v131 = vld [vmem:[%s12 + $0x58] sm:$0xff]
    %v132 = vld [vmem:[%s12 + $0x60] sm:$0xff]
    %v133 = vld [vmem:[%s12 + $0x68] sm:$0xff]
    %v134 = vld [vmem:[%s12 + $0x70] sm:$0xff]
    %v135 = vld [vmem:[%s12 + $0x78] sm:$0xff]
    %v136 = vld [vmem:[%s13] sm:$0x1]
    %v137 = vld [vmem:[%s14] sm:$0xff]
    %v138 = vld [vmem:[%s14 + $0x8] sm:$0xff]
    %v139 = vld [vmem:[%s14 + $0x10] sm:$0xff]
    %v140 = vld [vmem:[%s14 + $0x18] sm:$0xff]
    %v141 = vld [vmem:[%s15] sm:$0x1]
    %v143 = vlaneseq
    %v144 = vshrl.u32 %v143, 7
    %v145 = vsub.s32 0, %v144
    %v146 = vrot.slane %v141, %v145
    %vm148 = vcmask 261120
    %v150 = vsel %vm148, %v91, 0
    %v153 = vsel %vm148, %v92, 0
    %155 = vmatprep.subr.mxu0 0.0
    %156 = vmatpush1.msra.mxu0 0.0
    %157 = vmatprep.subr.mxu0 0.0
    %158 = vmatpush1.msra.mxu0 0.0
    %159 = vmatprep.subr.mxu0 0.0
    %160 = vmatpush1.msra.mxu0 0.0
    %161 = vmatprep.subr.mxu0 0.0
    %162 = vmatpush1.msra.mxu0 0.0
    %163 = vmatprep.subr.mxu0 0.0
    %164 = vmatpush1.msra.mxu0 0.0
    %165 = vmatprep.subr.mxu0 0.0
    %166 = vmatpush1.msra.mxu0 0.0
    %167 = vmatprep.subr.mxu0 0.0
    %168 = vmatpush1.msra.mxu0 0.0
    %169 = vmatprep.subr.mxu0 0.0
    %170 = vmatpush1.msra.mxu0 0.0
    %171 = vmatprep.subr.mxu0 0.0
    %172 = vmatpush1.msra.mxu0 0.0
    %173 = vmatprep.subr.mxu0 0.0
    %174 = vmatpush1.msra.mxu0 0.0
    %175 = vmatprep.subr.mxu0 0.0
    %176 = vmatpush1.msra.mxu0 0.0
    %177 = vmatprep.subr.mxu0 0.0
    %178 = vmatpush1.msra.mxu0 0.0
    %179 = vmatprep.subr.mxu0 0.0
    %180 = vmatpush1.msra.mxu0 %v140
    %181 = vmatprep.subr.mxu0 0.0
    %182 = vmatpush1.msra.mxu0 %v139
    %183 = vmatprep.subr.mxu0 0.0
    %184 = vmatpush1.msra.mxu0 %v138
    %185 = vmatprep.subr.mxu0 0.0
    %186 = vmatpush1.msra.mxu0 %v137
    %187 = vmatprep.subr.mxu0 0.0
    %188 = vmatpush2.msra.mxu0 0.0
    %189 = vmatprep.subr.mxu0 0.0
    %190 = vmatpush2.msra.mxu0 0.0
    %191 = vmatprep.subr.mxu0 0.0
    %192 = vmatpush2.msra.mxu0 0.0
    %193 = vmatprep.subr.mxu0 0.0
    %194 = vmatpush2.msra.mxu0 0.0
    %195 = vmatprep.subr.mxu0 0.0
    %196 = vmatpush2.msra.mxu0 0.0
    %197 = vmatprep.subr.mxu0 0.0
    %198 = vmatpush2.msra.mxu0 0.0
    %199 = vmatprep.subr.mxu0 0.0
    %200 = vmatpush2.msra.mxu0 0.0
    %201 = vmatprep.subr.mxu0 0.0
    %202 = vmatpush2.msra.mxu0 0.0
    %203 = vmatprep.subr.mxu0 0.0
    %204 = vmatpush2.msra.mxu0 0.0
    %205 = vmatprep.subr.mxu0 0.0
    %206 = vmatpush2.msra.mxu0 0.0
    %207 = vmatprep.subr.mxu0 0.0
    %208 = vmatpush2.msra.mxu0 0.0
    %209 = vmatprep.subr.mxu0 0.0
    %210 = vmatpush2.msra.mxu0 0.0
    %211 = vmatprep.subr.mxu0 0.0
    %212 = vmatpush2.msra.mxu0 0.0
    %213 = vmatprep.subr.mxu0 0.0
    %214 = vmatpush2.msra.mxu0 0.0
    %215 = vmatprep.subr.mxu0 0.0
    %216 = vmatpush2.msra.mxu0 0.0
    %217 = vmatprep.subr.mxu0 0.0
    %218 = vmatpush2.msra.mxu0 0.0
    %219 = vmatprep.mubr.f32.mxu0 0.0
    %220 = vmatmul.mubr.f32.gmra.mxu0 %v150
    %v221 = vpop.f32.mrf.mxu0
    %v222 = vadd.f32 %v146, %v221
    %v223 = vpop.f32.mrf.mxu0
    %224 = vmatprep.mubr.f32.mxu0 0.0
    %225 = vmatmul.mubr.f32.gmra.mxu0 %v153
    %v226 = vpop.f32.mrf.mxu0
    %v227 = vadd.f32 %v146, %v226
    %v228 = vpop.f32.mrf.mxu0
    %229 = vdwg.mxu0
    %v230 = vand.u32 2147483647, %v222
    %vm231 = vcmp.le.f32.partialorder %v230, 0.7853982
    %vm232 = vcmp.lt.s32.totalorder %v222, 0
    %v233 = vand.u32 %v222, 2139095040
    %v234 = vshrl.u32 %v233, 23
    %v235 = vsub.s32 %v234, 127
    %v236 = vand.u32 2147483647, %v222
    %v237 = vand.u32 %v236, 8388607
    %v238 = vor.u32 %v237, 8388608
    %v239 = vsub.s32 0, %v238
    %v240 = vadd.s32 %v235, 1
    %vm241 = vcmp.gt.s32.totalorder %v240, 0
    %v242 = vsel %vm241, %v240, 0
    %v243 = vshrl.u32 %v242, 5
    %v244 = vand.u32 %v242, 31
    %v245 = vsub.s32 32, %v244
    %v246 = vshrl.u32 683565275, %v245
    %v247 = vshll.u32 683565275, %v244
    %v248 = vshrl.u32 2475754826, %v245
    %v249 = vor.u32 %v247, %v248
    %v250 = vshll.u32 2475754826, %v244
    %v251 = vshrl.u32 2131351028, %v245
    %v252 = vor.u32 %v250, %v251
    %v253 = vshll.u32 2131351028, %v244
    %v254 = vshrl.u32 2102212464, %v245
    %v255 = vor.u32 %v253, %v254
    %v256 = vshll.u32 2102212464, %v244
    %v257 = vshrl.u32 920167782, %v245
    %v258 = vor.u32 %v256, %v257
    %v259 = vshll.u32 920167782, %v244
    %v260 = vshrl.u32 1326507024, %v245
    %v261 = vor.u32 %v259, %v260
    %vm262 = vcmp.lt.s32.totalorder %v243, 1
    %vm263 = vcmp.lt.s32.totalorder %v243, 2
    %vm264 = vcmp.lt.s32.totalorder %v243, 3
    %vm265 = vcmp.lt.s32.totalorder %v243, 4
    %v266 = vsel %vm262, %v246, %v249
    %v267 = vsel %vm265, %v255, 2102212464
    %v268 = vsel %vm264, %v252, %v267
    %v269 = vsel %vm263, %v266, %v268
    %v270 = vsel %vm262, %v249, %v252
    %v271 = vsel %vm265, %v258, 920167782
    %v272 = vsel %vm264, %v255, %v271
    %v273 = vsel %vm263, %v270, %v272
    %v274 = vsel %vm262, %v252, %v255
    %v275 = vsel %vm265, %v261, 1326507024
    %v276 = vsel %vm264, %v258, %v275
    %v277 = vsel %vm263, %v274, %v276
    %v278 = vshll.u32 %v238, 8
    %v279 = vmul.u32.u64.compose %v278, %v277
    %v280 = vextract.low.u32 %v279
    %v281 = vextract.high.u32 %v279
    %v282 = vmul.u32.u64.compose %v278, %v273
    %v283 = vextract.low.u32 %v282
    %v284 = vextract.high.u32 %v282
    %v285 = vmul.u32 %v278, %v269
    %v286 = vadd.s32 %v281, %v283
    %vm287 = vc.u32 %v281, %v283
    %v288 = vadd.s32 %v284, 1
    %v289 = vsel %vm287, %v288, %v284
    %v290 = vadd.s32 %v285, %v289
    %v291 = vadd.s32 %v290, 536870912
    %v292 = vshrl.u32 %v291, 30
    %v293 = vshll.u32 %v292, 30
    %v294 = vsub.s32 %v290, %v293
    %vm295 = vcmp.lt.s32.totalorder %v294, 0
    %v296 = vsub.s32 0, %v294
    %v297 = vsel %vm295, %v296, %v294
    %v298 = vclz %v297
    %v299 = vsub.s32 %v298, 2
    %vm300 = vcmp.gt.s32.totalorder 0, %v299
    %v301 = vsel %vm300, 0, %v299
    %v302 = vsub.s32 32, %v301
    %v303 = vshll.u32 %v294, %v301
    %v304 = vshrl.u32 %v286, %v302
    %v305 = vor.u32 %v303, %v304
    %v306 = vsub.s32 4294967266, %v301
    %v307 = vadd.s32 %v306, 127
    %v308 = vshll.u32 %v307, 23
    %v309 = vor.u32 4788187, %v308
    %v310 = vand.u32 2147483647, %v309
    %v312 = vcvt.s32.f32 %v305
    %v313 = vmul.f32 %v312, %v310
    %v314 = vxor.u32 %v313, 2147483648
    %v315 = vsel %vm232, %v314, %v313
    %v316 = vsub.s32 4, %v292
    %v317 = vsel %vm232, %v316, %v292
    %v318 = vsel %vm231, %v222, %v315
    %v319 = vsel %vm231, 0, %v317
    %v320 = vcosq.f32.pop %v318
    %v321 = vsinq.f32.pop %v318
    %vm322 = vweird.f32 %v222
    %v323 = vand.u32 %v319, 3
    %vm324 = vcmp.lt.s32.totalorder %v323, 2
    %vm325 = vcmp.eq.s32.totalorder %v323, 0
    %v326 = vxor.u32 %v321, 2147483648
    %v327 = vsel %vm325, %v320, %v326
    %vm328 = vcmp.eq.s32.totalorder %v323, 2
    %v329 = vxor.u32 %v320, 2147483648
    %v330 = vsel %vm328, %v329, %v321
    %v331 = vsel %vm324, %v327, %v330
    %v332 = vsel %vm322, nan, %v331
    %v333 = vand.u32 2147483647, %v227
    %vm334 = vcmp.le.f32.partialorder %v333, 0.7853982
    %vm335 = vcmp.lt.s32.totalorder %v227, 0
    %v336 = vand.u32 %v227, 2139095040
    %v337 = vshrl.u32 %v336, 23
    %v338 = vsub.s32 %v337, 127
    %v339 = vand.u32 2147483647, %v227
    %v340 = vand.u32 %v339, 8388607
    %v341 = vor.u32 %v340, 8388608
    %v342 = vsub.s32 0, %v341
    %v343 = vadd.s32 %v338, 1
    %vm344 = vcmp.gt.s32.totalorder %v343, 0
    %v345 = vsel %vm344, %v343, 0
    %v346 = vshrl.u32 %v345, 5
    %v347 = vand.u32 %v345, 31
    %v348 = vsub.s32 32, %v347
    %v349 = vshrl.u32 683565275, %v348
    %v350 = vshll.u32 683565275, %v347
    %v351 = vshrl.u32 2475754826, %v348
    %v352 = vor.u32 %v350, %v351
    %v353 = vshll.u32 2475754826, %v347
    %v354 = vshrl.u32 2131351028, %v348
    %v355 = vor.u32 %v353, %v354
    %v356 = vshll.u32 2131351028, %v347
    %v357 = vshrl.u32 2102212464, %v348
    %v358 = vor.u32 %v356, %v357
    %v359 = vshll.u32 2102212464, %v347
    %v360 = vshrl.u32 920167782, %v348
    %v361 = vor.u32 %v359, %v360
    %v362 = vshll.u32 920167782, %v347
    %v363 = vshrl.u32 1326507024, %v348
    %v364 = vor.u32 %v362, %v363
    %vm365 = vcmp.lt.s32.totalorder %v346, 1
    %vm366 = vcmp.lt.s32.totalorder %v346, 2
    %vm367 = vcmp.lt.s32.totalorder %v346, 3
    %vm368 = vcmp.lt.s32.totalorder %v346, 4
    %v369 = vsel %vm365, %v349, %v352
    %v370 = vsel %vm368, %v358, 2102212464
    %v371 = vsel %vm367, %v355, %v370
    %v372 = vsel %vm366, %v369, %v371
    %v373 = vsel %vm365, %v352, %v355
    %v374 = vsel %vm368, %v361, 920167782
    %v375 = vsel %vm367, %v358, %v374
    %v376 = vsel %vm366, %v373, %v375
    %v377 = vsel %vm365, %v355, %v358
    %v378 = vsel %vm368, %v364, 1326507024
    %v379 = vsel %vm367, %v361, %v378
    %v380 = vsel %vm366, %v377, %v379
    %v381 = vshll.u32 %v341, 8
    %v382 = vmul.u32.u64.compose %v381, %v380
    %v383 = vextract.low.u32 %v382
    %v384 = vextract.high.u32 %v382
    %v385 = vmul.u32.u64.compose %v381, %v376
    %v386 = vextract.low.u32 %v385
    %v387 = vextract.high.u32 %v385
    %v388 = vmul.u32 %v381, %v372
    %v389 = vadd.s32 %v384, %v386
    %vm390 = vc.u32 %v384, %v386
    %v391 = vadd.s32 %v387, 1
    %v392 = vsel %vm390, %v391, %v387
    %v393 = vadd.s32 %v388, %v392
    %v394 = vadd.s32 %v393, 536870912
    %v395 = vshrl.u32 %v394, 30
    %v396 = vshll.u32 %v395, 30
    %v397 = vsub.s32 %v393, %v396
    %vm398 = vcmp.lt.s32.totalorder %v397, 0
    %v399 = vsub.s32 0, %v397
    %v400 = vsel %vm398, %v399, %v397
    %v401 = vclz %v400
    %v402 = vsub.s32 %v401, 2
    %vm403 = vcmp.gt.s32.totalorder 0, %v402
    %v404 = vsel %vm403, 0, %v402
    %v405 = vsub.s32 32, %v404
    %v406 = vshll.u32 %v397, %v404
    %v407 = vshrl.u32 %v389, %v405
    %v408 = vor.u32 %v406, %v407
    %v409 = vsub.s32 4294967266, %v404
    %v410 = vadd.s32 %v409, 127
    %v411 = vshll.u32 %v410, 23
    %v412 = vor.u32 4788187, %v411
    %v413 = vand.u32 2147483647, %v412
    %v415 = vcvt.s32.f32 %v408
    %v416 = vmul.f32 %v415, %v413
    %v417 = vxor.u32 %v416, 2147483648
    %v418 = vsel %vm335, %v417, %v416
    %v419 = vsub.s32 4, %v395
    %v420 = vsel %vm335, %v419, %v395
    %v421 = vsel %vm334, %v227, %v418
    %v422 = vsel %vm334, 0, %v420
    %v423 = vcosq.f32.pop %v421
    %v424 = vsinq.f32.pop %v421
    %vm425 = vweird.f32 %v227
    %v426 = vand.u32 %v422, 3
    %vm427 = vcmp.lt.s32.totalorder %v426, 2
    %vm428 = vcmp.eq.s32.totalorder %v426, 0
    %v429 = vxor.u32 %v424, 2147483648
    %v430 = vsel %vm428, %v423, %v429
    %vm431 = vcmp.eq.s32.totalorder %v426, 2
    %v432 = vxor.u32 %v423, 2147483648
    %v433 = vsel %vm431, %v432, %v424
    %v434 = vsel %vm427, %v430, %v433
    %v435 = vsel %vm425, nan, %v434
    %v436 = vsel %vm148, %v91, 0.0
    %437 = vadd.xlane.f32.xlu0 %v436
    %v438 = vpop.xlane.xlu0 %437
    %v439 = vsel %vm148, %v92, 0.0
    %440 = vadd.xlane.f32.xlu0 %v439
    %v441 = vpop.xlane.xlu0 %440
    %v442 = vrcp.pop 32.0
    %v443 = vmul.f32 %v438, %v442
    %v444 = vmul.f32 %v441, %v442
    %v445 = vsub.f32 %v91, %v443
    %v446 = vsub.f32 %v92, %v444
    %v447 = vmul.f32 %v445, %v445
    %v448 = vmul.f32 %v446, %v446
    %v449 = vsel %vm148, %v447, 0.0
    %450 = vadd.xlane.f32.xlu0 %v449
    %v451 = vpop.xlane.xlu0 %450
    %v452 = vsel %vm148, %v448, 0.0
    %453 = vadd.xlane.f32.xlu0 %v452
    %v454 = vpop.xlane.xlu0 %453
    %v455 = vmul.f32 %v451, %v442
    %v456 = vmul.f32 %v454, %v442
    %v457 = vadd.f32 %v455, 1e-05
    %v458 = vadd.f32 %v456, 1e-05
    %v459 = vrsqrt.pop %v457
    %v460 = vrsqrt.pop %v458
    %v461 = vmul.f32 %v445, %v459
    %v462 = vmul.f32 %v446, %v460
    %v464 = vlaneseq
    %v465 = vshrl.u32 %v464, 7
    %v466 = vsub.s32 0, %v465
    %v467 = vrot.slane %v101, %v466
    %v469 = vmul.f32 %v461, %v467
    %v470 = vmul.f32 %v462, %v467
    %v472 = vlaneseq
    %v473 = vshrl.u32 %v472, 7
    %v474 = vsub.s32 0, %v473
    %v475 = vrot.slane %v102, %v474
    %v477 = vadd.f32 %v469, %v475
    %v478 = vadd.f32 %v470, %v475
    %v480 = vlaneseq
    %v481 = vshrl.u32 %v480, 7
    %v482 = vsub.s32 0, %v481
    %v483 = vrot.slane %v107, %v482
    %v486 = vsel %vm148, %v477, 0
    %v489 = vsel %vm148, %v478, 0
    %491 = vmatprep.subr.mxu0 0.0
    %492 = vmatpush1.msra.mxu0 0.0
    %493 = vmatprep.subr.mxu0 0.0
    %494 = vmatpush1.msra.mxu0 0.0
    %495 = vmatprep.subr.mxu0 0.0
    %496 = vmatpush1.msra.mxu0 0.0
    %497 = vmatprep.subr.mxu0 0.0
    %498 = vmatpush1.msra.mxu0 0.0
    %499 = vmatprep.subr.mxu0 0.0
    %500 = vmatpush1.msra.mxu0 0.0
    %501 = vmatprep.subr.mxu0 0.0
    %502 = vmatpush1.msra.mxu0 0.0
    %503 = vmatprep.subr.mxu0 0.0
    %504 = vmatpush1.msra.mxu0 0.0
    %505 = vmatprep.subr.mxu0 0.0
    %506 = vmatpush1.msra.mxu0 0.0
    %507 = vmatprep.subr.mxu0 0.0
    %508 = vmatpush1.msra.mxu0 0.0
    %509 = vmatprep.subr.mxu0 0.0
    %510 = vmatpush1.msra.mxu0 0.0
    %511 = vmatprep.subr.mxu0 0.0
    %512 = vmatpush1.msra.mxu0 0.0
    %513 = vmatprep.subr.mxu0 0.0
    %514 = vmatpush1.msra.mxu0 0.0
    %515 = vmatprep.subr.mxu0 0.0
    %516 = vmatpush1.msra.mxu0 %v106
    %517 = vmatprep.subr.mxu0 0.0
    %518 = vmatpush1.msra.mxu0 %v105
    %519 = vmatprep.subr.mxu0 0.0
    %520 = vmatpush1.msra.mxu0 %v104
    %521 = vmatprep.subr.mxu0 0.0
    %522 = vmatpush1.msra.mxu0 %v103
    %523 = vmatprep.subr.mxu0 0.0
    %524 = vmatpush2.msra.mxu0 0.0
    %525 = vmatprep.subr.mxu0 0.0
    %526 = vmatpush2.msra.mxu0 0.0
    %527 = vmatprep.subr.mxu0 0.0
    %528 = vmatpush2.msra.mxu0 0.0
    %529 = vmatprep.subr.mxu0 0.0
    %530 = vmatpush2.msra.mxu0 0.0
    %531 = vmatprep.subr.mxu0 0.0
    %532 = vmatpush2.msra.mxu0 0.0
    %533 = vmatprep.subr.mxu0 0.0
    %534 = vmatpush2.msra.mxu0 0.0
    %535 = vmatprep.subr.mxu0 0.0
    %536 = vmatpush2.msra.mxu0 0.0
    %537 = vmatprep.subr.mxu0 0.0
    %538 = vmatpush2.msra.mxu0 0.0
    %539 = vmatprep.subr.mxu0 0.0
    %540 = vmatpush2.msra.mxu0 0.0
    %541 = vmatprep.subr.mxu0 0.0
    %542 = vmatpush2.msra.mxu0 0.0
    %543 = vmatprep.subr.mxu0 0.0
    %544 = vmatpush2.msra.mxu0 0.0
    %545 = vmatprep.subr.mxu0 0.0
    %546 = vmatpush2.msra.mxu0 0.0
    %547 = vmatprep.subr.mxu0 0.0
    %548 = vmatpush2.msra.mxu0 0.0
    %549 = vmatprep.subr.mxu0 0.0
    %550 = vmatpush2.msra.mxu0 0.0
    %551 = vmatprep.subr.mxu0 0.0
    %552 = vmatpush2.msra.mxu0 0.0
    %553 = vmatprep.subr.mxu0 0.0
    %554 = vmatpush2.msra.mxu0 0.0
    %555 = vmatprep.mubr.f32.mxu0 0.0
    %556 = vmatmul.mubr.f32.gmra.mxu0 %v486
    %v557 = vpop.f32.mrf.mxu0
    %v558 = vadd.f32 %v483, %v557
    %v559 = vpop.f32.mrf.mxu0
    %560 = vmatprep.mubr.f32.mxu0 0.0
    %561 = vmatmul.mubr.f32.gmra.mxu0 %v489
    %v562 = vpop.f32.mrf.mxu0
    %v563 = vadd.f32 %v483, %v562
    %v564 = vpop.f32.mrf.mxu0
    %565 = vdwg.mxu0
    %568 = vrot.lane.b32.xlu0 %v558, 120
    %v569 = vpop.permute.xlu0 %568
    %570 = vrot.lane.b32.xlu0 %v563, 120
    %v571 = vpop.permute.xlu0 %570
    %572 = vrot.lane.b32.xlu0 %v558, 112
    %v573 = vpop.permute.xlu0 %572
    %574 = vrot.lane.b32.xlu0 %v563, 112
    %v575 = vpop.permute.xlu0 %574
    %576 = vrot.lane.b32.xlu0 %v558, 104
    %v577 = vpop.permute.xlu0 %576
    %578 = vrot.lane.b32.xlu0 %v563, 104
    %v579 = vpop.permute.xlu0 %578
    %580 = vrot.lane.b32.xlu0 %v558, 96
    %v581 = vpop.permute.xlu0 %580
    %vm582 = vcmask 64512
    %v583 = vsel %vm582, %v558, 0
    %v585 = vsel %vm582, %v581, 0
    %587 = vmatprep.subr.mxu0 0.0
    %588 = vmatpush1.xpose.msra.mxu0 0.0
    %589 = vmatprep.subr.mxu0 0.0
    %590 = vmatpush1.xpose.msra.mxu0 0.0
    %591 = vmatprep.subr.mxu0 0.0
    %592 = vmatpush1.xpose.msra.mxu0 0.0
    %593 = vmatprep.subr.mxu0 0.0
    %594 = vmatpush1.xpose.msra.mxu0 0.0
    %595 = vmatprep.subr.mxu0 0.0
    %596 = vmatpush1.xpose.msra.mxu0 0.0
    %597 = vmatprep.subr.mxu0 0.0
    %598 = vmatpush1.xpose.msra.mxu0 0.0
    %599 = vmatprep.subr.mxu0 0.0
    %600 = vmatpush1.xpose.msra.mxu0 0.0
    %601 = vmatprep.subr.mxu0 0.0
    %602 = vmatpush1.xpose.msra.mxu0 0.0
    %603 = vmatprep.subr.mxu0 0.0
    %604 = vmatpush1.xpose.msra.mxu0 0.0
    %605 = vmatprep.subr.mxu0 0.0
    %606 = vmatpush1.xpose.msra.mxu0 0.0
    %607 = vmatprep.subr.mxu0 0.0
    %608 = vmatpush1.xpose.msra.mxu0 0.0
    %609 = vmatprep.subr.mxu0 0.0
    %610 = vmatpush1.xpose.msra.mxu0 0.0
    %611 = vmatprep.subr.mxu0 0.0
    %612 = vmatpush1.xpose.msra.mxu0 0.0
    %613 = vmatprep.subr.mxu0 0.0
    %614 = vmatpush1.xpose.msra.mxu0 0.0
    %615 = vmatprep.subr.mxu0 0.0
    %616 = vmatpush1.xpose.msra.mxu0 0.0
    %617 = vmatprep.subr.mxu0 0.0
    %618 = vmatpush1.xpose.msra.mxu0 %v585
    %619 = vmatprep.subr.mxu0 0.0
    %620 = vmatpush2.xpose.msra.mxu0 0.0
    %621 = vmatprep.subr.mxu0 0.0
    %622 = vmatpush2.xpose.msra.mxu0 0.0
    %623 = vmatprep.subr.mxu0 0.0
    %624 = vmatpush2.xpose.msra.mxu0 0.0
    %625 = vmatprep.subr.mxu0 0.0
    %626 = vmatpush2.xpose.msra.mxu0 0.0
    %627 = vmatprep.subr.mxu0 0.0
    %628 = vmatpush2.xpose.msra.mxu0 0.0
    %629 = vmatprep.subr.mxu0 0.0
    %630 = vmatpush2.xpose.msra.mxu0 0.0
    %631 = vmatprep.subr.mxu0 0.0
    %632 = vmatpush2.xpose.msra.mxu0 0.0
    %633 = vmatprep.subr.mxu0 0.0
    %634 = vmatpush2.xpose.msra.mxu0 0.0
    %635 = vmatprep.subr.mxu0 0.0
    %636 = vmatpush2.xpose.msra.mxu0 0.0
    %637 = vmatprep.subr.mxu0 0.0
    %638 = vmatpush2.xpose.msra.mxu0 0.0
    %639 = vmatprep.subr.mxu0 0.0
    %640 = vmatpush2.xpose.msra.mxu0 0.0
    %641 = vmatprep.subr.mxu0 0.0
    %642 = vmatpush2.xpose.msra.mxu0 0.0
    %643 = vmatprep.subr.mxu0 0.0
    %644 = vmatpush2.xpose.msra.mxu0 0.0
    %645 = vmatprep.subr.mxu0 0.0
    %646 = vmatpush2.xpose.msra.mxu0 0.0
    %647 = vmatprep.subr.mxu0 0.0
    %648 = vmatpush2.xpose.msra.mxu0 0.0
    %649 = vmatprep.subr.mxu0 0.0
    %650 = vmatpush2.xpose.msra.mxu0 0.0
    %651 = vmatprep.mubr.f32.mxu0 0.0
    %652 = vmatmul.mubr.f32.gmra.mxu0 %v583
    %v653 = vpop.f32.mrf.mxu0
    %v654 = vadd.f32 0.0, %v653
    %v655 = vpop.f32.mrf.mxu0
    %656 = vdwg.mxu0
    %657 = vrot.lane.b32.xlu0 %v563, 96
    %v658 = vpop.permute.xlu0 %657
    %v659 = vsel %vm582, %v563, 0
    %v661 = vsel %vm582, %v658, 0
    %663 = vmatprep.subr.mxu0 0.0
    %664 = vmatpush1.xpose.msra.mxu0 0.0
    %665 = vmatprep.subr.mxu0 0.0
    %666 = vmatpush1.xpose.msra.mxu0 0.0
    %667 = vmatprep.subr.mxu0 0.0
    %668 = vmatpush1.xpose.msra.mxu0 0.0
    %669 = vmatprep.subr.mxu0 0.0
    %670 = vmatpush1.xpose.msra.mxu0 0.0
    %671 = vmatprep.subr.mxu0 0.0
    %672 = vmatpush1.xpose.msra.mxu0 0.0
    %673 = vmatprep.subr.mxu0 0.0
    %674 = vmatpush1.xpose.msra.mxu0 0.0
    %675 = vmatprep.subr.mxu0 0.0
    %676 = vmatpush1.xpose.msra.mxu0 0.0
    %677 = vmatprep.subr.mxu0 0.0
    %678 = vmatpush1.xpose.msra.mxu0 0.0
    %679 = vmatprep.subr.mxu0 0.0
    %680 = vmatpush1.xpose.msra.mxu0 0.0
    %681 = vmatprep.subr.mxu0 0.0
    %682 = vmatpush1.xpose.msra.mxu0 0.0
    %683 = vmatprep.subr.mxu0 0.0
    %684 = vmatpush1.xpose.msra.mxu0 0.0
    %685 = vmatprep.subr.mxu0 0.0
    %686 = vmatpush1.xpose.msra.mxu0 0.0
    %687 = vmatprep.subr.mxu0 0.0
    %688 = vmatpush1.xpose.msra.mxu0 0.0
    %689 = vmatprep.subr.mxu0 0.0
    %690 = vmatpush1.xpose.msra.mxu0 0.0
    %691 = vmatprep.subr.mxu0 0.0
    %692 = vmatpush1.xpose.msra.mxu0 0.0
    %693 = vmatprep.subr.mxu0 0.0
    %694 = vmatpush1.xpose.msra.mxu0 %v661
    %695 = vmatprep.subr.mxu0 0.0
    %696 = vmatpush2.xpose.msra.mxu0 0.0
    %697 = vmatprep.subr.mxu0 0.0
    %698 = vmatpush2.xpose.msra.mxu0 0.0
    %699 = vmatprep.subr.mxu0 0.0
    %700 = vmatpush2.xpose.msra.mxu0 0.0
    %701 = vmatprep.subr.mxu0 0.0
    %702 = vmatpush2.xpose.msra.mxu0 0.0
    %703 = vmatprep.subr.mxu0 0.0
    %704 = vmatpush2.xpose.msra.mxu0 0.0
    %705 = vmatprep.subr.mxu0 0.0
    %706 = vmatpush2.xpose.msra.mxu0 0.0
    %707 = vmatprep.subr.mxu0 0.0
    %708 = vmatpush2.xpose.msra.mxu0 0.0
    %709 = vmatprep.subr.mxu0 0.0
    %710 = vmatpush2.xpose.msra.mxu0 0.0
    %711 = vmatprep.subr.mxu0 0.0
    %712 = vmatpush2.xpose.msra.mxu0 0.0
    %713 = vmatprep.subr.mxu0 0.0
    %714 = vmatpush2.xpose.msra.mxu0 0.0
    %715 = vmatprep.subr.mxu0 0.0
    %716 = vmatpush2.xpose.msra.mxu0 0.0
    %717 = vmatprep.subr.mxu0 0.0
    %718 = vmatpush2.xpose.msra.mxu0 0.0
    %719 = vmatprep.subr.mxu0 0.0
    %720 = vmatpush2.xpose.msra.mxu0 0.0
    %721 = vmatprep.subr.mxu0 0.0
    %722 = vmatpush2.xpose.msra.mxu0 0.0
    %723 = vmatprep.subr.mxu0 0.0
    %724 = vmatpush2.xpose.msra.mxu0 0.0
    %725 = vmatprep.subr.mxu0 0.0
    %726 = vmatpush2.xpose.msra.mxu0 0.0
    %727 = vmatprep.mubr.f32.mxu0 0.0
    %728 = vmatmul.mubr.f32.gmra.mxu0 %v659
    %v729 = vpop.f32.mrf.mxu0
    %v730 = vadd.f32 0.0, %v729
    %v731 = vpop.f32.mrf.mxu0
    %732 = vdwg.mxu0
    %733 = vrot.lane.b32.xlu0 %v569, 96
    %v734 = vpop.permute.xlu0 %733
    %v735 = vsel %vm582, %v569, 0
    %v737 = vsel %vm582, %v734, 0
    %739 = vmatprep.subr.mxu0 0.0
    %740 = vmatpush1.xpose.msra.mxu0 0.0
    %741 = vmatprep.subr.mxu0 0.0
    %742 = vmatpush1.xpose.msra.mxu0 0.0
    %743 = vmatprep.subr.mxu0 0.0
    %744 = vmatpush1.xpose.msra.mxu0 0.0
    %745 = vmatprep.subr.mxu0 0.0
    %746 = vmatpush1.xpose.msra.mxu0 0.0
    %747 = vmatprep.subr.mxu0 0.0
    %748 = vmatpush1.xpose.msra.mxu0 0.0
    %749 = vmatprep.subr.mxu0 0.0
    %750 = vmatpush1.xpose.msra.mxu0 0.0
    %751 = vmatprep.subr.mxu0 0.0
    %752 = vmatpush1.xpose.msra.mxu0 0.0
    %753 = vmatprep.subr.mxu0 0.0
    %754 = vmatpush1.xpose.msra.mxu0 0.0
    %755 = vmatprep.subr.mxu0 0.0
    %756 = vmatpush1.xpose.msra.mxu0 0.0
    %757 = vmatprep.subr.mxu0 0.0
    %758 = vmatpush1.xpose.msra.mxu0 0.0
    %759 = vmatprep.subr.mxu0 0.0
    %760 = vmatpush1.xpose.msra.mxu0 0.0
    %761 = vmatprep.subr.mxu0 0.0
    %762 = vmatpush1.xpose.msra.mxu0 0.0
    %763 = vmatprep.subr.mxu0 0.0
    %764 = vmatpush1.xpose.msra.mxu0 0.0
    %765 = vmatprep.subr.mxu0 0.0
    %766 = vmatpush1.xpose.msra.mxu0 0.0
    %767 = vmatprep.subr.mxu0 0.0
    %768 = vmatpush1.xpose.msra.mxu0 0.0
    %769 = vmatprep.subr.mxu0 0.0
    %770 = vmatpush1.xpose.msra.mxu0 %v737
    %771 = vmatprep.subr.mxu0 0.0
    %772 = vmatpush2.xpose.msra.mxu0 0.0
    %773 = vmatprep.subr.mxu0 0.0
    %774 = vmatpush2.xpose.msra.mxu0 0.0
    %775 = vmatprep.subr.mxu0 0.0
    %776 = vmatpush2.xpose.msra.mxu0 0.0
    %777 = vmatprep.subr.mxu0 0.0
    %778 = vmatpush2.xpose.msra.mxu0 0.0
    %779 = vmatprep.subr.mxu0 0.0
    %780 = vmatpush2.xpose.msra.mxu0 0.0
    %781 = vmatprep.subr.mxu0 0.0
    %782 = vmatpush2.xpose.msra.mxu0 0.0
    %783 = vmatprep.subr.mxu0 0.0
    %784 = vmatpush2.xpose.msra.mxu0 0.0
    %785 = vmatprep.subr.mxu0 0.0
    %786 = vmatpush2.xpose.msra.mxu0 0.0
    %787 = vmatprep.subr.mxu0 0.0
    %788 = vmatpush2.xpose.msra.mxu0 0.0
    %789 = vmatprep.subr.mxu0 0.0
    %790 = vmatpush2.xpose.msra.mxu0 0.0
    %791 = vmatprep.subr.mxu0 0.0
    %792 = vmatpush2.xpose.msra.mxu0 0.0
    %793 = vmatprep.subr.mxu0 0.0
    %794 = vmatpush2.xpose.msra.mxu0 0.0
    %795 = vmatprep.subr.mxu0 0.0
    %796 = vmatpush2.xpose.msra.mxu0 0.0
    %797 = vmatprep.subr.mxu0 0.0
    %798 = vmatpush2.xpose.msra.mxu0 0.0
    %799 = vmatprep.subr.mxu0 0.0
    %800 = vmatpush2.xpose.msra.mxu0 0.0
    %801 = vmatprep.subr.mxu0 0.0
    %802 = vmatpush2.xpose.msra.mxu0 0.0
    %803 = vmatprep.mubr.f32.mxu0 0.0
    %804 = vmatmul.mubr.f32.gmra.mxu0 %v735
    %v805 = vpop.f32.mrf.mxu0
    %v806 = vadd.f32 0.0, %v805
    %v807 = vpop.f32.mrf.mxu0
    %808 = vdwg.mxu0
    %809 = vrot.lane.b32.xlu0 %v571, 96
    %v810 = vpop.permute.xlu0 %809
    %v811 = vsel %vm582, %v571, 0
    %v813 = vsel %vm582, %v810, 0
    %815 = vmatprep.subr.mxu0 0.0
    %816 = vmatpush1.xpose.msra.mxu0 0.0
    %817 = vmatprep.subr.mxu0 0.0
    %818 = vmatpush1.xpose.msra.mxu0 0.0
    %819 = vmatprep.subr.mxu0 0.0
    %820 = vmatpush1.xpose.msra.mxu0 0.0
    %821 = vmatprep.subr.mxu0 0.0
    %822 = vmatpush1.xpose.msra.mxu0 0.0
    %823 = vmatprep.subr.mxu0 0.0
    %824 = vmatpush1.xpose.msra.mxu0 0.0
    %825 = vmatprep.subr.mxu0 0.0
    %826 = vmatpush1.xpose.msra.mxu0 0.0
    %827 = vmatprep.subr.mxu0 0.0
    %828 = vmatpush1.xpose.msra.mxu0 0.0
    %829 = vmatprep.subr.mxu0 0.0
    %830 = vmatpush1.xpose.msra.mxu0 0.0
    %831 = vmatprep.subr.mxu0 0.0
    %832 = vmatpush1.xpose.msra.mxu0 0.0
    %833 = vmatprep.subr.mxu0 0.0
    %834 = vmatpush1.xpose.msra.mxu0 0.0
    %835 = vmatprep.subr.mxu0 0.0
    %836 = vmatpush1.xpose.msra.mxu0 0.0
    %837 = vmatprep.subr.mxu0 0.0
    %838 = vmatpush1.xpose.msra.mxu0 0.0
    %839 = vmatprep.subr.mxu0 0.0
    %840 = vmatpush1.xpose.msra.mxu0 0.0
    %841 = vmatprep.subr.mxu0 0.0
    %842 = vmatpush1.xpose.msra.mxu0 0.0
    %843 = vmatprep.subr.mxu0 0.0
    %844 = vmatpush1.xpose.msra.mxu0 0.0
    %845 = vmatprep.subr.mxu0 0.0
    %846 = vmatpush1.xpose.msra.mxu0 %v813
    %847 = vmatprep.subr.mxu0 0.0
    %848 = vmatpush2.xpose.msra.mxu0 0.0
    %849 = vmatprep.subr.mxu0 0.0
    %850 = vmatpush2.xpose.msra.mxu0 0.0
    %851 = vmatprep.subr.mxu0 0.0
    %852 = vmatpush2.xpose.msra.mxu0 0.0
    %853 = vmatprep.subr.mxu0 0.0
    %854 = vmatpush2.xpose.msra.mxu0 0.0
    %855 = vmatprep.subr.mxu0 0.0
    %856 = vmatpush2.xpose.msra.mxu0 0.0
    %857 = vmatprep.subr.mxu0 0.0
    %858 = vmatpush2.xpose.msra.mxu0 0.0
    %859 = vmatprep.subr.mxu0 0.0
    %860 = vmatpush2.xpose.msra.mxu0 0.0
    %861 = vmatprep.subr.mxu0 0.0
    %862 = vmatpush2.xpose.msra.mxu0 0.0
    %863 = vmatprep.subr.mxu0 0.0
    %864 = vmatpush2.xpose.msra.mxu0 0.0
    %865 = vmatprep.subr.mxu0 0.0
    %866 = vmatpush2.xpose.msra.mxu0 0.0
    %867 = vmatprep.subr.mxu0 0.0
    %868 = vmatpush2.xpose.msra.mxu0 0.0
    %869 = vmatprep.subr.mxu0 0.0
    %870 = vmatpush2.xpose.msra.mxu0 0.0
    %871 = vmatprep.subr.mxu0 0.0
    %872 = vmatpush2.xpose.msra.mxu0 0.0
    %873 = vmatprep.subr.mxu0 0.0
    %874 = vmatpush2.xpose.msra.mxu0 0.0
    %875 = vmatprep.subr.mxu0 0.0
    %876 = vmatpush2.xpose.msra.mxu0 0.0
    %877 = vmatprep.subr.mxu0 0.0
    %878 = vmatpush2.xpose.msra.mxu0 0.0
    %879 = vmatprep.mubr.f32.mxu0 0.0
    %880 = vmatmul.mubr.f32.gmra.mxu0 %v811
    %v881 = vpop.f32.mrf.mxu0
    %v882 = vadd.f32 0.0, %v881
    %v883 = vpop.f32.mrf.mxu0
    %884 = vdwg.mxu0
    %885 = vrot.lane.b32.xlu0 %v573, 96
    %v886 = vpop.permute.xlu0 %885
    %v887 = vsel %vm582, %v573, 0
    %v889 = vsel %vm582, %v886, 0
    %891 = vmatprep.subr.mxu0 0.0
    %892 = vmatpush1.xpose.msra.mxu0 0.0
    %893 = vmatprep.subr.mxu0 0.0
    %894 = vmatpush1.xpose.msra.mxu0 0.0
    %895 = vmatprep.subr.mxu0 0.0
    %896 = vmatpush1.xpose.msra.mxu0 0.0
    %897 = vmatprep.subr.mxu0 0.0
    %898 = vmatpush1.xpose.msra.mxu0 0.0
    %899 = vmatprep.subr.mxu0 0.0
    %900 = vmatpush1.xpose.msra.mxu0 0.0
    %901 = vmatprep.subr.mxu0 0.0
    %902 = vmatpush1.xpose.msra.mxu0 0.0
    %903 = vmatprep.subr.mxu0 0.0
    %904 = vmatpush1.xpose.msra.mxu0 0.0
    %905 = vmatprep.subr.mxu0 0.0
    %906 = vmatpush1.xpose.msra.mxu0 0.0
    %907 = vmatprep.subr.mxu0 0.0
    %908 = vmatpush1.xpose.msra.mxu0 0.0
    %909 = vmatprep.subr.mxu0 0.0
    %910 = vmatpush1.xpose.msra.mxu0 0.0
    %911 = vmatprep.subr.mxu0 0.0
    %912 = vmatpush1.xpose.msra.mxu0 0.0
    %913 = vmatprep.subr.mxu0 0.0
    %914 = vmatpush1.xpose.msra.mxu0 0.0
    %915 = vmatprep.subr.mxu0 0.0
    %916 = vmatpush1.xpose.msra.mxu0 0.0
    %917 = vmatprep.subr.mxu0 0.0
    %918 = vmatpush1.xpose.msra.mxu0 0.0
    %919 = vmatprep.subr.mxu0 0.0
    %920 = vmatpush1.xpose.msra.mxu0 0.0
    %921 = vmatprep.subr.mxu0 0.0
    %922 = vmatpush1.xpose.msra.mxu0 %v889
    %923 = vmatprep.subr.mxu0 0.0
    %924 = vmatpush2.xpose.msra.mxu0 0.0
    %925 = vmatprep.subr.mxu0 0.0
    %926 = vmatpush2.xpose.msra.mxu0 0.0
    %927 = vmatprep.subr.mxu0 0.0
    %928 = vmatpush2.xpose.msra.mxu0 0.0
    %929 = vmatprep.subr.mxu0 0.0
    %930 = vmatpush2.xpose.msra.mxu0 0.0
    %931 = vmatprep.subr.mxu0 0.0
    %932 = vmatpush2.xpose.msra.mxu0 0.0
    %933 = vmatprep.subr.mxu0 0.0
    %934 = vmatpush2.xpose.msra.mxu0 0.0
    %935 = vmatprep.subr.mxu0 0.0
    %936 = vmatpush2.xpose.msra.mxu0 0.0
    %937 = vmatprep.subr.mxu0 0.0
    %938 = vmatpush2.xpose.msra.mxu0 0.0
    %939 = vmatprep.subr.mxu0 0.0
    %940 = vmatpush2.xpose.msra.mxu0 0.0
    %941 = vmatprep.subr.mxu0 0.0
    %942 = vmatpush2.xpose.msra.mxu0 0.0
    %943 = vmatprep.subr.mxu0 0.0
    %944 = vmatpush2.xpose.msra.mxu0 0.0
    %945 = vmatprep.subr.mxu0 0.0
    %946 = vmatpush2.xpose.msra.mxu0 0.0
    %947 = vmatprep.subr.mxu0 0.0
    %948 = vmatpush2.xpose.msra.mxu0 0.0
    %949 = vmatprep.subr.mxu0 0.0
    %950 = vmatpush2.xpose.msra.mxu0 0.0
    %951 = vmatprep.subr.mxu0 0.0
    %952 = vmatpush2.xpose.msra.mxu0 0.0
    %953 = vmatprep.subr.mxu0 0.0
    %954 = vmatpush2.xpose.msra.mxu0 0.0
    %955 = vmatprep.mubr.f32.mxu0 0.0
    %956 = vmatmul.mubr.f32.gmra.mxu0 %v887
    %v957 = vpop.f32.mrf.mxu0
    %v958 = vadd.f32 0.0, %v957
    %v959 = vpop.f32.mrf.mxu0
    %960 = vdwg.mxu0
    %961 = vrot.lane.b32.xlu0 %v575, 96
    %v962 = vpop.permute.xlu0 %961
    %v963 = vsel %vm582, %v575, 0
    %v965 = vsel %vm582, %v962, 0
    %967 = vmatprep.subr.mxu0 0.0
    %968 = vmatpush1.xpose.msra.mxu0 0.0
    %969 = vmatprep.subr.mxu0 0.0
    %970 = vmatpush1.xpose.msra.mxu0 0.0
    %971 = vmatprep.subr.mxu0 0.0
    %972 = vmatpush1.xpose.msra.mxu0 0.0
    %973 = vmatprep.subr.mxu0 0.0
    %974 = vmatpush1.xpose.msra.mxu0 0.0
    %975 = vmatprep.subr.mxu0 0.0
    %976 = vmatpush1.xpose.msra.mxu0 0.0
    %977 = vmatprep.subr.mxu0 0.0
    %978 = vmatpush1.xpose.msra.mxu0 0.0
    %979 = vmatprep.subr.mxu0 0.0
    %980 = vmatpush1.xpose.msra.mxu0 0.0
    %981 = vmatprep.subr.mxu0 0.0
    %982 = vmatpush1.xpose.msra.mxu0 0.0
    %983 = vmatprep.subr.mxu0 0.0
    %984 = vmatpush1.xpose.msra.mxu0 0.0
    %985 = vmatprep.subr.mxu0 0.0
    %986 = vmatpush1.xpose.msra.mxu0 0.0
    %987 = vmatprep.subr.mxu0 0.0
    %988 = vmatpush1.xpose.msra.mxu0 0.0
    %989 = vmatprep.subr.mxu0 0.0
    %990 = vmatpush1.xpose.msra.mxu0 0.0
    %991 = vmatprep.subr.mxu0 0.0
    %992 = vmatpush1.xpose.msra.mxu0 0.0
    %993 = vmatprep.subr.mxu0 0.0
    %994 = vmatpush1.xpose.msra.mxu0 0.0
    %995 = vmatprep.subr.mxu0 0.0
    %996 = vmatpush1.xpose.msra.mxu0 0.0
    %997 = vmatprep.subr.mxu0 0.0
    %998 = vmatpush1.xpose.msra.mxu0 %v965
    %999 = vmatprep.subr.mxu0 0.0
    %1000 = vmatpush2.xpose.msra.mxu0 0.0
    %1001 = vmatprep.subr.mxu0 0.0
    %1002 = vmatpush2.xpose.msra.mxu0 0.0
    %1003 = vmatprep.subr.mxu0 0.0
    %1004 = vmatpush2.xpose.msra.mxu0 0.0
    %1005 = vmatprep.subr.mxu0 0.0
    %1006 = vmatpush2.xpose.msra.mxu0 0.0
    %1007 = vmatprep.subr.mxu0 0.0
    %1008 = vmatpush2.xpose.msra.mxu0 0.0
    %1009 = vmatprep.subr.mxu0 0.0
    %1010 = vmatpush2.xpose.msra.mxu0 0.0
    %1011 = vmatprep.subr.mxu0 0.0
    %1012 = vmatpush2.xpose.msra.mxu0 0.0
    %1013 = vmatprep.subr.mxu0 0.0
    %1014 = vmatpush2.xpose.msra.mxu0 0.0
    %1015 = vmatprep.subr.mxu0 0.0
    %1016 = vmatpush2.xpose.msra.mxu0 0.0
    %1017 = vmatprep.subr.mxu0 0.0
    %1018 = vmatpush2.xpose.msra.mxu0 0.0
    %1019 = vmatprep.subr.mxu0 0.0
    %1020 = vmatpush2.xpose.msra.mxu0 0.0
    %1021 = vmatprep.subr.mxu0 0.0
    %1022 = vmatpush2.xpose.msra.mxu0 0.0
    %1023 = vmatprep.subr.mxu0 0.0
    %1024 = vmatpush2.xpose.msra.mxu0 0.0
    %1025 = vmatprep.subr.mxu0 0.0
    %1026 = vmatpush2.xpose.msra.mxu0 0.0
    %1027 = vmatprep.subr.mxu0 0.0
    %1028 = vmatpush2.xpose.msra.mxu0 0.0
    %1029 = vmatprep.subr.mxu0 0.0
    %1030 = vmatpush2.xpose.msra.mxu0 0.0
    %1031 = vmatprep.mubr.f32.mxu0 0.0
    %1032 = vmatmul.mubr.f32.gmra.mxu0 %v963
    %v1033 = vpop.f32.mrf.mxu0
    %v1034 = vadd.f32 0.0, %v1033
    %v1035 = vpop.f32.mrf.mxu0
    %1036 = vdwg.mxu0
    %1037 = vrot.lane.b32.xlu0 %v577, 96
    %v1038 = vpop.permute.xlu0 %1037
    %v1039 = vsel %vm582, %v577, 0
    %v1041 = vsel %vm582, %v1038, 0
    %1043 = vmatprep.subr.mxu0 0.0
    %1044 = vmatpush1.xpose.msra.mxu0 0.0
    %1045 = vmatprep.subr.mxu0 0.0
    %1046 = vmatpush1.xpose.msra.mxu0 0.0
    %1047 = vmatprep.subr.mxu0 0.0
    %1048 = vmatpush1.xpose.msra.mxu0 0.0
    %1049 = vmatprep.subr.mxu0 0.0
    %1050 = vmatpush1.xpose.msra.mxu0 0.0
    %1051 = vmatprep.subr.mxu0 0.0
    %1052 = vmatpush1.xpose.msra.mxu0 0.0
    %1053 = vmatprep.subr.mxu0 0.0
    %1054 = vmatpush1.xpose.msra.mxu0 0.0
    %1055 = vmatprep.subr.mxu0 0.0
    %1056 = vmatpush1.xpose.msra.mxu0 0.0
    %1057 = vmatprep.subr.mxu0 0.0
    %1058 = vmatpush1.xpose.msra.mxu0 0.0
    %1059 = vmatprep.subr.mxu0 0.0
    %1060 = vmatpush1.xpose.msra.mxu0 0.0
    %1061 = vmatprep.subr.mxu0 0.0
    %1062 = vmatpush1.xpose.msra.mxu0 0.0
    %1063 = vmatprep.subr.mxu0 0.0
    %1064 = vmatpush1.xpose.msra.mxu0 0.0
    %1065 = vmatprep.subr.mxu0 0.0
    %1066 = vmatpush1.xpose.msra.mxu0 0.0
    %1067 = vmatprep.subr.mxu0 0.0
    %1068 = vmatpush1.xpose.msra.mxu0 0.0
    %1069 = vmatprep.subr.mxu0 0.0
    %1070 = vmatpush1.xpose.msra.mxu0 0.0
    %1071 = vmatprep.subr.mxu0 0.0
    %1072 = vmatpush1.xpose.msra.mxu0 0.0
    %1073 = vmatprep.subr.mxu0 0.0
    %1074 = vmatpush1.xpose.msra.mxu0 %v1041
    %1075 = vmatprep.subr.mxu0 0.0
    %1076 = vmatpush2.xpose.msra.mxu0 0.0
    %1077 = vmatprep.subr.mxu0 0.0
    %1078 = vmatpush2.xpose.msra.mxu0 0.0
    %1079 = vmatprep.subr.mxu0 0.0
    %1080 = vmatpush2.xpose.msra.mxu0 0.0
    %1081 = vmatprep.subr.mxu0 0.0
    %1082 = vmatpush2.xpose.msra.mxu0 0.0
    %1083 = vmatprep.subr.mxu0 0.0
    %1084 = vmatpush2.xpose.msra.mxu0 0.0
    %1085 = vmatprep.subr.mxu0 0.0
    %1086 = vmatpush2.xpose.msra.mxu0 0.0
    %1087 = vmatprep.subr.mxu0 0.0
    %1088 = vmatpush2.xpose.msra.mxu0 0.0
    %1089 = vmatprep.subr.mxu0 0.0
    %1090 = vmatpush2.xpose.msra.mxu0 0.0
    %1091 = vmatprep.subr.mxu0 0.0
    %1092 = vmatpush2.xpose.msra.mxu0 0.0
    %1093 = vmatprep.subr.mxu0 0.0
    %1094 = vmatpush2.xpose.msra.mxu0 0.0
    %1095 = vmatprep.subr.mxu0 0.0
    %1096 = vmatpush2.xpose.msra.mxu0 0.0
    %1097 = vmatprep.subr.mxu0 0.0
    %1098 = vmatpush2.xpose.msra.mxu0 0.0
    %1099 = vmatprep.subr.mxu0 0.0
    %1100 = vmatpush2.xpose.msra.mxu0 0.0
    %1101 = vmatprep.subr.mxu0 0.0
    %1102 = vmatpush2.xpose.msra.mxu0 0.0
    %1103 = vmatprep.subr.mxu0 0.0
    %1104 = vmatpush2.xpose.msra.mxu0 0.0
    %1105 = vmatprep.subr.mxu0 0.0
    %1106 = vmatpush2.xpose.msra.mxu0 0.0
    %1107 = vmatprep.mubr.f32.mxu0 0.0
    %1108 = vmatmul.mubr.f32.gmra.mxu0 %v1039
    %v1109 = vpop.f32.mrf.mxu0
    %v1110 = vadd.f32 0.0, %v1109
    %v1111 = vpop.f32.mrf.mxu0
    %1112 = vdwg.mxu0
    %1113 = vrot.lane.b32.xlu0 %v579, 96
    %v1114 = vpop.permute.xlu0 %1113
    %v1115 = vsel %vm582, %v579, 0
    %v1117 = vsel %vm582, %v1114, 0
    %1119 = vmatprep.subr.mxu0 0.0
    %1120 = vmatpush1.xpose.msra.mxu0 0.0
    %1121 = vmatprep.subr.mxu0 0.0
    %1122 = vmatpush1.xpose.msra.mxu0 0.0
    %1123 = vmatprep.subr.mxu0 0.0
    %1124 = vmatpush1.xpose.msra.mxu0 0.0
    %1125 = vmatprep.subr.mxu0 0.0
    %1126 = vmatpush1.xpose.msra.mxu0 0.0
    %1127 = vmatprep.subr.mxu0 0.0
    %1128 = vmatpush1.xpose.msra.mxu0 0.0
    %1129 = vmatprep.subr.mxu0 0.0
    %1130 = vmatpush1.xpose.msra.mxu0 0.0
    %1131 = vmatprep.subr.mxu0 0.0
    %1132 = vmatpush1.xpose.msra.mxu0 0.0
    %1133 = vmatprep.subr.mxu0 0.0
    %1134 = vmatpush1.xpose.msra.mxu0 0.0
    %1135 = vmatprep.subr.mxu0 0.0
    %1136 = vmatpush1.xpose.msra.mxu0 0.0
    %1137 = vmatprep.subr.mxu0 0.0
    %1138 = vmatpush1.xpose.msra.mxu0 0.0
    %1139 = vmatprep.subr.mxu0 0.0
    %1140 = vmatpush1.xpose.msra.mxu0 0.0
    %1141 = vmatprep.subr.mxu0 0.0
    %1142 = vmatpush1.xpose.msra.mxu0 0.0
    %1143 = vmatprep.subr.mxu0 0.0
    %1144 = vmatpush1.xpose.msra.mxu0 0.0
    %1145 = vmatprep.subr.mxu0 0.0
    %1146 = vmatpush1.xpose.msra.mxu0 0.0
    %1147 = vmatprep.subr.mxu0 0.0
    %1148 = vmatpush1.xpose.msra.mxu0 0.0
    %1149 = vmatprep.subr.mxu0 0.0
    %1150 = vmatpush1.xpose.msra.mxu0 %v1117
    %1151 = vmatprep.subr.mxu0 0.0
    %1152 = vmatpush2.xpose.msra.mxu0 0.0
    %1153 = vmatprep.subr.mxu0 0.0
    %1154 = vmatpush2.xpose.msra.mxu0 0.0
    %1155 = vmatprep.subr.mxu0 0.0
    %1156 = vmatpush2.xpose.msra.mxu0 0.0
    %1157 = vmatprep.subr.mxu0 0.0
    %1158 = vmatpush2.xpose.msra.mxu0 0.0
    %1159 = vmatprep.subr.mxu0 0.0
    %1160 = vmatpush2.xpose.msra.mxu0 0.0
    %1161 = vmatprep.subr.mxu0 0.0
    %1162 = vmatpush2.xpose.msra.mxu0 0.0
    %1163 = vmatprep.subr.mxu0 0.0
    %1164 = vmatpush2.xpose.msra.mxu0 0.0
    %1165 = vmatprep.subr.mxu0 0.0
    %1166 = vmatpush2.xpose.msra.mxu0 0.0
    %1167 = vmatprep.subr.mxu0 0.0
    %1168 = vmatpush2.xpose.msra.mxu0 0.0
    %1169 = vmatprep.subr.mxu0 0.0
    %1170 = vmatpush2.xpose.msra.mxu0 0.0
    %1171 = vmatprep.subr.mxu0 0.0
    %1172 = vmatpush2.xpose.msra.mxu0 0.0
    %1173 = vmatprep.subr.mxu0 0.0
    %1174 = vmatpush2.xpose.msra.mxu0 0.0
    %1175 = vmatprep.subr.mxu0 0.0
    %1176 = vmatpush2.xpose.msra.mxu0 0.0
    %1177 = vmatprep.subr.mxu0 0.0
    %1178 = vmatpush2.xpose.msra.mxu0 0.0
    %1179 = vmatprep.subr.mxu0 0.0
    %1180 = vmatpush2.xpose.msra.mxu0 0.0
    %1181 = vmatprep.subr.mxu0 0.0
    %1182 = vmatpush2.xpose.msra.mxu0 0.0
    %1183 = vmatprep.mubr.f32.mxu0 0.0
    %1184 = vmatmul.mubr.f32.gmra.mxu0 %v1115
    %v1185 = vpop.f32.mrf.mxu0
    %v1186 = vadd.f32 0.0, %v1185
    %v1187 = vpop.f32.mrf.mxu0
    %1188 = vdwg.mxu0
    %v1189 = vmul.f32 %v654, 0.35355338
    %v1190 = vmul.f32 %v730, 0.35355338
    %v1191 = vmul.f32 %v806, 0.35355338
    %v1192 = vmul.f32 %v882, 0.35355338
    %v1193 = vmul.f32 %v958, 0.35355338
    %v1194 = vmul.f32 %v1034, 0.35355338
    %v1195 = vmul.f32 %v1110, 0.35355338
    %v1196 = vmul.f32 %v1186, 0.35355338
    %v1197 = vadd.f32 %v1189, %v93
    %v1198 = vadd.f32 %v1190, %v94
    %v1199 = vadd.f32 %v1191, %v95
    %v1200 = vadd.f32 %v1192, %v96
    %v1201 = vadd.f32 %v1193, %v97
    %v1202 = vadd.f32 %v1194, %v98
    %v1203 = vadd.f32 %v1195, %v99
    %v1204 = vadd.f32 %v1196, %v100
    %v1205 = vsel %vm582, %v1197, -inf
    %1206 = vmax.xlane.f32.xlu0 %v1205
    %v1207 = vpop.xlane.xlu0 %1206
    %v1208 = vsel %vm582, %v1198, -inf
    %1209 = vmax.xlane.f32.xlu0 %v1208
    %v1210 = vpop.xlane.xlu0 %1209
    %v1211 = vsel %vm582, %v1199, -inf
    %1212 = vmax.xlane.f32.xlu0 %v1211
    %v1213 = vpop.xlane.xlu0 %1212
    %v1214 = vsel %vm582, %v1200, -inf
    %1215 = vmax.xlane.f32.xlu0 %v1214
    %v1216 = vpop.xlane.xlu0 %1215
    %v1217 = vsel %vm582, %v1201, -inf
    %1218 = vmax.xlane.f32.xlu0 %v1217
    %v1219 = vpop.xlane.xlu0 %1218
    %v1220 = vsel %vm582, %v1202, -inf
    %1221 = vmax.xlane.f32.xlu0 %v1220
    %v1222 = vpop.xlane.xlu0 %1221
    %v1223 = vsel %vm582, %v1203, -inf
    %1224 = vmax.xlane.f32.xlu0 %v1223
    %v1225 = vpop.xlane.xlu0 %1224
    %v1226 = vsel %vm582, %v1204, -inf
    %1227 = vmax.xlane.f32.xlu0 %v1226
    %v1228 = vpop.xlane.xlu0 %1227
    %v1229 = vsub.f32 %v1197, %v1207
    %v1230 = vsub.f32 %v1198, %v1210
    %v1231 = vsub.f32 %v1199, %v1213
    %v1232 = vsub.f32 %v1200, %v1216
    %v1233 = vsub.f32 %v1201, %v1219
    %v1234 = vsub.f32 %v1202, %v1222
    %v1235 = vsub.f32 %v1203, %v1225
    %v1236 = vsub.f32 %v1204, %v1228
    %v1237 = vmul.f32 %v1229, 1.442695
    %v1238 = vpow.pop %v1237
    %v1239 = vmul.f32 %v1230, 1.442695
    %v1240 = vpow.pop %v1239
    %v1241 = vmul.f32 %v1231, 1.442695
    %v1242 = vpow.pop %v1241
    %v1243 = vmul.f32 %v1232, 1.442695
    %v1244 = vpow.pop %v1243
    %v1245 = vmul.f32 %v1233, 1.442695
    %v1246 = vpow.pop %v1245
    %v1247 = vmul.f32 %v1234, 1.442695
    %v1248 = vpow.pop %v1247
    %v1249 = vmul.f32 %v1235, 1.442695
    %v1250 = vpow.pop %v1249
    %v1251 = vmul.f32 %v1236, 1.442695
    %v1252 = vpow.pop %v1251
    %v1253 = vsel %vm582, %v1238, 0.0
    %1254 = vadd.xlane.f32.xlu0 %v1253
    %v1255 = vpop.xlane.xlu0 %1254
    %v1256 = vsel %vm582, %v1240, 0.0
    %1257 = vadd.xlane.f32.xlu0 %v1256
    %v1258 = vpop.xlane.xlu0 %1257
    %v1259 = vsel %vm582, %v1242, 0.0
    %1260 = vadd.xlane.f32.xlu0 %v1259
    %v1261 = vpop.xlane.xlu0 %1260
    %v1262 = vsel %vm582, %v1244, 0.0
    %1263 = vadd.xlane.f32.xlu0 %v1262
    %v1264 = vpop.xlane.xlu0 %1263
    %v1265 = vsel %vm582, %v1246, 0.0
    %1266 = vadd.xlane.f32.xlu0 %v1265
    %v1267 = vpop.xlane.xlu0 %1266
    %v1268 = vsel %vm582, %v1248, 0.0
    %1269 = vadd.xlane.f32.xlu0 %v1268
    %v1270 = vpop.xlane.xlu0 %1269
    %v1271 = vsel %vm582, %v1250, 0.0
    %1272 = vadd.xlane.f32.xlu0 %v1271
    %v1273 = vpop.xlane.xlu0 %1272
    %v1274 = vsel %vm582, %v1252, 0.0
    %1275 = vadd.xlane.f32.xlu0 %v1274
    %v1276 = vpop.xlane.xlu0 %1275
    %v1277 = vrcp.pop %v1255
    %v1278 = vrcp.pop %v1258
    %v1279 = vrcp.pop %v1261
    %v1280 = vrcp.pop %v1264
    %v1281 = vrcp.pop %v1267
    %v1282 = vrcp.pop %v1270
    %v1283 = vrcp.pop %v1273
    %v1284 = vrcp.pop %v1276
    %v1285 = vmul.f32 %v1238, %v1277
    %v1286 = vmul.f32 %v1240, %v1278
    %v1287 = vmul.f32 %v1242, %v1279
    %v1288 = vmul.f32 %v1244, %v1280
    %v1289 = vmul.f32 %v1246, %v1281
    %v1290 = vmul.f32 %v1248, %v1282
    %v1291 = vmul.f32 %v1250, %v1283
    %v1292 = vmul.f32 %v1252, %v1284
    %1293 = vrot.lane.b32.xlu0 %v558, 64
    %v1294 = vpop.permute.xlu0 %1293
    %v1297 = vsel %vm582, %v1285, 0
    %1299 = vmatprep.subr.mxu0 0.0
    %1300 = vmatpush1.msra.mxu0 0.0
    %1301 = vmatprep.subr.mxu0 0.0
    %1302 = vmatpush1.msra.mxu0 0.0
    %1303 = vmatprep.subr.mxu0 0.0
    %1304 = vmatpush1.msra.mxu0 0.0
    %1305 = vmatprep.subr.mxu0 0.0
    %1306 = vmatpush1.msra.mxu0 0.0
    %1307 = vmatprep.subr.mxu0 0.0
    %1308 = vmatpush1.msra.mxu0 0.0
    %1309 = vmatprep.subr.mxu0 0.0
    %1310 = vmatpush1.msra.mxu0 0.0
    %1311 = vmatprep.subr.mxu0 0.0
    %1312 = vmatpush1.msra.mxu0 0.0
    %1313 = vmatprep.subr.mxu0 0.0
    %1314 = vmatpush1.msra.mxu0 0.0
    %1315 = vmatprep.subr.mxu0 0.0
    %1316 = vmatpush1.msra.mxu0 0.0
    %1317 = vmatprep.subr.mxu0 0.0
    %1318 = vmatpush1.msra.mxu0 0.0
    %1319 = vmatprep.subr.mxu0 0.0
    %1320 = vmatpush1.msra.mxu0 0.0
    %1321 = vmatprep.subr.mxu0 0.0
    %1322 = vmatpush1.msra.mxu0 0.0
    %1323 = vmatprep.subr.mxu0 0.0
    %1324 = vmatpush1.msra.mxu0 0.0
    %1325 = vmatprep.subr.mxu0 0.0
    %1326 = vmatpush1.msra.mxu0 0.0
    %1327 = vmatprep.subr.mxu0 0.0
    %1328 = vmatpush1.msra.mxu0 0.0
    %1329 = vmatprep.subr.mxu0 0.0
    %1330 = vmatpush1.msra.mxu0 %v1294
    %1331 = vmatprep.subr.mxu0 0.0
    %1332 = vmatpush2.msra.mxu0 0.0
    %1333 = vmatprep.subr.mxu0 0.0
    %1334 = vmatpush2.msra.mxu0 0.0
    %1335 = vmatprep.subr.mxu0 0.0
    %1336 = vmatpush2.msra.mxu0 0.0
    %1337 = vmatprep.subr.mxu0 0.0
    %1338 = vmatpush2.msra.mxu0 0.0
    %1339 = vmatprep.subr.mxu0 0.0
    %1340 = vmatpush2.msra.mxu0 0.0
    %1341 = vmatprep.subr.mxu0 0.0
    %1342 = vmatpush2.msra.mxu0 0.0
    %1343 = vmatprep.subr.mxu0 0.0
    %1344 = vmatpush2.msra.mxu0 0.0
    %1345 = vmatprep.subr.mxu0 0.0
    %1346 = vmatpush2.msra.mxu0 0.0
    %1347 = vmatprep.subr.mxu0 0.0
    %1348 = vmatpush2.msra.mxu0 0.0
    %1349 = vmatprep.subr.mxu0 0.0
    %1350 = vmatpush2.msra.mxu0 0.0
    %1351 = vmatprep.subr.mxu0 0.0
    %1352 = vmatpush2.msra.mxu0 0.0
    %1353 = vmatprep.subr.mxu0 0.0
    %1354 = vmatpush2.msra.mxu0 0.0
    %1355 = vmatprep.subr.mxu0 0.0
    %1356 = vmatpush2.msra.mxu0 0.0
    %1357 = vmatprep.subr.mxu0 0.0
    %1358 = vmatpush2.msra.mxu0 0.0
    %1359 = vmatprep.subr.mxu0 0.0
    %1360 = vmatpush2.msra.mxu0 0.0
    %1361 = vmatprep.subr.mxu0 0.0
    %1362 = vmatpush2.msra.mxu0 0.0
    %1363 = vmatprep.mubr.f32.mxu0 0.0
    %1364 = vmatmul.mubr.f32.gmra.mxu0 %v1297
    %v1365 = vpop.f32.mrf.mxu0
    %v1366 = vadd.f32 0.0, %v1365
    %v1367 = vpop.f32.mrf.mxu0
    %1368 = vdwg.mxu0
    %1369 = vrot.lane.b32.xlu0 %v563, 64
    %v1370 = vpop.permute.xlu0 %1369
    %v1373 = vsel %vm582, %v1286, 0
    %1375 = vmatprep.subr.mxu0 0.0
    %1376 = vmatpush1.msra.mxu0 0.0
    %1377 = vmatprep.subr.mxu0 0.0
    %1378 = vmatpush1.msra.mxu0 0.0
    %1379 = vmatprep.subr.mxu0 0.0
    %1380 = vmatpush1.msra.mxu0 0.0
    %1381 = vmatprep.subr.mxu0 0.0
    %1382 = vmatpush1.msra.mxu0 0.0
    %1383 = vmatprep.subr.mxu0 0.0
    %1384 = vmatpush1.msra.mxu0 0.0
    %1385 = vmatprep.subr.mxu0 0.0
    %1386 = vmatpush1.msra.mxu0 0.0
    %1387 = vmatprep.subr.mxu0 0.0
    %1388 = vmatpush1.msra.mxu0 0.0
    %1389 = vmatprep.subr.mxu0 0.0
    %1390 = vmatpush1.msra.mxu0 0.0
    %1391 = vmatprep.subr.mxu0 0.0
    %1392 = vmatpush1.msra.mxu0 0.0
    %1393 = vmatprep.subr.mxu0 0.0
    %1394 = vmatpush1.msra.mxu0 0.0
    %1395 = vmatprep.subr.mxu0 0.0
    %1396 = vmatpush1.msra.mxu0 0.0
    %1397 = vmatprep.subr.mxu0 0.0
    %1398 = vmatpush1.msra.mxu0 0.0
    %1399 = vmatprep.subr.mxu0 0.0
    %1400 = vmatpush1.msra.mxu0 0.0
    %1401 = vmatprep.subr.mxu0 0.0
    %1402 = vmatpush1.msra.mxu0 0.0
    %1403 = vmatprep.subr.mxu0 0.0
    %1404 = vmatpush1.msra.mxu0 0.0
    %1405 = vmatprep.subr.mxu0 0.0
    %1406 = vmatpush1.msra.mxu0 %v1370
    %1407 = vmatprep.subr.mxu0 0.0
    %1408 = vmatpush2.msra.mxu0 0.0
    %1409 = vmatprep.subr.mxu0 0.0
    %1410 = vmatpush2.msra.mxu0 0.0
    %1411 = vmatprep.subr.mxu0 0.0
    %1412 = vmatpush2.msra.mxu0 0.0
    %1413 = vmatprep.subr.mxu0 0.0
    %1414 = vmatpush2.msra.mxu0 0.0
    %1415 = vmatprep.subr.mxu0 0.0
    %1416 = vmatpush2.msra.mxu0 0.0
    %1417 = vmatprep.subr.mxu0 0.0
    %1418 = vmatpush2.msra.mxu0 0.0
    %1419 = vmatprep.subr.mxu0 0.0
    %1420 = vmatpush2.msra.mxu0 0.0
    %1421 = vmatprep.subr.mxu0 0.0
    %1422 = vmatpush2.msra.mxu0 0.0
    %1423 = vmatprep.subr.mxu0 0.0
    %1424 = vmatpush2.msra.mxu0 0.0
    %1425 = vmatprep.subr.mxu0 0.0
    %1426 = vmatpush2.msra.mxu0 0.0
    %1427 = vmatprep.subr.mxu0 0.0
    %1428 = vmatpush2.msra.mxu0 0.0
    %1429 = vmatprep.subr.mxu0 0.0
    %1430 = vmatpush2.msra.mxu0 0.0
    %1431 = vmatprep.subr.mxu0 0.0
    %1432 = vmatpush2.msra.mxu0 0.0
    %1433 = vmatprep.subr.mxu0 0.0
    %1434 = vmatpush2.msra.mxu0 0.0
    %1435 = vmatprep.subr.mxu0 0.0
    %1436 = vmatpush2.msra.mxu0 0.0
    %1437 = vmatprep.subr.mxu0 0.0
    %1438 = vmatpush2.msra.mxu0 0.0
    %1439 = vmatprep.mubr.f32.mxu0 0.0
    %1440 = vmatmul.mubr.f32.gmra.mxu0 %v1373
    %v1441 = vpop.f32.mrf.mxu0
    %v1442 = vadd.f32 0.0, %v1441
    %v1443 = vpop.f32.mrf.mxu0
    %1444 = vdwg.mxu0
    %1445 = vrot.lane.b32.xlu0 %v569, 64
    %v1446 = vpop.permute.xlu0 %1445
    %v1449 = vsel %vm582, %v1287, 0
    %1451 = vmatprep.subr.mxu0 0.0
    %1452 = vmatpush1.msra.mxu0 0.0
    %1453 = vmatprep.subr.mxu0 0.0
    %1454 = vmatpush1.msra.mxu0 0.0
    %1455 = vmatprep.subr.mxu0 0.0
    %1456 = vmatpush1.msra.mxu0 0.0
    %1457 = vmatprep.subr.mxu0 0.0
    %1458 = vmatpush1.msra.mxu0 0.0
    %1459 = vmatprep.subr.mxu0 0.0
    %1460 = vmatpush1.msra.mxu0 0.0
    %1461 = vmatprep.subr.mxu0 0.0
    %1462 = vmatpush1.msra.mxu0 0.0
    %1463 = vmatprep.subr.mxu0 0.0
    %1464 = vmatpush1.msra.mxu0 0.0
    %1465 = vmatprep.subr.mxu0 0.0
    %1466 = vmatpush1.msra.mxu0 0.0
    %1467 = vmatprep.subr.mxu0 0.0
    %1468 = vmatpush1.msra.mxu0 0.0
    %1469 = vmatprep.subr.mxu0 0.0
    %1470 = vmatpush1.msra.mxu0 0.0
    %1471 = vmatprep.subr.mxu0 0.0
    %1472 = vmatpush1.msra.mxu0 0.0
    %1473 = vmatprep.subr.mxu0 0.0
    %1474 = vmatpush1.msra.mxu0 0.0
    %1475 = vmatprep.subr.mxu0 0.0
    %1476 = vmatpush1.msra.mxu0 0.0
    %1477 = vmatprep.subr.mxu0 0.0
    %1478 = vmatpush1.msra.mxu0 0.0
    %1479 = vmatprep.subr.mxu0 0.0
    %1480 = vmatpush1.msra.mxu0 0.0
    %1481 = vmatprep.subr.mxu0 0.0
    %1482 = vmatpush1.msra.mxu0 %v1446
    %1483 = vmatprep.subr.mxu0 0.0
    %1484 = vmatpush2.msra.mxu0 0.0
    %1485 = vmatprep.subr.mxu0 0.0
    %1486 = vmatpush2.msra.mxu0 0.0
    %1487 = vmatprep.subr.mxu0 0.0
    %1488 = vmatpush2.msra.mxu0 0.0
    %1489 = vmatprep.subr.mxu0 0.0
    %1490 = vmatpush2.msra.mxu0 0.0
    %1491 = vmatprep.subr.mxu0 0.0
    %1492 = vmatpush2.msra.mxu0 0.0
    %1493 = vmatprep.subr.mxu0 0.0
    %1494 = vmatpush2.msra.mxu0 0.0
    %1495 = vmatprep.subr.mxu0 0.0
    %1496 = vmatpush2.msra.mxu0 0.0
    %1497 = vmatprep.subr.mxu0 0.0
    %1498 = vmatpush2.msra.mxu0 0.0
    %1499 = vmatprep.subr.mxu0 0.0
    %1500 = vmatpush2.msra.mxu0 0.0
    %1501 = vmatprep.subr.mxu0 0.0
    %1502 = vmatpush2.msra.mxu0 0.0
    %1503 = vmatprep.subr.mxu0 0.0
    %1504 = vmatpush2.msra.mxu0 0.0
    %1505 = vmatprep.subr.mxu0 0.0
    %1506 = vmatpush2.msra.mxu0 0.0
    %1507 = vmatprep.subr.mxu0 0.0
    %1508 = vmatpush2.msra.mxu0 0.0
    %1509 = vmatprep.subr.mxu0 0.0
    %1510 = vmatpush2.msra.mxu0 0.0
    %1511 = vmatprep.subr.mxu0 0.0
    %1512 = vmatpush2.msra.mxu0 0.0
    %1513 = vmatprep.subr.mxu0 0.0
    %1514 = vmatpush2.msra.mxu0 0.0
    %1515 = vmatprep.mubr.f32.mxu0 0.0
    %1516 = vmatmul.mubr.f32.gmra.mxu0 %v1449
    %v1517 = vpop.f32.mrf.mxu0
    %v1518 = vadd.f32 0.0, %v1517
    %v1519 = vpop.f32.mrf.mxu0
    %1520 = vdwg.mxu0
    %1521 = vrot.lane.b32.xlu0 %v571, 64
    %v1522 = vpop.permute.xlu0 %1521
    %v1525 = vsel %vm582, %v1288, 0
    %1527 = vmatprep.subr.mxu0 0.0
    %1528 = vmatpush1.msra.mxu0 0.0
    %1529 = vmatprep.subr.mxu0 0.0
    %1530 = vmatpush1.msra.mxu0 0.0
    %1531 = vmatprep.subr.mxu0 0.0
    %1532 = vmatpush1.msra.mxu0 0.0
    %1533 = vmatprep.subr.mxu0 0.0
    %1534 = vmatpush1.msra.mxu0 0.0
    %1535 = vmatprep.subr.mxu0 0.0
    %1536 = vmatpush1.msra.mxu0 0.0
    %1537 = vmatprep.subr.mxu0 0.0
    %1538 = vmatpush1.msra.mxu0 0.0
    %1539 = vmatprep.subr.mxu0 0.0
    %1540 = vmatpush1.msra.mxu0 0.0
    %1541 = vmatprep.subr.mxu0 0.0
    %1542 = vmatpush1.msra.mxu0 0.0
    %1543 = vmatprep.subr.mxu0 0.0
    %1544 = vmatpush1.msra.mxu0 0.0
    %1545 = vmatprep.subr.mxu0 0.0
    %1546 = vmatpush1.msra.mxu0 0.0
    %1547 = vmatprep.subr.mxu0 0.0
    %1548 = vmatpush1.msra.mxu0 0.0
    %1549 = vmatprep.subr.mxu0 0.0
    %1550 = vmatpush1.msra.mxu0 0.0
    %1551 = vmatprep.subr.mxu0 0.0
    %1552 = vmatpush1.msra.mxu0 0.0
    %1553 = vmatprep.subr.mxu0 0.0
    %1554 = vmatpush1.msra.mxu0 0.0
    %1555 = vmatprep.subr.mxu0 0.0
    %1556 = vmatpush1.msra.mxu0 0.0
    %1557 = vmatprep.subr.mxu0 0.0
    %1558 = vmatpush1.msra.mxu0 %v1522
    %1559 = vmatprep.subr.mxu0 0.0
    %1560 = vmatpush2.msra.mxu0 0.0
    %1561 = vmatprep.subr.mxu0 0.0
    %1562 = vmatpush2.msra.mxu0 0.0
    %1563 = vmatprep.subr.mxu0 0.0
    %1564 = vmatpush2.msra.mxu0 0.0
    %1565 = vmatprep.subr.mxu0 0.0
    %1566 = vmatpush2.msra.mxu0 0.0
    %1567 = vmatprep.subr.mxu0 0.0
    %1568 = vmatpush2.msra.mxu0 0.0
    %1569 = vmatprep.subr.mxu0 0.0
    %1570 = vmatpush2.msra.mxu0 0.0
    %1571 = vmatprep.subr.mxu0 0.0
    %1572 = vmatpush2.msra.mxu0 0.0
    %1573 = vmatprep.subr.mxu0 0.0
    %1574 = vmatpush2.msra.mxu0 0.0
    %1575 = vmatprep.subr.mxu0 0.0
    %1576 = vmatpush2.msra.mxu0 0.0
    %1577 = vmatprep.subr.mxu0 0.0
    %1578 = vmatpush2.msra.mxu0 0.0
    %1579 = vmatprep.subr.mxu0 0.0
    %1580 = vmatpush2.msra.mxu0 0.0
    %1581 = vmatprep.subr.mxu0 0.0
    %1582 = vmatpush2.msra.mxu0 0.0
    %1583 = vmatprep.subr.mxu0 0.0
    %1584 = vmatpush2.msra.mxu0 0.0
    %1585 = vmatprep.subr.mxu0 0.0
    %1586 = vmatpush2.msra.mxu0 0.0
    %1587 = vmatprep.subr.mxu0 0.0
    %1588 = vmatpush2.msra.mxu0 0.0
    %1589 = vmatprep.subr.mxu0 0.0
    %1590 = vmatpush2.msra.mxu0 0.0
    %1591 = vmatprep.mubr.f32.mxu0 0.0
    %1592 = vmatmul.mubr.f32.gmra.mxu0 %v1525
    %v1593 = vpop.f32.mrf.mxu0
    %v1594 = vadd.f32 0.0, %v1593
    %v1595 = vpop.f32.mrf.mxu0
    %1596 = vdwg.mxu0
    %1597 = vrot.lane.b32.xlu0 %v573, 64
    %v1598 = vpop.permute.xlu0 %1597
    %v1601 = vsel %vm582, %v1289, 0
    %1603 = vmatprep.subr.mxu0 0.0
    %1604 = vmatpush1.msra.mxu0 0.0
    %1605 = vmatprep.subr.mxu0 0.0
    %1606 = vmatpush1.msra.mxu0 0.0
    %1607 = vmatprep.subr.mxu0 0.0
    %1608 = vmatpush1.msra.mxu0 0.0
    %1609 = vmatprep.subr.mxu0 0.0
    %1610 = vmatpush1.msra.mxu0 0.0
    %1611 = vmatprep.subr.mxu0 0.0
    %1612 = vmatpush1.msra.mxu0 0.0
    %1613 = vmatprep.subr.mxu0 0.0
    %1614 = vmatpush1.msra.mxu0 0.0
    %1615 = vmatprep.subr.mxu0 0.0
    %1616 = vmatpush1.msra.mxu0 0.0
    %1617 = vmatprep.subr.mxu0 0.0
    %1618 = vmatpush1.msra.mxu0 0.0
    %1619 = vmatprep.subr.mxu0 0.0
    %1620 = vmatpush1.msra.mxu0 0.0
    %1621 = vmatprep.subr.mxu0 0.0
    %1622 = vmatpush1.msra.mxu0 0.0
    %1623 = vmatprep.subr.mxu0 0.0
    %1624 = vmatpush1.msra.mxu0 0.0
    %1625 = vmatprep.subr.mxu0 0.0
    %1626 = vmatpush1.msra.mxu0 0.0
    %1627 = vmatprep.subr.mxu0 0.0
    %1628 = vmatpush1.msra.mxu0 0.0
    %1629 = vmatprep.subr.mxu0 0.0
    %1630 = vmatpush1.msra.mxu0 0.0
    %1631 = vmatprep.subr.mxu0 0.0
    %1632 = vmatpush1.msra.mxu0 0.0
    %1633 = vmatprep.subr.mxu0 0.0
    %1634 = vmatpush1.msra.mxu0 %v1598
    %1635 = vmatprep.subr.mxu0 0.0
    %1636 = vmatpush2.msra.mxu0 0.0
    %1637 = vmatprep.subr.mxu0 0.0
    %1638 = vmatpush2.msra.mxu0 0.0
    %1639 = vmatprep.subr.mxu0 0.0
    %1640 = vmatpush2.msra.mxu0 0.0
    %1641 = vmatprep.subr.mxu0 0.0
    %1642 = vmatpush2.msra.mxu0 0.0
    %1643 = vmatprep.subr.mxu0 0.0
    %1644 = vmatpush2.msra.mxu0 0.0
    %1645 = vmatprep.subr.mxu0 0.0
    %1646 = vmatpush2.msra.mxu0 0.0
    %1647 = vmatprep.subr.mxu0 0.0
    %1648 = vmatpush2.msra.mxu0 0.0
    %1649 = vmatprep.subr.mxu0 0.0
    %1650 = vmatpush2.msra.mxu0 0.0
    %1651 = vmatprep.subr.mxu0 0.0
    %1652 = vmatpush2.msra.mxu0 0.0
    %1653 = vmatprep.subr.mxu0 0.0
    %1654 = vmatpush2.msra.mxu0 0.0
    %1655 = vmatprep.subr.mxu0 0.0
    %1656 = vmatpush2.msra.mxu0 0.0
    %1657 = vmatprep.subr.mxu0 0.0
    %1658 = vmatpush2.msra.mxu0 0.0
    %1659 = vmatprep.subr.mxu0 0.0
    %1660 = vmatpush2.msra.mxu0 0.0
    %1661 = vmatprep.subr.mxu0 0.0
    %1662 = vmatpush2.msra.mxu0 0.0
    %1663 = vmatprep.subr.mxu0 0.0
    %1664 = vmatpush2.msra.mxu0 0.0
    %1665 = vmatprep.subr.mxu0 0.0
    %1666 = vmatpush2.msra.mxu0 0.0
    %1667 = vmatprep.mubr.f32.mxu0 0.0
    %1668 = vmatmul.mubr.f32.gmra.mxu0 %v1601
    %v1669 = vpop.f32.mrf.mxu0
    %v1670 = vadd.f32 0.0, %v1669
    %v1671 = vpop.f32.mrf.mxu0
    %1672 = vdwg.mxu0
    %1673 = vrot.lane.b32.xlu0 %v575, 64
    %v1674 = vpop.permute.xlu0 %1673
    %v1677 = vsel %vm582, %v1290, 0
    %1679 = vmatprep.subr.mxu0 0.0
    %1680 = vmatpush1.msra.mxu0 0.0
    %1681 = vmatprep.subr.mxu0 0.0
    %1682 = vmatpush1.msra.mxu0 0.0
    %1683 = vmatprep.subr.mxu0 0.0
    %1684 = vmatpush1.msra.mxu0 0.0
    %1685 = vmatprep.subr.mxu0 0.0
    %1686 = vmatpush1.msra.mxu0 0.0
    %1687 = vmatprep.subr.mxu0 0.0
    %1688 = vmatpush1.msra.mxu0 0.0
    %1689 = vmatprep.subr.mxu0 0.0
    %1690 = vmatpush1.msra.mxu0 0.0
    %1691 = vmatprep.subr.mxu0 0.0
    %1692 = vmatpush1.msra.mxu0 0.0
    %1693 = vmatprep.subr.mxu0 0.0
    %1694 = vmatpush1.msra.mxu0 0.0
    %1695 = vmatprep.subr.mxu0 0.0
    %1696 = vmatpush1.msra.mxu0 0.0
    %1697 = vmatprep.subr.mxu0 0.0
    %1698 = vmatpush1.msra.mxu0 0.0
    %1699 = vmatprep.subr.mxu0 0.0
    %1700 = vmatpush1.msra.mxu0 0.0
    %1701 = vmatprep.subr.mxu0 0.0
    %1702 = vmatpush1.msra.mxu0 0.0
    %1703 = vmatprep.subr.mxu0 0.0
    %1704 = vmatpush1.msra.mxu0 0.0
    %1705 = vmatprep.subr.mxu0 0.0
    %1706 = vmatpush1.msra.mxu0 0.0
    %1707 = vmatprep.subr.mxu0 0.0
    %1708 = vmatpush1.msra.mxu0 0.0
    %1709 = vmatprep.subr.mxu0 0.0
    %1710 = vmatpush1.msra.mxu0 %v1674
    %1711 = vmatprep.subr.mxu0 0.0
    %1712 = vmatpush2.msra.mxu0 0.0
    %1713 = vmatprep.subr.mxu0 0.0
    %1714 = vmatpush2.msra.mxu0 0.0
    %1715 = vmatprep.subr.mxu0 0.0
    %1716 = vmatpush2.msra.mxu0 0.0
    %1717 = vmatprep.subr.mxu0 0.0
    %1718 = vmatpush2.msra.mxu0 0.0
    %1719 = vmatprep.subr.mxu0 0.0
    %1720 = vmatpush2.msra.mxu0 0.0
    %1721 = vmatprep.subr.mxu0 0.0
    %1722 = vmatpush2.msra.mxu0 0.0
    %1723 = vmatprep.subr.mxu0 0.0
    %1724 = vmatpush2.msra.mxu0 0.0
    %1725 = vmatprep.subr.mxu0 0.0
    %1726 = vmatpush2.msra.mxu0 0.0
    %1727 = vmatprep.subr.mxu0 0.0
    %1728 = vmatpush2.msra.mxu0 0.0
    %1729 = vmatprep.subr.mxu0 0.0
    %1730 = vmatpush2.msra.mxu0 0.0
    %1731 = vmatprep.subr.mxu0 0.0
    %1732 = vmatpush2.msra.mxu0 0.0
    %1733 = vmatprep.subr.mxu0 0.0
    %1734 = vmatpush2.msra.mxu0 0.0
    %1735 = vmatprep.subr.mxu0 0.0
    %1736 = vmatpush2.msra.mxu0 0.0
    %1737 = vmatprep.subr.mxu0 0.0
    %1738 = vmatpush2.msra.mxu0 0.0
    %1739 = vmatprep.subr.mxu0 0.0
    %1740 = vmatpush2.msra.mxu0 0.0
    %1741 = vmatprep.subr.mxu0 0.0
    %1742 = vmatpush2.msra.mxu0 0.0
    %1743 = vmatprep.mubr.f32.mxu0 0.0
    %1744 = vmatmul.mubr.f32.gmra.mxu0 %v1677
    %v1745 = vpop.f32.mrf.mxu0
    %v1746 = vadd.f32 0.0, %v1745
    %v1747 = vpop.f32.mrf.mxu0
    %1748 = vdwg.mxu0
    %1749 = vrot.lane.b32.xlu0 %v577, 64
    %v1750 = vpop.permute.xlu0 %1749
    %v1753 = vsel %vm582, %v1291, 0
    %1755 = vmatprep.subr.mxu0 0.0
    %1756 = vmatpush1.msra.mxu0 0.0
    %1757 = vmatprep.subr.mxu0 0.0
    %1758 = vmatpush1.msra.mxu0 0.0
    %1759 = vmatprep.subr.mxu0 0.0
    %1760 = vmatpush1.msra.mxu0 0.0
    %1761 = vmatprep.subr.mxu0 0.0
    %1762 = vmatpush1.msra.mxu0 0.0
    %1763 = vmatprep.subr.mxu0 0.0
    %1764 = vmatpush1.msra.mxu0 0.0
    %1765 = vmatprep.subr.mxu0 0.0
    %1766 = vmatpush1.msra.mxu0 0.0
    %1767 = vmatprep.subr.mxu0 0.0
    %1768 = vmatpush1.msra.mxu0 0.0
    %1769 = vmatprep.subr.mxu0 0.0
    %1770 = vmatpush1.msra.mxu0 0.0
    %1771 = vmatprep.subr.mxu0 0.0
    %1772 = vmatpush1.msra.mxu0 0.0
    %1773 = vmatprep.subr.mxu0 0.0
    %1774 = vmatpush1.msra.mxu0 0.0
    %1775 = vmatprep.subr.mxu0 0.0
    %1776 = vmatpush1.msra.mxu0 0.0
    %1777 = vmatprep.subr.mxu0 0.0
    %1778 = vmatpush1.msra.mxu0 0.0
    %1779 = vmatprep.subr.mxu0 0.0
    %1780 = vmatpush1.msra.mxu0 0.0
    %1781 = vmatprep.subr.mxu0 0.0
    %1782 = vmatpush1.msra.mxu0 0.0
    %1783 = vmatprep.subr.mxu0 0.0
    %1784 = vmatpush1.msra.mxu0 0.0
    %1785 = vmatprep.subr.mxu0 0.0
    %1786 = vmatpush1.msra.mxu0 %v1750
    %1787 = vmatprep.subr.mxu0 0.0
    %1788 = vmatpush2.msra.mxu0 0.0
    %1789 = vmatprep.subr.mxu0 0.0
    %1790 = vmatpush2.msra.mxu0 0.0
    %1791 = vmatprep.subr.mxu0 0.0
    %1792 = vmatpush2.msra.mxu0 0.0
    %1793 = vmatprep.subr.mxu0 0.0
    %1794 = vmatpush2.msra.mxu0 0.0
    %1795 = vmatprep.subr.mxu0 0.0
    %1796 = vmatpush2.msra.mxu0 0.0
    %1797 = vmatprep.subr.mxu0 0.0
    %1798 = vmatpush2.msra.mxu0 0.0
    %1799 = vmatprep.subr.mxu0 0.0
    %1800 = vmatpush2.msra.mxu0 0.0
    %1801 = vmatprep.subr.mxu0 0.0
    %1802 = vmatpush2.msra.mxu0 0.0
    %1803 = vmatprep.subr.mxu0 0.0
    %1804 = vmatpush2.msra.mxu0 0.0
    %1805 = vmatprep.subr.mxu0 0.0
    %1806 = vmatpush2.msra.mxu0 0.0
    %1807 = vmatprep.subr.mxu0 0.0
    %1808 = vmatpush2.msra.mxu0 0.0
    %1809 = vmatprep.subr.mxu0 0.0
    %1810 = vmatpush2.msra.mxu0 0.0
    %1811 = vmatprep.subr.mxu0 0.0
    %1812 = vmatpush2.msra.mxu0 0.0
    %1813 = vmatprep.subr.mxu0 0.0
    %1814 = vmatpush2.msra.mxu0 0.0
    %1815 = vmatprep.subr.mxu0 0.0
    %1816 = vmatpush2.msra.mxu0 0.0
    %1817 = vmatprep.subr.mxu0 0.0
    %1818 = vmatpush2.msra.mxu0 0.0
    %1819 = vmatprep.mubr.f32.mxu0 0.0
    %1820 = vmatmul.mubr.f32.gmra.mxu0 %v1753
    %v1821 = vpop.f32.mrf.mxu0
    %v1822 = vadd.f32 0.0, %v1821
    %v1823 = vpop.f32.mrf.mxu0
    %1824 = vdwg.mxu0
    %1825 = vrot.lane.b32.xlu0 %v579, 64
    %v1826 = vpop.permute.xlu0 %1825
    %v1829 = vsel %vm582, %v1292, 0
    %1831 = vmatprep.subr.mxu0 0.0
    %1832 = vmatpush1.msra.mxu0 0.0
    %1833 = vmatprep.subr.mxu0 0.0
    %1834 = vmatpush1.msra.mxu0 0.0
    %1835 = vmatprep.subr.mxu0 0.0
    %1836 = vmatpush1.msra.mxu0 0.0
    %1837 = vmatprep.subr.mxu0 0.0
    %1838 = vmatpush1.msra.mxu0 0.0
    %1839 = vmatprep.subr.mxu0 0.0
    %1840 = vmatpush1.msra.mxu0 0.0
    %1841 = vmatprep.subr.mxu0 0.0
    %1842 = vmatpush1.msra.mxu0 0.0
    %1843 = vmatprep.subr.mxu0 0.0
    %1844 = vmatpush1.msra.mxu0 0.0
    %1845 = vmatprep.subr.mxu0 0.0
    %1846 = vmatpush1.msra.mxu0 0.0
    %1847 = vmatprep.subr.mxu0 0.0
    %1848 = vmatpush1.msra.mxu0 0.0
    %1849 = vmatprep.subr.mxu0 0.0
    %1850 = vmatpush1.msra.mxu0 0.0
    %1851 = vmatprep.subr.mxu0 0.0
    %1852 = vmatpush1.msra.mxu0 0.0
    %1853 = vmatprep.subr.mxu0 0.0
    %1854 = vmatpush1.msra.mxu0 0.0
    %1855 = vmatprep.subr.mxu0 0.0
    %1856 = vmatpush1.msra.mxu0 0.0
    %1857 = vmatprep.subr.mxu0 0.0
    %1858 = vmatpush1.msra.mxu0 0.0
    %1859 = vmatprep.subr.mxu0 0.0
    %1860 = vmatpush1.msra.mxu0 0.0
    %1861 = vmatprep.subr.mxu0 0.0
    %1862 = vmatpush1.msra.mxu0 %v1826
    %1863 = vmatprep.subr.mxu0 0.0
    %1864 = vmatpush2.msra.mxu0 0.0
    %1865 = vmatprep.subr.mxu0 0.0
    %1866 = vmatpush2.msra.mxu0 0.0
    %1867 = vmatprep.subr.mxu0 0.0
    %1868 = vmatpush2.msra.mxu0 0.0
    %1869 = vmatprep.subr.mxu0 0.0
    %1870 = vmatpush2.msra.mxu0 0.0
    %1871 = vmatprep.subr.mxu0 0.0
    %1872 = vmatpush2.msra.mxu0 0.0
    %1873 = vmatprep.subr.mxu0 0.0
    %1874 = vmatpush2.msra.mxu0 0.0
    %1875 = vmatprep.subr.mxu0 0.0
    %1876 = vmatpush2.msra.mxu0 0.0
    %1877 = vmatprep.subr.mxu0 0.0
    %1878 = vmatpush2.msra.mxu0 0.0
    %1879 = vmatprep.subr.mxu0 0.0
    %1880 = vmatpush2.msra.mxu0 0.0
    %1881 = vmatprep.subr.mxu0 0.0
    %1882 = vmatpush2.msra.mxu0 0.0
    %1883 = vmatprep.subr.mxu0 0.0
    %1884 = vmatpush2.msra.mxu0 0.0
    %1885 = vmatprep.subr.mxu0 0.0
    %1886 = vmatpush2.msra.mxu0 0.0
    %1887 = vmatprep.subr.mxu0 0.0
    %1888 = vmatpush2.msra.mxu0 0.0
    %1889 = vmatprep.subr.mxu0 0.0
    %1890 = vmatpush2.msra.mxu0 0.0
    %1891 = vmatprep.subr.mxu0 0.0
    %1892 = vmatpush2.msra.mxu0 0.0
    %1893 = vmatprep.subr.mxu0 0.0
    %1894 = vmatpush2.msra.mxu0 0.0
    %1895 = vmatprep.mubr.f32.mxu0 0.0
    %1896 = vmatmul.mubr.f32.gmra.mxu0 %v1829
    %v1897 = vpop.f32.mrf.mxu0
    %v1898 = vadd.f32 0.0, %v1897
    %v1899 = vpop.f32.mrf.mxu0
    %1900 = vdwg.mxu0
    %1903 = vrot.lane.b32.xlu0 %v1518, 8
    %v1904 = vpop.permute.xlu0 %1903
    %1905 = vrot.lane.b32.xlu0 %v1594, 8
    %v1906 = vpop.permute.xlu0 %1905
    %1911 = vrot.lane.b32.xlu0 %v1670, 16
    %v1912 = vpop.permute.xlu0 %1911
    %1913 = vrot.lane.b32.xlu0 %v1746, 16
    %v1914 = vpop.permute.xlu0 %1913
    %1919 = vrot.lane.b32.xlu0 %v1822, 24
    %v1920 = vpop.permute.xlu0 %1919
    %1921 = vrot.lane.b32.xlu0 %v1898, 24
    %v1922 = vpop.permute.xlu0 %1921
    %v1925 = vsel %vm582, %v1366, %v1904
    %v1926 = vsel %vm582, %v1442, %v1906
    %vm1927 = vcmask 130048
    %v1928 = vsel %vm1927, %v1925, %v1912
    %v1929 = vsel %vm1927, %v1926, %v1914
    %vm1930 = vcmask 195584
    %v1931 = vsel %vm1930, %v1928, %v1920
    %v1932 = vsel %vm1930, %v1929, %v1922
    %v1934 = vsel %vm148, %v1931, 0
    %v1937 = vsel %vm148, %v1932, 0
    %1939 = vmatprep.subr.mxu0 0.0
    %1940 = vmatpush1.msra.mxu0 0.0
    %1941 = vmatprep.subr.mxu0 0.0
    %1942 = vmatpush1.msra.mxu0 0.0
    %1943 = vmatprep.subr.mxu0 0.0
    %1944 = vmatpush1.msra.mxu0 0.0
    %1945 = vmatprep.subr.mxu0 0.0
    %1946 = vmatpush1.msra.mxu0 0.0
    %1947 = vmatprep.subr.mxu0 0.0
    %1948 = vmatpush1.msra.mxu0 0.0
    %1949 = vmatprep.subr.mxu0 0.0
    %1950 = vmatpush1.msra.mxu0 0.0
    %1951 = vmatprep.subr.mxu0 0.0
    %1952 = vmatpush1.msra.mxu0 0.0
    %1953 = vmatprep.subr.mxu0 0.0
    %1954 = vmatpush1.msra.mxu0 0.0
    %1955 = vmatprep.subr.mxu0 0.0
    %1956 = vmatpush1.msra.mxu0 0.0
    %1957 = vmatprep.subr.mxu0 0.0
    %1958 = vmatpush1.msra.mxu0 0.0
    %1959 = vmatprep.subr.mxu0 0.0
    %1960 = vmatpush1.msra.mxu0 0.0
    %1961 = vmatprep.subr.mxu0 0.0
    %1962 = vmatpush1.msra.mxu0 0.0
    %1963 = vmatprep.subr.mxu0 0.0
    %1964 = vmatpush1.msra.mxu0 %v111
    %1965 = vmatprep.subr.mxu0 0.0
    %1966 = vmatpush1.msra.mxu0 %v110
    %1967 = vmatprep.subr.mxu0 0.0
    %1968 = vmatpush1.msra.mxu0 %v109
    %1969 = vmatprep.subr.mxu0 0.0
    %1970 = vmatpush1.msra.mxu0 %v108
    %1971 = vmatprep.subr.mxu0 0.0
    %1972 = vmatpush2.msra.mxu0 0.0
    %1973 = vmatprep.subr.mxu0 0.0
    %1974 = vmatpush2.msra.mxu0 0.0
    %1975 = vmatprep.subr.mxu0 0.0
    %1976 = vmatpush2.msra.mxu0 0.0
    %1977 = vmatprep.subr.mxu0 0.0
    %1978 = vmatpush2.msra.mxu0 0.0
    %1979 = vmatprep.subr.mxu0 0.0
    %1980 = vmatpush2.msra.mxu0 0.0
    %1981 = vmatprep.subr.mxu0 0.0
    %1982 = vmatpush2.msra.mxu0 0.0
    %1983 = vmatprep.subr.mxu0 0.0
    %1984 = vmatpush2.msra.mxu0 0.0
    %1985 = vmatprep.subr.mxu0 0.0
    %1986 = vmatpush2.msra.mxu0 0.0
    %1987 = vmatprep.subr.mxu0 0.0
    %1988 = vmatpush2.msra.mxu0 0.0
    %1989 = vmatprep.subr.mxu0 0.0
    %1990 = vmatpush2.msra.mxu0 0.0
    %1991 = vmatprep.subr.mxu0 0.0
    %1992 = vmatpush2.msra.mxu0 0.0
    %1993 = vmatprep.subr.mxu0 0.0
    %1994 = vmatpush2.msra.mxu0 0.0
    %1995 = vmatprep.subr.mxu0 0.0
    %1996 = vmatpush2.msra.mxu0 0.0
    %1997 = vmatprep.subr.mxu0 0.0
    %1998 = vmatpush2.msra.mxu0 0.0
    %1999 = vmatprep.subr.mxu0 0.0
    %2000 = vmatpush2.msra.mxu0 0.0
    %2001 = vmatprep.subr.mxu0 0.0
    %2002 = vmatpush2.msra.mxu0 0.0
    %2003 = vmatprep.mubr.f32.mxu0 0.0
    %2004 = vmatmul.mubr.f32.gmra.mxu0 %v1934
    %v2005 = vpop.f32.mrf.mxu0
    %v2006 = vadd.f32 0.0, %v2005
    %v2007 = vpop.f32.mrf.mxu0
    %2008 = vmatprep.mubr.f32.mxu0 0.0
    %2009 = vmatmul.mubr.f32.gmra.mxu0 %v1937
    %v2010 = vpop.f32.mrf.mxu0
    %v2011 = vadd.f32 0.0, %v2010
    %v2012 = vpop.f32.mrf.mxu0
    %2013 = vdwg.mxu0
    %v2014 = vadd.f32 %v91, %v2006
    %v2015 = vadd.f32 %v92, %v2011
    %v2017 = vlaneseq
    %v2018 = vshrl.u32 %v2017, 7
    %v2019 = vsub.s32 0, %v2018
    %v2020 = vrot.slane %v112, %v2019
    %v2022 = vadd.f32 %v2014, %v2020
    %v2023 = vadd.f32 %v2015, %v2020
    %v2024 = vsel %vm148, %v2022, 0.0
    %2025 = vadd.xlane.f32.xlu0 %v2024
    %v2026 = vpop.xlane.xlu0 %2025
    %v2027 = vsel %vm148, %v2023, 0.0
    %2028 = vadd.xlane.f32.xlu0 %v2027
    %v2029 = vpop.xlane.xlu0 %2028
    %v2030 = vmul.f32 %v2026, %v442
    %v2031 = vmul.f32 %v2029, %v442
    %v2032 = vsub.f32 %v2022, %v2030
    %v2033 = vsub.f32 %v2023, %v2031
    %v2034 = vmul.f32 %v2032, %v2032
    %v2035 = vmul.f32 %v2033, %v2033
    %v2036 = vsel %vm148, %v2034, 0.0
    %2037 = vadd.xlane.f32.xlu0 %v2036
    %v2038 = vpop.xlane.xlu0 %2037
    %v2039 = vsel %vm148, %v2035, 0.0
    %2040 = vadd.xlane.f32.xlu0 %v2039
    %v2041 = vpop.xlane.xlu0 %2040
    %v2042 = vmul.f32 %v2038, %v442
    %v2043 = vmul.f32 %v2041, %v442
    %v2044 = vadd.f32 %v2042, 1e-05
    %v2045 = vadd.f32 %v2043, 1e-05
    %v2046 = vrsqrt.pop %v2044
    %v2047 = vrsqrt.pop %v2045
    %v2048 = vmul.f32 %v2032, %v2046
    %v2049 = vmul.f32 %v2033, %v2047
    %v2051 = vlaneseq
    %v2052 = vshrl.u32 %v2051, 7
    %v2053 = vsub.s32 0, %v2052
    %v2054 = vrot.slane %v113, %v2053
    %v2056 = vmul.f32 %v2048, %v2054
    %v2057 = vmul.f32 %v2049, %v2054
    %v2059 = vlaneseq
    %v2060 = vshrl.u32 %v2059, 7
    %v2061 = vsub.s32 0, %v2060
    %v2062 = vrot.slane %v114, %v2061
    %v2064 = vadd.f32 %v2056, %v2062
    %v2065 = vadd.f32 %v2057, %v2062
    %v2067 = vlaneseq
    %v2068 = vshrl.u32 %v2067, 7
    %v2069 = vsub.s32 0, %v2068
    %v2070 = vrot.slane %v119, %v2069
    %v2073 = vsel %vm148, %v2064, 0
    %v2076 = vsel %vm148, %v2065, 0
    %2078 = vmatprep.subr.mxu0 0.0
    %2079 = vmatpush1.msra.mxu0 0.0
    %2080 = vmatprep.subr.mxu0 0.0
    %2081 = vmatpush1.msra.mxu0 0.0
    %2082 = vmatprep.subr.mxu0 0.0
    %2083 = vmatpush1.msra.mxu0 0.0
    %2084 = vmatprep.subr.mxu0 0.0
    %2085 = vmatpush1.msra.mxu0 0.0
    %2086 = vmatprep.subr.mxu0 0.0
    %2087 = vmatpush1.msra.mxu0 0.0
    %2088 = vmatprep.subr.mxu0 0.0
    %2089 = vmatpush1.msra.mxu0 0.0
    %2090 = vmatprep.subr.mxu0 0.0
    %2091 = vmatpush1.msra.mxu0 0.0
    %2092 = vmatprep.subr.mxu0 0.0
    %2093 = vmatpush1.msra.mxu0 0.0
    %2094 = vmatprep.subr.mxu0 0.0
    %2095 = vmatpush1.msra.mxu0 0.0
    %2096 = vmatprep.subr.mxu0 0.0
    %2097 = vmatpush1.msra.mxu0 0.0
    %2098 = vmatprep.subr.mxu0 0.0
    %2099 = vmatpush1.msra.mxu0 0.0
    %2100 = vmatprep.subr.mxu0 0.0
    %2101 = vmatpush1.msra.mxu0 0.0
    %2102 = vmatprep.subr.mxu0 0.0
    %2103 = vmatpush1.msra.mxu0 %v118
    %2104 = vmatprep.subr.mxu0 0.0
    %2105 = vmatpush1.msra.mxu0 %v117
    %2106 = vmatprep.subr.mxu0 0.0
    %2107 = vmatpush1.msra.mxu0 %v116
    %2108 = vmatprep.subr.mxu0 0.0
    %2109 = vmatpush1.msra.mxu0 %v115
    %2110 = vmatprep.subr.mxu0 0.0
    %2111 = vmatpush2.msra.mxu0 0.0
    %2112 = vmatprep.subr.mxu0 0.0
    %2113 = vmatpush2.msra.mxu0 0.0
    %2114 = vmatprep.subr.mxu0 0.0
    %2115 = vmatpush2.msra.mxu0 0.0
    %2116 = vmatprep.subr.mxu0 0.0
    %2117 = vmatpush2.msra.mxu0 0.0
    %2118 = vmatprep.subr.mxu0 0.0
    %2119 = vmatpush2.msra.mxu0 0.0
    %2120 = vmatprep.subr.mxu0 0.0
    %2121 = vmatpush2.msra.mxu0 0.0
    %2122 = vmatprep.subr.mxu0 0.0
    %2123 = vmatpush2.msra.mxu0 0.0
    %2124 = vmatprep.subr.mxu0 0.0
    %2125 = vmatpush2.msra.mxu0 0.0
    %2126 = vmatprep.subr.mxu0 0.0
    %2127 = vmatpush2.msra.mxu0 0.0
    %2128 = vmatprep.subr.mxu0 0.0
    %2129 = vmatpush2.msra.mxu0 0.0
    %2130 = vmatprep.subr.mxu0 0.0
    %2131 = vmatpush2.msra.mxu0 0.0
    %2132 = vmatprep.subr.mxu0 0.0
    %2133 = vmatpush2.msra.mxu0 0.0
    %2134 = vmatprep.subr.mxu0 0.0
    %2135 = vmatpush2.msra.mxu0 0.0
    %2136 = vmatprep.subr.mxu0 0.0
    %2137 = vmatpush2.msra.mxu0 0.0
    %2138 = vmatprep.subr.mxu0 0.0
    %2139 = vmatpush2.msra.mxu0 0.0
    %2140 = vmatprep.subr.mxu0 0.0
    %2141 = vmatpush2.msra.mxu0 0.0
    %2142 = vmatprep.mubr.f32.mxu0 0.0
    %2143 = vmatmul.mubr.f32.gmra.mxu0 %v2073
    %v2144 = vpop.f32.mrf.mxu0
    %v2145 = vadd.f32 %v2070, %v2144
    %v2146 = vpop.f32.mrf.mxu0
    %2147 = vmatprep.mubr.f32.mxu0 0.0
    %2148 = vmatmul.mubr.f32.gmra.mxu0 %v2076
    %v2149 = vpop.f32.mrf.mxu0
    %v2150 = vadd.f32 %v2070, %v2149
    %v2151 = vpop.f32.mrf.mxu0
    %2152 = vdwg.mxu0
    %v2153 = vmul.f32 %v2145, 0.5
    %v2154 = vmul.f32 %v2150, 0.5
    %v2155 = vmul.f32 %v2145, 0.044715
    %v2156 = vmul.f32 %v2150, 0.044715
    %v2157 = vmul.f32 %v2155, %v2145
    %v2158 = vmul.f32 %v2156, %v2150
    %v2159 = vmul.f32 %v2157, %v2145
    %v2160 = vmul.f32 %v2158, %v2150
    %v2161 = vadd.f32 %v2145, %v2159
    %v2162 = vadd.f32 %v2150, %v2160
    %v2163 = vmul.f32 %v2161, 0.7978846
    %v2164 = vmul.f32 %v2162, 0.7978846
    %v2165 = vtanh.pop %v2163
    %v2166 = vtanh.pop %v2164
    %v2167 = vadd.f32 %v2165, 1.0
    %v2168 = vadd.f32 %v2166, 1.0
    %v2169 = vmul.f32 %v2153, %v2167
    %v2170 = vmul.f32 %v2154, %v2168
    %2171 = vmatprep.subr.mxu0 0.0
    %2172 = vmatpush1.msra.mxu0 %v135
    %2173 = vmatprep.subr.mxu0 0.0
    %2174 = vmatpush1.msra.mxu0 %v134
    %2175 = vmatprep.subr.mxu0 0.0
    %2176 = vmatpush1.msra.mxu0 %v133
    %2177 = vmatprep.subr.mxu0 0.0
    %2178 = vmatpush1.msra.mxu0 %v132
    %2179 = vmatprep.subr.mxu0 0.0
    %2180 = vmatpush1.msra.mxu0 %v131
    %2181 = vmatprep.subr.mxu0 0.0
    %2182 = vmatpush1.msra.mxu0 %v130
    %2183 = vmatprep.subr.mxu0 0.0
    %2184 = vmatpush1.msra.mxu0 %v129
    %2185 = vmatprep.subr.mxu0 0.0
    %2186 = vmatpush1.msra.mxu0 %v128
    %2187 = vmatprep.subr.mxu0 0.0
    %2188 = vmatpush1.msra.mxu0 %v127
    %2189 = vmatprep.subr.mxu0 0.0
    %2190 = vmatpush1.msra.mxu0 %v126
    %2191 = vmatprep.subr.mxu0 0.0
    %2192 = vmatpush1.msra.mxu0 %v125
    %2193 = vmatprep.subr.mxu0 0.0
    %2194 = vmatpush1.msra.mxu0 %v124
    %2195 = vmatprep.subr.mxu0 0.0
    %2196 = vmatpush1.msra.mxu0 %v123
    %2197 = vmatprep.subr.mxu0 0.0
    %2198 = vmatpush1.msra.mxu0 %v122
    %2199 = vmatprep.subr.mxu0 0.0
    %2200 = vmatpush1.msra.mxu0 %v121
    %2201 = vmatprep.subr.mxu0 0.0
    %2202 = vmatpush1.msra.mxu0 %v120
    %2203 = vmatprep.subr.mxu0 0.0
    %2204 = vmatpush2.msra.mxu0 0.0
    %2205 = vmatprep.subr.mxu0 0.0
    %2206 = vmatpush2.msra.mxu0 0.0
    %2207 = vmatprep.subr.mxu0 0.0
    %2208 = vmatpush2.msra.mxu0 0.0
    %2209 = vmatprep.subr.mxu0 0.0
    %2210 = vmatpush2.msra.mxu0 0.0
    %2211 = vmatprep.subr.mxu0 0.0
    %2212 = vmatpush2.msra.mxu0 0.0
    %2213 = vmatprep.subr.mxu0 0.0
    %2214 = vmatpush2.msra.mxu0 0.0
    %2215 = vmatprep.subr.mxu0 0.0
    %2216 = vmatpush2.msra.mxu0 0.0
    %2217 = vmatprep.subr.mxu0 0.0
    %2218 = vmatpush2.msra.mxu0 0.0
    %2219 = vmatprep.subr.mxu0 0.0
    %2220 = vmatpush2.msra.mxu0 0.0
    %2221 = vmatprep.subr.mxu0 0.0
    %2222 = vmatpush2.msra.mxu0 0.0
    %2223 = vmatprep.subr.mxu0 0.0
    %2224 = vmatpush2.msra.mxu0 0.0
    %2225 = vmatprep.subr.mxu0 0.0
    %2226 = vmatpush2.msra.mxu0 0.0
    %2227 = vmatprep.subr.mxu0 0.0
    %2228 = vmatpush2.msra.mxu0 0.0
    %2229 = vmatprep.subr.mxu0 0.0
    %2230 = vmatpush2.msra.mxu0 0.0
    %2231 = vmatprep.subr.mxu0 0.0
    %2232 = vmatpush2.msra.mxu0 0.0
    %2233 = vmatprep.subr.mxu0 0.0
    %2234 = vmatpush2.msra.mxu0 0.0
    %2235 = vmatprep.mubr.f32.mxu0 0.0
    %2236 = vmatmul.mubr.f32.gmra.mxu0 %v2169
    %v2237 = vpop.f32.mrf.mxu0
    %v2238 = vadd.f32 0.0, %v2237
    %v2239 = vpop.f32.mrf.mxu0
    %2240 = vmatprep.mubr.f32.mxu0 0.0
    %2241 = vmatmul.mubr.f32.gmra.mxu0 %v2170
    %v2242 = vpop.f32.mrf.mxu0
    %v2243 = vadd.f32 0.0, %v2242
    %v2244 = vpop.f32.mrf.mxu0
    %2245 = vdwg.mxu0
    %v2246 = vadd.f32 %v2022, %v2238
    %v2247 = vadd.f32 %v2023, %v2243
    %v2249 = vlaneseq
    %v2250 = vshrl.u32 %v2249, 7
    %v2251 = vsub.s32 0, %v2250
    %v2252 = vrot.slane %v136, %v2251
    %v2254 = vadd.f32 %v2246, %v2252
    %v2255 = vadd.f32 %v2247, %v2252
    %2257 = vset.pattern.permute.xlu0 0
    %2258 = vperm.xlu0 %2257, %v332
    %v2259 = vpop.permute.xlu0 %2258
    %2262 = vset.pattern.permute.xlu0 0
    %2263 = vperm.xlu0 %2262, %v435
    %v2264 = vpop.permute.xlu0 %2263
    %v2266 = vmul.f32 %v2254, %v2259
    %v2267 = vmul.f32 %v2255, %v2264
    %s2268 = scalar_lea.vmem %s2, 1
    %v2269 = vld [vmem:[%s2268] sm:$0x1]
    %s2270 = scalar_lea.vmem %s3, 1
    %v2271 = vld [vmem:[%s2270] sm:$0x1]
    %s2272 = scalar_lea.vmem %s4, 32
    %v2273 = vld [vmem:[%s2272] sm:$0xff]
    %v2274 = vld [vmem:[%s2272 + $0x8] sm:$0xff]
    %v2275 = vld [vmem:[%s2272 + $0x10] sm:$0xff]
    %v2276 = vld [vmem:[%s2272 + $0x18] sm:$0xff]
    %s2277 = scalar_lea.vmem %s5, 1
    %v2278 = vld [vmem:[%s2277] sm:$0x1]
    %s2279 = scalar_lea.vmem %s6, 32
    %v2280 = vld [vmem:[%s2279] sm:$0xff]
    %v2281 = vld [vmem:[%s2279 + $0x8] sm:$0xff]
    %v2282 = vld [vmem:[%s2279 + $0x10] sm:$0xff]
    %v2283 = vld [vmem:[%s2279 + $0x18] sm:$0xff]
    %s2284 = scalar_lea.vmem %s7, 1
    %v2285 = vld [vmem:[%s2284] sm:$0x1]
    %s2286 = scalar_lea.vmem %s8, 1
    %v2287 = vld [vmem:[%s2286] sm:$0x1]
    %s2288 = scalar_lea.vmem [#allocation2], 1
    %v2289 = vld [vmem:[%s2288] sm:$0x1]
    %s2290 = scalar_lea.vmem %s10, 32
    %v2291 = vld [vmem:[%s2290] sm:$0xff]
    %v2292 = vld [vmem:[%s2290 + $0x8] sm:$0xff]
    %v2293 = vld [vmem:[%s2290 + $0x10] sm:$0xff]
    %v2294 = vld [vmem:[%s2290 + $0x18] sm:$0xff]
    %s2295 = scalar_lea.vmem [#allocation5], 1
    %v2296 = vld [vmem:[%s2295] sm:$0x1]
    %s2297 = scalar_lea.vmem %s12, 128
    %v2298 = vld [vmem:[%s2297] sm:$0xff]
    %v2299 = vld [vmem:[%s2297 + $0x8] sm:$0xff]
    %v2300 = vld [vmem:[%s2297 + $0x10] sm:$0xff]
    %v2301 = vld [vmem:[%s2297 + $0x18] sm:$0xff]
    %v2302 = vld [vmem:[%s2297 + $0x20] sm:$0xff]
    %v2303 = vld [vmem:[%s2297 + $0x28] sm:$0xff]
    %v2304 = vld [vmem:[%s2297 + $0x30] sm:$0xff]
    %v2305 = vld [vmem:[%s2297 + $0x38] sm:$0xff]
    %v2306 = vld [vmem:[%s2297 + $0x40] sm:$0xff]
    %v2307 = vld [vmem:[%s2297 + $0x48] sm:$0xff]
    %v2308 = vld [vmem:[%s2297 + $0x50] sm:$0xff]
    %v2309 = vld [vmem:[%s2297 + $0x58] sm:$0xff]
    %v2310 = vld [vmem:[%s2297 + $0x60] sm:$0xff]
    %v2311 = vld [vmem:[%s2297 + $0x68] sm:$0xff]
    %v2312 = vld [vmem:[%s2297 + $0x70] sm:$0xff]
    %v2313 = vld [vmem:[%s2297 + $0x78] sm:$0xff]
    %s2314 = scalar_lea.vmem %s13, 1
    %v2315 = vld [vmem:[%s2314] sm:$0x1]
    %s2316 = scalar_lea.vmem %s14, 32
    %v2317 = vld [vmem:[%s2316] sm:$0xff]
    %v2318 = vld [vmem:[%s2316 + $0x8] sm:$0xff]
    %v2319 = vld [vmem:[%s2316 + $0x10] sm:$0xff]
    %v2320 = vld [vmem:[%s2316 + $0x18] sm:$0xff]
    %s2321 = scalar_lea.vmem %s15, 1
    %v2322 = vld [vmem:[%s2321] sm:$0x1]
    %v2324 = vlaneseq
    %v2325 = vshrl.u32 %v2324, 7
    %v2326 = vsub.s32 0, %v2325
    %v2327 = vrot.slane %v2322, %v2326
    %v2330 = vsel %vm148, %v2266, 0
    %v2333 = vsel %vm148, %v2267, 0
    %2335 = vmatprep.subr.mxu0 0.0
    %2336 = vmatpush1.msra.mxu0 0.0
    %2337 = vmatprep.subr.mxu0 0.0
    %2338 = vmatpush1.msra.mxu0 0.0
    %2339 = vmatprep.subr.mxu0 0.0
    %2340 = vmatpush1.msra.mxu0 0.0
    %2341 = vmatprep.subr.mxu0 0.0
    %2342 = vmatpush1.msra.mxu0 0.0
    %2343 = vmatprep.subr.mxu0 0.0
    %2344 = vmatpush1.msra.mxu0 0.0
    %2345 = vmatprep.subr.mxu0 0.0
    %2346 = vmatpush1.msra.mxu0 0.0
    %2347 = vmatprep.subr.mxu0 0.0
    %2348 = vmatpush1.msra.mxu0 0.0
    %2349 = vmatprep.subr.mxu0 0.0
    %2350 = vmatpush1.msra.mxu0 0.0
    %2351 = vmatprep.subr.mxu0 0.0
    %2352 = vmatpush1.msra.mxu0 0.0
    %2353 = vmatprep.subr.mxu0 0.0
    %2354 = vmatpush1.msra.mxu0 0.0
    %2355 = vmatprep.subr.mxu0 0.0
    %2356 = vmatpush1.msra.mxu0 0.0
    %2357 = vmatprep.subr.mxu0 0.0
    %2358 = vmatpush1.msra.mxu0 0.0
    %2359 = vmatprep.subr.mxu0 0.0
    %2360 = vmatpush1.msra.mxu0 %v2320
    %2361 = vmatprep.subr.mxu0 0.0
    %2362 = vmatpush1.msra.mxu0 %v2319
    %2363 = vmatprep.subr.mxu0 0.0
    %2364 = vmatpush1.msra.mxu0 %v2318
    %2365 = vmatprep.subr.mxu0 0.0
    %2366 = vmatpush1.msra.mxu0 %v2317
    %2367 = vmatprep.subr.mxu0 0.0
    %2368 = vmatpush2.msra.mxu0 0.0
    %2369 = vmatprep.subr.mxu0 0.0
    %2370 = vmatpush2.msra.mxu0 0.0
    %2371 = vmatprep.subr.mxu0 0.0
    %2372 = vmatpush2.msra.mxu0 0.0
    %2373 = vmatprep.subr.mxu0 0.0
    %2374 = vmatpush2.msra.mxu0 0.0
    %2375 = vmatprep.subr.mxu0 0.0
    %2376 = vmatpush2.msra.mxu0 0.0
    %2377 = vmatprep.subr.mxu0 0.0
    %2378 = vmatpush2.msra.mxu0 0.0
    %2379 = vmatprep.subr.mxu0 0.0
    %2380 = vmatpush2.msra.mxu0 0.0
    %2381 = vmatprep.subr.mxu0 0.0
    %2382 = vmatpush2.msra.mxu0 0.0
    %2383 = vmatprep.subr.mxu0 0.0
    %2384 = vmatpush2.msra.mxu0 0.0
    %2385 = vmatprep.subr.mxu0 0.0
    %2386 = vmatpush2.msra.mxu0 0.0
    %2387 = vmatprep.subr.mxu0 0.0
    %2388 = vmatpush2.msra.mxu0 0.0
    %2389 = vmatprep.subr.mxu0 0.0
    %2390 = vmatpush2.msra.mxu0 0.0
    %2391 = vmatprep.subr.mxu0 0.0
    %2392 = vmatpush2.msra.mxu0 0.0
    %2393 = vmatprep.subr.mxu0 0.0
    %2394 = vmatpush2.msra.mxu0 0.0
    %2395 = vmatprep.subr.mxu0 0.0
    %2396 = vmatpush2.msra.mxu0 0.0
    %2397 = vmatprep.subr.mxu0 0.0
    %2398 = vmatpush2.msra.mxu0 0.0
    %2399 = vmatprep.mubr.f32.mxu0 0.0
    %2400 = vmatmul.mubr.f32.gmra.mxu0 %v2330
    %v2401 = vpop.f32.mrf.mxu0
    %v2402 = vadd.f32 %v2327, %v2401
    %v2403 = vpop.f32.mrf.mxu0
    %2404 = vmatprep.mubr.f32.mxu0 0.0
    %2405 = vmatmul.mubr.f32.gmra.mxu0 %v2333
    %v2406 = vpop.f32.mrf.mxu0
    %v2407 = vadd.f32 %v2327, %v2406
    %v2408 = vpop.f32.mrf.mxu0
    %2409 = vdwg.mxu0
    %v2410 = vand.u32 2147483647, %v2402
    %vm2411 = vcmp.le.f32.partialorder %v2410, 0.7853982
    %vm2412 = vcmp.lt.s32.totalorder %v2402, 0
    %v2413 = vand.u32 %v2402, 2139095040
    %v2414 = vshrl.u32 %v2413, 23
    %v2415 = vsub.s32 %v2414, 127
    %v2416 = vand.u32 2147483647, %v2402
    %v2417 = vand.u32 %v2416, 8388607
    %v2418 = vor.u32 %v2417, 8388608
    %v2419 = vsub.s32 0, %v2418
    %v2420 = vadd.s32 %v2415, 1
    %vm2421 = vcmp.gt.s32.totalorder %v2420, 0
    %v2422 = vsel %vm2421, %v2420, 0
    %v2423 = vshrl.u32 %v2422, 5
    %v2424 = vand.u32 %v2422, 31
    %v2425 = vsub.s32 32, %v2424
    %v2426 = vshrl.u32 683565275, %v2425
    %v2427 = vshll.u32 683565275, %v2424
    %v2428 = vshrl.u32 2475754826, %v2425
    %v2429 = vor.u32 %v2427, %v2428
    %v2430 = vshll.u32 2475754826, %v2424
    %v2431 = vshrl.u32 2131351028, %v2425
    %v2432 = vor.u32 %v2430, %v2431
    %v2433 = vshll.u32 2131351028, %v2424
    %v2434 = vshrl.u32 2102212464, %v2425
    %v2435 = vor.u32 %v2433, %v2434
    %v2436 = vshll.u32 2102212464, %v2424
    %v2437 = vshrl.u32 920167782, %v2425
    %v2438 = vor.u32 %v2436, %v2437
    %v2439 = vshll.u32 920167782, %v2424
    %v2440 = vshrl.u32 1326507024, %v2425
    %v2441 = vor.u32 %v2439, %v2440
    %vm2442 = vcmp.lt.s32.totalorder %v2423, 1
    %vm2443 = vcmp.lt.s32.totalorder %v2423, 2
    %vm2444 = vcmp.lt.s32.totalorder %v2423, 3
    %vm2445 = vcmp.lt.s32.totalorder %v2423, 4
    %v2446 = vsel %vm2442, %v2426, %v2429
    %v2447 = vsel %vm2445, %v2435, 2102212464
    %v2448 = vsel %vm2444, %v2432, %v2447
    %v2449 = vsel %vm2443, %v2446, %v2448
    %v2450 = vsel %vm2442, %v2429, %v2432
    %v2451 = vsel %vm2445, %v2438, 920167782
    %v2452 = vsel %vm2444, %v2435, %v2451
    %v2453 = vsel %vm2443, %v2450, %v2452
    %v2454 = vsel %vm2442, %v2432, %v2435
    %v2455 = vsel %vm2445, %v2441, 1326507024
    %v2456 = vsel %vm2444, %v2438, %v2455
    %v2457 = vsel %vm2443, %v2454, %v2456
    %v2458 = vshll.u32 %v2418, 8
    %v2459 = vmul.u32.u64.compose %v2458, %v2457
    %v2460 = vextract.low.u32 %v2459
    %v2461 = vextract.high.u32 %v2459
    %v2462 = vmul.u32.u64.compose %v2458, %v2453
    %v2463 = vextract.low.u32 %v2462
    %v2464 = vextract.high.u32 %v2462
    %v2465 = vmul.u32 %v2458, %v2449
    %v2466 = vadd.s32 %v2461, %v2463
    %vm2467 = vc.u32 %v2461, %v2463
    %v2468 = vadd.s32 %v2464, 1
    %v2469 = vsel %vm2467, %v2468, %v2464
    %v2470 = vadd.s32 %v2465, %v2469
    %v2471 = vadd.s32 %v2470, 536870912
    %v2472 = vshrl.u32 %v2471, 30
    %v2473 = vshll.u32 %v2472, 30
    %v2474 = vsub.s32 %v2470, %v2473
    %vm2475 = vcmp.lt.s32.totalorder %v2474, 0
    %v2476 = vsub.s32 0, %v2474
    %v2477 = vsel %vm2475, %v2476, %v2474
    %v2478 = vclz %v2477
    %v2479 = vsub.s32 %v2478, 2
    %vm2480 = vcmp.gt.s32.totalorder 0, %v2479
    %v2481 = vsel %vm2480, 0, %v2479
    %v2482 = vsub.s32 32, %v2481
    %v2483 = vshll.u32 %v2474, %v2481
    %v2484 = vshrl.u32 %v2466, %v2482
    %v2485 = vor.u32 %v2483, %v2484
    %v2486 = vsub.s32 4294967266, %v2481
    %v2487 = vadd.s32 %v2486, 127
    %v2488 = vshll.u32 %v2487, 23
    %v2489 = vor.u32 4788187, %v2488
    %v2490 = vand.u32 2147483647, %v2489
    %v2492 = vcvt.s32.f32 %v2485
    %v2493 = vmul.f32 %v2492, %v2490
    %v2494 = vxor.u32 %v2493, 2147483648
    %v2495 = vsel %vm2412, %v2494, %v2493
    %v2496 = vsub.s32 4, %v2472
    %v2497 = vsel %vm2412, %v2496, %v2472
    %v2498 = vsel %vm2411, %v2402, %v2495
    %v2499 = vsel %vm2411, 0, %v2497
    %v2500 = vcosq.f32.pop %v2498
    %v2501 = vsinq.f32.pop %v2498
    %vm2502 = vweird.f32 %v2402
    %v2503 = vand.u32 %v2499, 3
    %vm2504 = vcmp.lt.s32.totalorder %v2503, 2
    %vm2505 = vcmp.eq.s32.totalorder %v2503, 0
    %v2506 = vxor.u32 %v2501, 2147483648
    %v2507 = vsel %vm2505, %v2500, %v2506
    %vm2508 = vcmp.eq.s32.totalorder %v2503, 2
    %v2509 = vxor.u32 %v2500, 2147483648
    %v2510 = vsel %vm2508, %v2509, %v2501
    %v2511 = vsel %vm2504, %v2507, %v2510
    %v2512 = vsel %vm2502, nan, %v2511
    %v2513 = vand.u32 2147483647, %v2407
    %vm2514 = vcmp.le.f32.partialorder %v2513, 0.7853982
    %vm2515 = vcmp.lt.s32.totalorder %v2407, 0
    %v2516 = vand.u32 %v2407, 2139095040
    %v2517 = vshrl.u32 %v2516, 23
    %v2518 = vsub.s32 %v2517, 127
    %v2519 = vand.u32 2147483647, %v2407
    %v2520 = vand.u32 %v2519, 8388607
    %v2521 = vor.u32 %v2520, 8388608
    %v2522 = vsub.s32 0, %v2521
    %v2523 = vadd.s32 %v2518, 1
    %vm2524 = vcmp.gt.s32.totalorder %v2523, 0
    %v2525 = vsel %vm2524, %v2523, 0
    %v2526 = vshrl.u32 %v2525, 5
    %v2527 = vand.u32 %v2525, 31
    %v2528 = vsub.s32 32, %v2527
    %v2529 = vshrl.u32 683565275, %v2528
    %v2530 = vshll.u32 683565275, %v2527
    %v2531 = vshrl.u32 2475754826, %v2528
    %v2532 = vor.u32 %v2530, %v2531
    %v2533 = vshll.u32 2475754826, %v2527
    %v2534 = vshrl.u32 2131351028, %v2528
    %v2535 = vor.u32 %v2533, %v2534
    %v2536 = vshll.u32 2131351028, %v2527
    %v2537 = vshrl.u32 2102212464, %v2528
    %v2538 = vor.u32 %v2536, %v2537
    %v2539 = vshll.u32 2102212464, %v2527
    %v2540 = vshrl.u32 920167782, %v2528
    %v2541 = vor.u32 %v2539, %v2540
    %v2542 = vshll.u32 920167782, %v2527
    %v2543 = vshrl.u32 1326507024, %v2528
    %v2544 = vor.u32 %v2542, %v2543
    %vm2545 = vcmp.lt.s32.totalorder %v2526, 1
    %vm2546 = vcmp.lt.s32.totalorder %v2526, 2
    %vm2547 = vcmp.lt.s32.totalorder %v2526, 3
    %vm2548 = vcmp.lt.s32.totalorder %v2526, 4
    %v2549 = vsel %vm2545, %v2529, %v2532
    %v2550 = vsel %vm2548, %v2538, 2102212464
    %v2551 = vsel %vm2547, %v2535, %v2550
    %v2552 = vsel %vm2546, %v2549, %v2551
    %v2553 = vsel %vm2545, %v2532, %v2535
    %v2554 = vsel %vm2548, %v2541, 920167782
    %v2555 = vsel %vm2547, %v2538, %v2554
    %v2556 = vsel %vm2546, %v2553, %v2555
    %v2557 = vsel %vm2545, %v2535, %v2538
    %v2558 = vsel %vm2548, %v2544, 1326507024
    %v2559 = vsel %vm2547, %v2541, %v2558
    %v2560 = vsel %vm2546, %v2557, %v2559
    %v2561 = vshll.u32 %v2521, 8
    %v2562 = vmul.u32.u64.compose %v2561, %v2560
    %v2563 = vextract.low.u32 %v2562
    %v2564 = vextract.high.u32 %v2562
    %v2565 = vmul.u32.u64.compose %v2561, %v2556
    %v2566 = vextract.low.u32 %v2565
    %v2567 = vextract.high.u32 %v2565
    %v2568 = vmul.u32 %v2561, %v2552
    %v2569 = vadd.s32 %v2564, %v2566
    %vm2570 = vc.u32 %v2564, %v2566
    %v2571 = vadd.s32 %v2567, 1
    %v2572 = vsel %vm2570, %v2571, %v2567
    %v2573 = vadd.s32 %v2568, %v2572
    %v2574 = vadd.s32 %v2573, 536870912
    %v2575 = vshrl.u32 %v2574, 30
    %v2576 = vshll.u32 %v2575, 30
    %v2577 = vsub.s32 %v2573, %v2576
    %vm2578 = vcmp.lt.s32.totalorder %v2577, 0
    %v2579 = vsub.s32 0, %v2577
    %v2580 = vsel %vm2578, %v2579, %v2577
    %v2581 = vclz %v2580
    %v2582 = vsub.s32 %v2581, 2
    %vm2583 = vcmp.gt.s32.totalorder 0, %v2582
    %v2584 = vsel %vm2583, 0, %v2582
    %v2585 = vsub.s32 32, %v2584
    %v2586 = vshll.u32 %v2577, %v2584
    %v2587 = vshrl.u32 %v2569, %v2585
    %v2588 = vor.u32 %v2586, %v2587
    %v2589 = vsub.s32 4294967266, %v2584
    %v2590 = vadd.s32 %v2589, 127
    %v2591 = vshll.u32 %v2590, 23
    %v2592 = vor.u32 4788187, %v2591
    %v2593 = vand.u32 2147483647, %v2592
    %v2595 = vcvt.s32.f32 %v2588
    %v2596 = vmul.f32 %v2595, %v2593
    %v2597 = vxor.u32 %v2596, 2147483648
    %v2598 = vsel %vm2515, %v2597, %v2596
    %v2599 = vsub.s32 4, %v2575
    %v2600 = vsel %vm2515, %v2599, %v2575
    %v2601 = vsel %vm2514, %v2407, %v2598
    %v2602 = vsel %vm2514, 0, %v2600
    %v2603 = vcosq.f32.pop %v2601
    %v2604 = vsinq.f32.pop %v2601
    %vm2605 = vweird.f32 %v2407
    %v2606 = vand.u32 %v2602, 3
    %vm2607 = vcmp.lt.s32.totalorder %v2606, 2
    %vm2608 = vcmp.eq.s32.totalorder %v2606, 0
    %v2609 = vxor.u32 %v2604, 2147483648
    %v2610 = vsel %vm2608, %v2603, %v2609
    %vm2611 = vcmp.eq.s32.totalorder %v2606, 2
    %v2612 = vxor.u32 %v2603, 2147483648
    %v2613 = vsel %vm2611, %v2612, %v2604
    %v2614 = vsel %vm2607, %v2610, %v2613
    %v2615 = vsel %vm2605, nan, %v2614
    %v2616 = vsel %vm148, %v2266, 0.0
    %2617 = vadd.xlane.f32.xlu0 %v2616
    %v2618 = vpop.xlane.xlu0 %2617
    %v2619 = vsel %vm148, %v2267, 0.0
    %2620 = vadd.xlane.f32.xlu0 %v2619
    %v2621 = vpop.xlane.xlu0 %2620
    %v2622 = vmul.f32 %v2618, %v442
    %v2623 = vmul.f32 %v2621, %v442
    %v2624 = vsub.f32 %v2266, %v2622
    %v2625 = vsub.f32 %v2267, %v2623
    %v2626 = vmul.f32 %v2624, %v2624
    %v2627 = vmul.f32 %v2625, %v2625
    %v2628 = vsel %vm148, %v2626, 0.0
    %2629 = vadd.xlane.f32.xlu0 %v2628
    %v2630 = vpop.xlane.xlu0 %2629
    %v2631 = vsel %vm148, %v2627, 0.0
    %2632 = vadd.xlane.f32.xlu0 %v2631
    %v2633 = vpop.xlane.xlu0 %2632
    %v2634 = vmul.f32 %v2630, %v442
    %v2635 = vmul.f32 %v2633, %v442
    %v2636 = vadd.f32 %v2634, 1e-05
    %v2637 = vadd.f32 %v2635, 1e-05
    %v2638 = vrsqrt.pop %v2636
    %v2639 = vrsqrt.pop %v2637
    %v2640 = vmul.f32 %v2624, %v2638
    %v2641 = vmul.f32 %v2625, %v2639
    %v2643 = vlaneseq
    %v2644 = vshrl.u32 %v2643, 7
    %v2645 = vsub.s32 0, %v2644
    %v2646 = vrot.slane %v2269, %v2645
    %v2648 = vmul.f32 %v2640, %v2646
    %v2649 = vmul.f32 %v2641, %v2646
    %v2651 = vlaneseq
    %v2652 = vshrl.u32 %v2651, 7
    %v2653 = vsub.s32 0, %v2652
    %v2654 = vrot.slane %v2271, %v2653
    %v2656 = vadd.f32 %v2648, %v2654
    %v2657 = vadd.f32 %v2649, %v2654
    %v2659 = vlaneseq
    %v2660 = vshrl.u32 %v2659, 7
    %v2661 = vsub.s32 0, %v2660
    %v2662 = vrot.slane %v2278, %v2661
    %v2665 = vsel %vm148, %v2656, 0
    %v2668 = vsel %vm148, %v2657, 0
    %2670 = vmatprep.subr.mxu0 0.0
    %2671 = vmatpush1.msra.mxu0 0.0
    %2672 = vmatprep.subr.mxu0 0.0
    %2673 = vmatpush1.msra.mxu0 0.0
    %2674 = vmatprep.subr.mxu0 0.0
    %2675 = vmatpush1.msra.mxu0 0.0
    %2676 = vmatprep.subr.mxu0 0.0
    %2677 = vmatpush1.msra.mxu0 0.0
    %2678 = vmatprep.subr.mxu0 0.0
    %2679 = vmatpush1.msra.mxu0 0.0
    %2680 = vmatprep.subr.mxu0 0.0
    %2681 = vmatpush1.msra.mxu0 0.0
    %2682 = vmatprep.subr.mxu0 0.0
    %2683 = vmatpush1.msra.mxu0 0.0
    %2684 = vmatprep.subr.mxu0 0.0
    %2685 = vmatpush1.msra.mxu0 0.0
    %2686 = vmatprep.subr.mxu0 0.0
    %2687 = vmatpush1.msra.mxu0 0.0
    %2688 = vmatprep.subr.mxu0 0.0
    %2689 = vmatpush1.msra.mxu0 0.0
    %2690 = vmatprep.subr.mxu0 0.0
    %2691 = vmatpush1.msra.mxu0 0.0
    %2692 = vmatprep.subr.mxu0 0.0
    %2693 = vmatpush1.msra.mxu0 0.0
    %2694 = vmatprep.subr.mxu0 0.0
    %2695 = vmatpush1.msra.mxu0 %v2276
    %2696 = vmatprep.subr.mxu0 0.0
    %2697 = vmatpush1.msra.mxu0 %v2275
    %2698 = vmatprep.subr.mxu0 0.0
    %2699 = vmatpush1.msra.mxu0 %v2274
    %2700 = vmatprep.subr.mxu0 0.0
    %2701 = vmatpush1.msra.mxu0 %v2273
    %2702 = vmatprep.subr.mxu0 0.0
    %2703 = vmatpush2.msra.mxu0 0.0
    %2704 = vmatprep.subr.mxu0 0.0
    %2705 = vmatpush2.msra.mxu0 0.0
    %2706 = vmatprep.subr.mxu0 0.0
    %2707 = vmatpush2.msra.mxu0 0.0
    %2708 = vmatprep.subr.mxu0 0.0
    %2709 = vmatpush2.msra.mxu0 0.0
    %2710 = vmatprep.subr.mxu0 0.0
    %2711 = vmatpush2.msra.mxu0 0.0
    %2712 = vmatprep.subr.mxu0 0.0
    %2713 = vmatpush2.msra.mxu0 0.0
    %2714 = vmatprep.subr.mxu0 0.0
    %2715 = vmatpush2.msra.mxu0 0.0
    %2716 = vmatprep.subr.mxu0 0.0
    %2717 = vmatpush2.msra.mxu0 0.0
    %2718 = vmatprep.subr.mxu0 0.0
    %2719 = vmatpush2.msra.mxu0 0.0
    %2720 = vmatprep.subr.mxu0 0.0
    %2721 = vmatpush2.msra.mxu0 0.0
    %2722 = vmatprep.subr.mxu0 0.0
    %2723 = vmatpush2.msra.mxu0 0.0
    %2724 = vmatprep.subr.mxu0 0.0
    %2725 = vmatpush2.msra.mxu0 0.0
    %2726 = vmatprep.subr.mxu0 0.0
    %2727 = vmatpush2.msra.mxu0 0.0
    %2728 = vmatprep.subr.mxu0 0.0
    %2729 = vmatpush2.msra.mxu0 0.0
    %2730 = vmatprep.subr.mxu0 0.0
    %2731 = vmatpush2.msra.mxu0 0.0
    %2732 = vmatprep.subr.mxu0 0.0
    %2733 = vmatpush2.msra.mxu0 0.0
    %2734 = vmatprep.mubr.f32.mxu0 0.0
    %2735 = vmatmul.mubr.f32.gmra.mxu0 %v2665
    %v2736 = vpop.f32.mrf.mxu0
    %v2737 = vadd.f32 %v2662, %v2736
    %v2738 = vpop.f32.mrf.mxu0
    %2739 = vmatprep.mubr.f32.mxu0 0.0
    %2740 = vmatmul.mubr.f32.gmra.mxu0 %v2668
    %v2741 = vpop.f32.mrf.mxu0
    %v2742 = vadd.f32 %v2662, %v2741
    %v2743 = vpop.f32.mrf.mxu0
    %2744 = vdwg.mxu0
    %2747 = vrot.lane.b32.xlu0 %v2737, 120
    %v2748 = vpop.permute.xlu0 %2747
    %2749 = vrot.lane.b32.xlu0 %v2742, 120
    %v2750 = vpop.permute.xlu0 %2749
    %2751 = vrot.lane.b32.xlu0 %v2737, 112
    %v2752 = vpop.permute.xlu0 %2751
    %2753 = vrot.lane.b32.xlu0 %v2742, 112
    %v2754 = vpop.permute.xlu0 %2753
    %2755 = vrot.lane.b32.xlu0 %v2737, 104
    %v2756 = vpop.permute.xlu0 %2755
    %2757 = vrot.lane.b32.xlu0 %v2742, 104
    %v2758 = vpop.permute.xlu0 %2757
    %2759 = vrot.lane.b32.xlu0 %v2737, 96
    %v2760 = vpop.permute.xlu0 %2759
    %v2761 = vsel %vm582, %v2737, 0
    %v2763 = vsel %vm582, %v2760, 0
    %2765 = vmatprep.subr.mxu0 0.0
    %2766 = vmatpush1.xpose.msra.mxu0 0.0
    %2767 = vmatprep.subr.mxu0 0.0
    %2768 = vmatpush1.xpose.msra.mxu0 0.0
    %2769 = vmatprep.subr.mxu0 0.0
    %2770 = vmatpush1.xpose.msra.mxu0 0.0
    %2771 = vmatprep.subr.mxu0 0.0
    %2772 = vmatpush1.xpose.msra.mxu0 0.0
    %2773 = vmatprep.subr.mxu0 0.0
    %2774 = vmatpush1.xpose.msra.mxu0 0.0
    %2775 = vmatprep.subr.mxu0 0.0
    %2776 = vmatpush1.xpose.msra.mxu0 0.0
    %2777 = vmatprep.subr.mxu0 0.0
    %2778 = vmatpush1.xpose.msra.mxu0 0.0
    %2779 = vmatprep.subr.mxu0 0.0
    %2780 = vmatpush1.xpose.msra.mxu0 0.0
    %2781 = vmatprep.subr.mxu0 0.0
    %2782 = vmatpush1.xpose.msra.mxu0 0.0
    %2783 = vmatprep.subr.mxu0 0.0
    %2784 = vmatpush1.xpose.msra.mxu0 0.0
    %2785 = vmatprep.subr.mxu0 0.0
    %2786 = vmatpush1.xpose.msra.mxu0 0.0
    %2787 = vmatprep.subr.mxu0 0.0
    %2788 = vmatpush1.xpose.msra.mxu0 0.0
    %2789 = vmatprep.subr.mxu0 0.0
    %2790 = vmatpush1.xpose.msra.mxu0 0.0
    %2791 = vmatprep.subr.mxu0 0.0
    %2792 = vmatpush1.xpose.msra.mxu0 0.0
    %2793 = vmatprep.subr.mxu0 0.0
    %2794 = vmatpush1.xpose.msra.mxu0 0.0
    %2795 = vmatprep.subr.mxu0 0.0
    %2796 = vmatpush1.xpose.msra.mxu0 %v2763
    %2797 = vmatprep.subr.mxu0 0.0
    %2798 = vmatpush2.xpose.msra.mxu0 0.0
    %2799 = vmatprep.subr.mxu0 0.0
    %2800 = vmatpush2.xpose.msra.mxu0 0.0
    %2801 = vmatprep.subr.mxu0 0.0
    %2802 = vmatpush2.xpose.msra.mxu0 0.0
    %2803 = vmatprep.subr.mxu0 0.0
    %2804 = vmatpush2.xpose.msra.mxu0 0.0
    %2805 = vmatprep.subr.mxu0 0.0
    %2806 = vmatpush2.xpose.msra.mxu0 0.0
    %2807 = vmatprep.subr.mxu0 0.0
    %2808 = vmatpush2.xpose.msra.mxu0 0.0
    %2809 = vmatprep.subr.mxu0 0.0
    %2810 = vmatpush2.xpose.msra.mxu0 0.0
    %2811 = vmatprep.subr.mxu0 0.0
    %2812 = vmatpush2.xpose.msra.mxu0 0.0
    %2813 = vmatprep.subr.mxu0 0.0
    %2814 = vmatpush2.xpose.msra.mxu0 0.0
    %2815 = vmatprep.subr.mxu0 0.0
    %2816 = vmatpush2.xpose.msra.mxu0 0.0
    %2817 = vmatprep.subr.mxu0 0.0
    %2818 = vmatpush2.xpose.msra.mxu0 0.0
    %2819 = vmatprep.subr.mxu0 0.0
    %2820 = vmatpush2.xpose.msra.mxu0 0.0
    %2821 = vmatprep.subr.mxu0 0.0
    %2822 = vmatpush2.xpose.msra.mxu0 0.0
    %2823 = vmatprep.subr.mxu0 0.0
    %2824 = vmatpush2.xpose.msra.mxu0 0.0
    %2825 = vmatprep.subr.mxu0 0.0
    %2826 = vmatpush2.xpose.msra.mxu0 0.0
    %2827 = vmatprep.subr.mxu0 0.0
    %2828 = vmatpush2.xpose.msra.mxu0 0.0
    %2829 = vmatprep.mubr.f32.mxu0 0.0
    %2830 = vmatmul.mubr.f32.gmra.mxu0 %v2761
    %v2831 = vpop.f32.mrf.mxu0
    %v2832 = vadd.f32 0.0, %v2831
    %v2833 = vpop.f32.mrf.mxu0
    %2834 = vdwg.mxu0
    %2835 = vrot.lane.b32.xlu0 %v2742, 96
    %v2836 = vpop.permute.xlu0 %2835
    %v2837 = vsel %vm582, %v2742, 0
    %v2839 = vsel %vm582, %v2836, 0
    %2841 = vmatprep.subr.mxu0 0.0
    %2842 = vmatpush1.xpose.msra.mxu0 0.0
    %2843 = vmatprep.subr.mxu0 0.0
    %2844 = vmatpush1.xpose.msra.mxu0 0.0
    %2845 = vmatprep.subr.mxu0 0.0
    %2846 = vmatpush1.xpose.msra.mxu0 0.0
    %2847 = vmatprep.subr.mxu0 0.0
    %2848 = vmatpush1.xpose.msra.mxu0 0.0
    %2849 = vmatprep.subr.mxu0 0.0
    %2850 = vmatpush1.xpose.msra.mxu0 0.0
    %2851 = vmatprep.subr.mxu0 0.0
    %2852 = vmatpush1.xpose.msra.mxu0 0.0
    %2853 = vmatprep.subr.mxu0 0.0
    %2854 = vmatpush1.xpose.msra.mxu0 0.0
    %2855 = vmatprep.subr.mxu0 0.0
    %2856 = vmatpush1.xpose.msra.mxu0 0.0
    %2857 = vmatprep.subr.mxu0 0.0
    %2858 = vmatpush1.xpose.msra.mxu0 0.0
    %2859 = vmatprep.subr.mxu0 0.0
    %2860 = vmatpush1.xpose.msra.mxu0 0.0
    %2861 = vmatprep.subr.mxu0 0.0
    %2862 = vmatpush1.xpose.msra.mxu0 0.0
    %2863 = vmatprep.subr.mxu0 0.0
    %2864 = vmatpush1.xpose.msra.mxu0 0.0
    %2865 = vmatprep.subr.mxu0 0.0
    %2866 = vmatpush1.xpose.msra.mxu0 0.0
    %2867 = vmatprep.subr.mxu0 0.0
    %2868 = vmatpush1.xpose.msra.mxu0 0.0
    %2869 = vmatprep.subr.mxu0 0.0
    %2870 = vmatpush1.xpose.msra.mxu0 0.0
    %2871 = vmatprep.subr.mxu0 0.0
    %2872 = vmatpush1.xpose.msra.mxu0 %v2839
    %2873 = vmatprep.subr.mxu0 0.0
    %2874 = vmatpush2.xpose.msra.mxu0 0.0
    %2875 = vmatprep.subr.mxu0 0.0
    %2876 = vmatpush2.xpose.msra.mxu0 0.0
    %2877 = vmatprep.subr.mxu0 0.0
    %2878 = vmatpush2.xpose.msra.mxu0 0.0
    %2879 = vmatprep.subr.mxu0 0.0
    %2880 = vmatpush2.xpose.msra.mxu0 0.0
    %2881 = vmatprep.subr.mxu0 0.0
    %2882 = vmatpush2.xpose.msra.mxu0 0.0
    %2883 = vmatprep.subr.mxu0 0.0
    %2884 = vmatpush2.xpose.msra.mxu0 0.0
    %2885 = vmatprep.subr.mxu0 0.0
    %2886 = vmatpush2.xpose.msra.mxu0 0.0
    %2887 = vmatprep.subr.mxu0 0.0
    %2888 = vmatpush2.xpose.msra.mxu0 0.0
    %2889 = vmatprep.subr.mxu0 0.0
    %2890 = vmatpush2.xpose.msra.mxu0 0.0
    %2891 = vmatprep.subr.mxu0 0.0
    %2892 = vmatpush2.xpose.msra.mxu0 0.0
    %2893 = vmatprep.subr.mxu0 0.0
    %2894 = vmatpush2.xpose.msra.mxu0 0.0
    %2895 = vmatprep.subr.mxu0 0.0
    %2896 = vmatpush2.xpose.msra.mxu0 0.0
    %2897 = vmatprep.subr.mxu0 0.0
    %2898 = vmatpush2.xpose.msra.mxu0 0.0
    %2899 = vmatprep.subr.mxu0 0.0
    %2900 = vmatpush2.xpose.msra.mxu0 0.0
    %2901 = vmatprep.subr.mxu0 0.0
    %2902 = vmatpush2.xpose.msra.mxu0 0.0
    %2903 = vmatprep.subr.mxu0 0.0
    %2904 = vmatpush2.xpose.msra.mxu0 0.0
    %2905 = vmatprep.mubr.f32.mxu0 0.0
    %2906 = vmatmul.mubr.f32.gmra.mxu0 %v2837
    %v2907 = vpop.f32.mrf.mxu0
    %v2908 = vadd.f32 0.0, %v2907
    %v2909 = vpop.f32.mrf.mxu0
    %2910 = vdwg.mxu0
    %2911 = vrot.lane.b32.xlu0 %v2748, 96
    %v2912 = vpop.permute.xlu0 %2911
    %v2913 = vsel %vm582, %v2748, 0
    %v2915 = vsel %vm582, %v2912, 0
    %2917 = vmatprep.subr.mxu0 0.0
    %2918 = vmatpush1.xpose.msra.mxu0 0.0
    %2919 = vmatprep.subr.mxu0 0.0
    %2920 = vmatpush1.xpose.msra.mxu0 0.0
    %2921 = vmatprep.subr.mxu0 0.0
    %2922 = vmatpush1.xpose.msra.mxu0 0.0
    %2923 = vmatprep.subr.mxu0 0.0
    %2924 = vmatpush1.xpose.msra.mxu0 0.0
    %2925 = vmatprep.subr.mxu0 0.0
    %2926 = vmatpush1.xpose.msra.mxu0 0.0
    %2927 = vmatprep.subr.mxu0 0.0
    %2928 = vmatpush1.xpose.msra.mxu0 0.0
    %2929 = vmatprep.subr.mxu0 0.0
    %2930 = vmatpush1.xpose.msra.mxu0 0.0
    %2931 = vmatprep.subr.mxu0 0.0
    %2932 = vmatpush1.xpose.msra.mxu0 0.0
    %2933 = vmatprep.subr.mxu0 0.0
    %2934 = vmatpush1.xpose.msra.mxu0 0.0
    %2935 = vmatprep.subr.mxu0 0.0
    %2936 = vmatpush1.xpose.msra.mxu0 0.0
    %2937 = vmatprep.subr.mxu0 0.0
    %2938 = vmatpush1.xpose.msra.mxu0 0.0
    %2939 = vmatprep.subr.mxu0 0.0
    %2940 = vmatpush1.xpose.msra.mxu0 0.0
    %2941 = vmatprep.subr.mxu0 0.0
    %2942 = vmatpush1.xpose.msra.mxu0 0.0
    %2943 = vmatprep.subr.mxu0 0.0
    %2944 = vmatpush1.xpose.msra.mxu0 0.0
    %2945 = vmatprep.subr.mxu0 0.0
    %2946 = vmatpush1.xpose.msra.mxu0 0.0
    %2947 = vmatprep.subr.mxu0 0.0
    %2948 = vmatpush1.xpose.msra.mxu0 %v2915
    %2949 = vmatprep.subr.mxu0 0.0
    %2950 = vmatpush2.xpose.msra.mxu0 0.0
    %2951 = vmatprep.subr.mxu0 0.0
    %2952 = vmatpush2.xpose.msra.mxu0 0.0
    %2953 = vmatprep.subr.mxu0 0.0
    %2954 = vmatpush2.xpose.msra.mxu0 0.0
    %2955 = vmatprep.subr.mxu0 0.0
    %2956 = vmatpush2.xpose.msra.mxu0 0.0
    %2957 = vmatprep.subr.mxu0 0.0
    %2958 = vmatpush2.xpose.msra.mxu0 0.0
    %2959 = vmatprep.subr.mxu0 0.0
    %2960 = vmatpush2.xpose.msra.mxu0 0.0
    %2961 = vmatprep.subr.mxu0 0.0
    %2962 = vmatpush2.xpose.msra.mxu0 0.0
    %2963 = vmatprep.subr.mxu0 0.0
    %2964 = vmatpush2.xpose.msra.mxu0 0.0
    %2965 = vmatprep.subr.mxu0 0.0
    %2966 = vmatpush2.xpose.msra.mxu0 0.0
    %2967 = vmatprep.subr.mxu0 0.0
    %2968 = vmatpush2.xpose.msra.mxu0 0.0
    %2969 = vmatprep.subr.mxu0 0.0
    %2970 = vmatpush2.xpose.msra.mxu0 0.0
    %2971 = vmatprep.subr.mxu0 0.0
    %2972 = vmatpush2.xpose.msra.mxu0 0.0
    %2973 = vmatprep.subr.mxu0 0.0
    %2974 = vmatpush2.xpose.msra.mxu0 0.0
    %2975 = vmatprep.subr.mxu0 0.0
    %2976 = vmatpush2.xpose.msra.mxu0 0.0
    %2977 = vmatprep.subr.mxu0 0.0
    %2978 = vmatpush2.xpose.msra.mxu0 0.0
    %2979 = vmatprep.subr.mxu0 0.0
    %2980 = vmatpush2.xpose.msra.mxu0 0.0
    %2981 = vmatprep.mubr.f32.mxu0 0.0
    %2982 = vmatmul.mubr.f32.gmra.mxu0 %v2913
    %v2983 = vpop.f32.mrf.mxu0
    %v2984 = vadd.f32 0.0, %v2983
    %v2985 = vpop.f32.mrf.mxu0
    %2986 = vdwg.mxu0
    %2987 = vrot.lane.b32.xlu0 %v2750, 96
    %v2988 = vpop.permute.xlu0 %2987
    %v2989 = vsel %vm582, %v2750, 0
    %v2991 = vsel %vm582, %v2988, 0
    %2993 = vmatprep.subr.mxu0 0.0
    %2994 = vmatpush1.xpose.msra.mxu0 0.0
    %2995 = vmatprep.subr.mxu0 0.0
    %2996 = vmatpush1.xpose.msra.mxu0 0.0
    %2997 = vmatprep.subr.mxu0 0.0
    %2998 = vmatpush1.xpose.msra.mxu0 0.0
    %2999 = vmatprep.subr.mxu0 0.0
    %3000 = vmatpush1.xpose.msra.mxu0 0.0
    %3001 = vmatprep.subr.mxu0 0.0
    %3002 = vmatpush1.xpose.msra.mxu0 0.0
    %3003 = vmatprep.subr.mxu0 0.0
    %3004 = vmatpush1.xpose.msra.mxu0 0.0
    %3005 = vmatprep.subr.mxu0 0.0
    %3006 = vmatpush1.xpose.msra.mxu0 0.0
    %3007 = vmatprep.subr.mxu0 0.0
    %3008 = vmatpush1.xpose.msra.mxu0 0.0
    %3009 = vmatprep.subr.mxu0 0.0
    %3010 = vmatpush1.xpose.msra.mxu0 0.0
    %3011 = vmatprep.subr.mxu0 0.0
    %3012 = vmatpush1.xpose.msra.mxu0 0.0
    %3013 = vmatprep.subr.mxu0 0.0
    %3014 = vmatpush1.xpose.msra.mxu0 0.0
    %3015 = vmatprep.subr.mxu0 0.0
    %3016 = vmatpush1.xpose.msra.mxu0 0.0
    %3017 = vmatprep.subr.mxu0 0.0
    %3018 = vmatpush1.xpose.msra.mxu0 0.0
    %3019 = vmatprep.subr.mxu0 0.0
    %3020 = vmatpush1.xpose.msra.mxu0 0.0
    %3021 = vmatprep.subr.mxu0 0.0
    %3022 = vmatpush1.xpose.msra.mxu0 0.0
    %3023 = vmatprep.subr.mxu0 0.0
    %3024 = vmatpush1.xpose.msra.mxu0 %v2991
    %3025 = vmatprep.subr.mxu0 0.0
    %3026 = vmatpush2.xpose.msra.mxu0 0.0
    %3027 = vmatprep.subr.mxu0 0.0
    %3028 = vmatpush2.xpose.msra.mxu0 0.0
    %3029 = vmatprep.subr.mxu0 0.0
    %3030 = vmatpush2.xpose.msra.mxu0 0.0
    %3031 = vmatprep.subr.mxu0 0.0
    %3032 = vmatpush2.xpose.msra.mxu0 0.0
    %3033 = vmatprep.subr.mxu0 0.0
    %3034 = vmatpush2.xpose.msra.mxu0 0.0
    %3035 = vmatprep.subr.mxu0 0.0
    %3036 = vmatpush2.xpose.msra.mxu0 0.0
    %3037 = vmatprep.subr.mxu0 0.0
    %3038 = vmatpush2.xpose.msra.mxu0 0.0
    %3039 = vmatprep.subr.mxu0 0.0
    %3040 = vmatpush2.xpose.msra.mxu0 0.0
    %3041 = vmatprep.subr.mxu0 0.0
    %3042 = vmatpush2.xpose.msra.mxu0 0.0
    %3043 = vmatprep.subr.mxu0 0.0
    %3044 = vmatpush2.xpose.msra.mxu0 0.0
    %3045 = vmatprep.subr.mxu0 0.0
    %3046 = vmatpush2.xpose.msra.mxu0 0.0
    %3047 = vmatprep.subr.mxu0 0.0
    %3048 = vmatpush2.xpose.msra.mxu0 0.0
    %3049 = vmatprep.subr.mxu0 0.0
    %3050 = vmatpush2.xpose.msra.mxu0 0.0
    %3051 = vmatprep.subr.mxu0 0.0
    %3052 = vmatpush2.xpose.msra.mxu0 0.0
    %3053 = vmatprep.subr.mxu0 0.0
    %3054 = vmatpush2.xpose.msra.mxu0 0.0
    %3055 = vmatprep.subr.mxu0 0.0
    %3056 = vmatpush2.xpose.msra.mxu0 0.0
    %3057 = vmatprep.mubr.f32.mxu0 0.0
    %3058 = vmatmul.mubr.f32.gmra.mxu0 %v2989
    %v3059 = vpop.f32.mrf.mxu0
    %v3060 = vadd.f32 0.0, %v3059
    %v3061 = vpop.f32.mrf.mxu0
    %3062 = vdwg.mxu0
    %3063 = vrot.lane.b32.xlu0 %v2752, 96
    %v3064 = vpop.permute.xlu0 %3063
    %v3065 = vsel %vm582, %v2752, 0
    %v3067 = vsel %vm582, %v3064, 0
    %3069 = vmatprep.subr.mxu0 0.0
    %3070 = vmatpush1.xpose.msra.mxu0 0.0
    %3071 = vmatprep.subr.mxu0 0.0
    %3072 = vmatpush1.xpose.msra.mxu0 0.0
    %3073 = vmatprep.subr.mxu0 0.0
    %3074 = vmatpush1.xpose.msra.mxu0 0.0
    %3075 = vmatprep.subr.mxu0 0.0
    %3076 = vmatpush1.xpose.msra.mxu0 0.0
    %3077 = vmatprep.subr.mxu0 0.0
    %3078 = vmatpush1.xpose.msra.mxu0 0.0
    %3079 = vmatprep.subr.mxu0 0.0
    %3080 = vmatpush1.xpose.msra.mxu0 0.0
    %3081 = vmatprep.subr.mxu0 0.0
    %3082 = vmatpush1.xpose.msra.mxu0 0.0
    %3083 = vmatprep.subr.mxu0 0.0
    %3084 = vmatpush1.xpose.msra.mxu0 0.0
    %3085 = vmatprep.subr.mxu0 0.0
    %3086 = vmatpush1.xpose.msra.mxu0 0.0
    %3087 = vmatprep.subr.mxu0 0.0
    %3088 = vmatpush1.xpose.msra.mxu0 0.0
    %3089 = vmatprep.subr.mxu0 0.0
    %3090 = vmatpush1.xpose.msra.mxu0 0.0
    %3091 = vmatprep.subr.mxu0 0.0
    %3092 = vmatpush1.xpose.msra.mxu0 0.0
    %3093 = vmatprep.subr.mxu0 0.0
    %3094 = vmatpush1.xpose.msra.mxu0 0.0
    %3095 = vmatprep.subr.mxu0 0.0
    %3096 = vmatpush1.xpose.msra.mxu0 0.0
    %3097 = vmatprep.subr.mxu0 0.0
    %3098 = vmatpush1.xpose.msra.mxu0 0.0
    %3099 = vmatprep.subr.mxu0 0.0
    %3100 = vmatpush1.xpose.msra.mxu0 %v3067
    %3101 = vmatprep.subr.mxu0 0.0
    %3102 = vmatpush2.xpose.msra.mxu0 0.0
    %3103 = vmatprep.subr.mxu0 0.0
    %3104 = vmatpush2.xpose.msra.mxu0 0.0
    %3105 = vmatprep.subr.mxu0 0.0
    %3106 = vmatpush2.xpose.msra.mxu0 0.0
    %3107 = vmatprep.subr.mxu0 0.0
    %3108 = vmatpush2.xpose.msra.mxu0 0.0
    %3109 = vmatprep.subr.mxu0 0.0
    %3110 = vmatpush2.xpose.msra.mxu0 0.0
    %3111 = vmatprep.subr.mxu0 0.0
    %3112 = vmatpush2.xpose.msra.mxu0 0.0
    %3113 = vmatprep.subr.mxu0 0.0
    %3114 = vmatpush2.xpose.msra.mxu0 0.0
    %3115 = vmatprep.subr.mxu0 0.0
    %3116 = vmatpush2.xpose.msra.mxu0 0.0
    %3117 = vmatprep.subr.mxu0 0.0
    %3118 = vmatpush2.xpose.msra.mxu0 0.0
    %3119 = vmatprep.subr.mxu0 0.0
    %3120 = vmatpush2.xpose.msra.mxu0 0.0
    %3121 = vmatprep.subr.mxu0 0.0
    %3122 = vmatpush2.xpose.msra.mxu0 0.0
    %3123 = vmatprep.subr.mxu0 0.0
    %3124 = vmatpush2.xpose.msra.mxu0 0.0
    %3125 = vmatprep.subr.mxu0 0.0
    %3126 = vmatpush2.xpose.msra.mxu0 0.0
    %3127 = vmatprep.subr.mxu0 0.0
    %3128 = vmatpush2.xpose.msra.mxu0 0.0
    %3129 = vmatprep.subr.mxu0 0.0
    %3130 = vmatpush2.xpose.msra.mxu0 0.0
    %3131 = vmatprep.subr.mxu0 0.0
    %3132 = vmatpush2.xpose.msra.mxu0 0.0
    %3133 = vmatprep.mubr.f32.mxu0 0.0
    %3134 = vmatmul.mubr.f32.gmra.mxu0 %v3065
    %v3135 = vpop.f32.mrf.mxu0
    %v3136 = vadd.f32 0.0, %v3135
    %v3137 = vpop.f32.mrf.mxu0
    %3138 = vdwg.mxu0
    %3139 = vrot.lane.b32.xlu0 %v2754, 96
    %v3140 = vpop.permute.xlu0 %3139
    %v3141 = vsel %vm582, %v2754, 0
    %v3143 = vsel %vm582, %v3140, 0
    %3145 = vmatprep.subr.mxu0 0.0
    %3146 = vmatpush1.xpose.msra.mxu0 0.0
    %3147 = vmatprep.subr.mxu0 0.0
    %3148 = vmatpush1.xpose.msra.mxu0 0.0
    %3149 = vmatprep.subr.mxu0 0.0
    %3150 = vmatpush1.xpose.msra.mxu0 0.0
    %3151 = vmatprep.subr.mxu0 0.0
    %3152 = vmatpush1.xpose.msra.mxu0 0.0
    %3153 = vmatprep.subr.mxu0 0.0
    %3154 = vmatpush1.xpose.msra.mxu0 0.0
    %3155 = vmatprep.subr.mxu0 0.0
    %3156 = vmatpush1.xpose.msra.mxu0 0.0
    %3157 = vmatprep.subr.mxu0 0.0
    %3158 = vmatpush1.xpose.msra.mxu0 0.0
    %3159 = vmatprep.subr.mxu0 0.0
    %3160 = vmatpush1.xpose.msra.mxu0 0.0
    %3161 = vmatprep.subr.mxu0 0.0
    %3162 = vmatpush1.xpose.msra.mxu0 0.0
    %3163 = vmatprep.subr.mxu0 0.0
    %3164 = vmatpush1.xpose.msra.mxu0 0.0
    %3165 = vmatprep.subr.mxu0 0.0
    %3166 = vmatpush1.xpose.msra.mxu0 0.0
    %3167 = vmatprep.subr.mxu0 0.0
    %3168 = vmatpush1.xpose.msra.mxu0 0.0
    %3169 = vmatprep.subr.mxu0 0.0
    %3170 = vmatpush1.xpose.msra.mxu0 0.0
    %3171 = vmatprep.subr.mxu0 0.0
    %3172 = vmatpush1.xpose.msra.mxu0 0.0
    %3173 = vmatprep.subr.mxu0 0.0
    %3174 = vmatpush1.xpose.msra.mxu0 0.0
    %3175 = vmatprep.subr.mxu0 0.0
    %3176 = vmatpush1.xpose.msra.mxu0 %v3143
    %3177 = vmatprep.subr.mxu0 0.0
    %3178 = vmatpush2.xpose.msra.mxu0 0.0
    %3179 = vmatprep.subr.mxu0 0.0
    %3180 = vmatpush2.xpose.msra.mxu0 0.0
    %3181 = vmatprep.subr.mxu0 0.0
    %3182 = vmatpush2.xpose.msra.mxu0 0.0
    %3183 = vmatprep.subr.mxu0 0.0
    %3184 = vmatpush2.xpose.msra.mxu0 0.0
    %3185 = vmatprep.subr.mxu0 0.0
    %3186 = vmatpush2.xpose.msra.mxu0 0.0
    %3187 = vmatprep.subr.mxu0 0.0
    %3188 = vmatpush2.xpose.msra.mxu0 0.0
    %3189 = vmatprep.subr.mxu0 0.0
    %3190 = vmatpush2.xpose.msra.mxu0 0.0
    %3191 = vmatprep.subr.mxu0 0.0
    %3192 = vmatpush2.xpose.msra.mxu0 0.0
    %3193 = vmatprep.subr.mxu0 0.0
    %3194 = vmatpush2.xpose.msra.mxu0 0.0
    %3195 = vmatprep.subr.mxu0 0.0
    %3196 = vmatpush2.xpose.msra.mxu0 0.0
    %3197 = vmatprep.subr.mxu0 0.0
    %3198 = vmatpush2.xpose.msra.mxu0 0.0
    %3199 = vmatprep.subr.mxu0 0.0
    %3200 = vmatpush2.xpose.msra.mxu0 0.0
    %3201 = vmatprep.subr.mxu0 0.0
    %3202 = vmatpush2.xpose.msra.mxu0 0.0
    %3203 = vmatprep.subr.mxu0 0.0
    %3204 = vmatpush2.xpose.msra.mxu0 0.0
    %3205 = vmatprep.subr.mxu0 0.0
    %3206 = vmatpush2.xpose.msra.mxu0 0.0
    %3207 = vmatprep.subr.mxu0 0.0
    %3208 = vmatpush2.xpose.msra.mxu0 0.0
    %3209 = vmatprep.mubr.f32.mxu0 0.0
    %3210 = vmatmul.mubr.f32.gmra.mxu0 %v3141
    %v3211 = vpop.f32.mrf.mxu0
    %v3212 = vadd.f32 0.0, %v3211
    %v3213 = vpop.f32.mrf.mxu0
    %3214 = vdwg.mxu0
    %3215 = vrot.lane.b32.xlu0 %v2756, 96
    %v3216 = vpop.permute.xlu0 %3215
    %v3217 = vsel %vm582, %v2756, 0
    %v3219 = vsel %vm582, %v3216, 0
    %3221 = vmatprep.subr.mxu0 0.0
    %3222 = vmatpush1.xpose.msra.mxu0 0.0
    %3223 = vmatprep.subr.mxu0 0.0
    %3224 = vmatpush1.xpose.msra.mxu0 0.0
    %3225 = vmatprep.subr.mxu0 0.0
    %3226 = vmatpush1.xpose.msra.mxu0 0.0
    %3227 = vmatprep.subr.mxu0 0.0
    %3228 = vmatpush1.xpose.msra.mxu0 0.0
    %3229 = vmatprep.subr.mxu0 0.0
    %3230 = vmatpush1.xpose.msra.mxu0 0.0
    %3231 = vmatprep.subr.mxu0 0.0
    %3232 = vmatpush1.xpose.msra.mxu0 0.0
    %3233 = vmatprep.subr.mxu0 0.0
    %3234 = vmatpush1.xpose.msra.mxu0 0.0
    %3235 = vmatprep.subr.mxu0 0.0
    %3236 = vmatpush1.xpose.msra.mxu0 0.0
    %3237 = vmatprep.subr.mxu0 0.0
    %3238 = vmatpush1.xpose.msra.mxu0 0.0
    %3239 = vmatprep.subr.mxu0 0.0
    %3240 = vmatpush1.xpose.msra.mxu0 0.0
    %3241 = vmatprep.subr.mxu0 0.0
    %3242 = vmatpush1.xpose.msra.mxu0 0.0
    %3243 = vmatprep.subr.mxu0 0.0
    %3244 = vmatpush1.xpose.msra.mxu0 0.0
    %3245 = vmatprep.subr.mxu0 0.0
    %3246 = vmatpush1.xpose.msra.mxu0 0.0
    %3247 = vmatprep.subr.mxu0 0.0
    %3248 = vmatpush1.xpose.msra.mxu0 0.0
    %3249 = vmatprep.subr.mxu0 0.0
    %3250 = vmatpush1.xpose.msra.mxu0 0.0
    %3251 = vmatprep.subr.mxu0 0.0
    %3252 = vmatpush1.xpose.msra.mxu0 %v3219
    %3253 = vmatprep.subr.mxu0 0.0
    %3254 = vmatpush2.xpose.msra.mxu0 0.0
    %3255 = vmatprep.subr.mxu0 0.0
    %3256 = vmatpush2.xpose.msra.mxu0 0.0
    %3257 = vmatprep.subr.mxu0 0.0
    %3258 = vmatpush2.xpose.msra.mxu0 0.0
    %3259 = vmatprep.subr.mxu0 0.0
    %3260 = vmatpush2.xpose.msra.mxu0 0.0
    %3261 = vmatprep.subr.mxu0 0.0
    %3262 = vmatpush2.xpose.msra.mxu0 0.0
    %3263 = vmatprep.subr.mxu0 0.0
    %3264 = vmatpush2.xpose.msra.mxu0 0.0
    %3265 = vmatprep.subr.mxu0 0.0
    %3266 = vmatpush2.xpose.msra.mxu0 0.0
    %3267 = vmatprep.subr.mxu0 0.0
    %3268 = vmatpush2.xpose.msra.mxu0 0.0
    %3269 = vmatprep.subr.mxu0 0.0
    %3270 = vmatpush2.xpose.msra.mxu0 0.0
    %3271 = vmatprep.subr.mxu0 0.0
    %3272 = vmatpush2.xpose.msra.mxu0 0.0
    %3273 = vmatprep.subr.mxu0 0.0
    %3274 = vmatpush2.xpose.msra.mxu0 0.0
    %3275 = vmatprep.subr.mxu0 0.0
    %3276 = vmatpush2.xpose.msra.mxu0 0.0
    %3277 = vmatprep.subr.mxu0 0.0
    %3278 = vmatpush2.xpose.msra.mxu0 0.0
    %3279 = vmatprep.subr.mxu0 0.0
    %3280 = vmatpush2.xpose.msra.mxu0 0.0
    %3281 = vmatprep.subr.mxu0 0.0
    %3282 = vmatpush2.xpose.msra.mxu0 0.0
    %3283 = vmatprep.subr.mxu0 0.0
    %3284 = vmatpush2.xpose.msra.mxu0 0.0
    %3285 = vmatprep.mubr.f32.mxu0 0.0
    %3286 = vmatmul.mubr.f32.gmra.mxu0 %v3217
    %v3287 = vpop.f32.mrf.mxu0
    %v3288 = vadd.f32 0.0, %v3287
    %v3289 = vpop.f32.mrf.mxu0
    %3290 = vdwg.mxu0
    %3291 = vrot.lane.b32.xlu0 %v2758, 96
    %v3292 = vpop.permute.xlu0 %3291
    %v3293 = vsel %vm582, %v2758, 0
    %v3295 = vsel %vm582, %v3292, 0
    %3297 = vmatprep.subr.mxu0 0.0
    %3298 = vmatpush1.xpose.msra.mxu0 0.0
    %3299 = vmatprep.subr.mxu0 0.0
    %3300 = vmatpush1.xpose.msra.mxu0 0.0
    %3301 = vmatprep.subr.mxu0 0.0
    %3302 = vmatpush1.xpose.msra.mxu0 0.0
    %3303 = vmatprep.subr.mxu0 0.0
    %3304 = vmatpush1.xpose.msra.mxu0 0.0
    %3305 = vmatprep.subr.mxu0 0.0
    %3306 = vmatpush1.xpose.msra.mxu0 0.0
    %3307 = vmatprep.subr.mxu0 0.0
    %3308 = vmatpush1.xpose.msra.mxu0 0.0
    %3309 = vmatprep.subr.mxu0 0.0
    %3310 = vmatpush1.xpose.msra.mxu0 0.0
    %3311 = vmatprep.subr.mxu0 0.0
    %3312 = vmatpush1.xpose.msra.mxu0 0.0
    %3313 = vmatprep.subr.mxu0 0.0
    %3314 = vmatpush1.xpose.msra.mxu0 0.0
    %3315 = vmatprep.subr.mxu0 0.0
    %3316 = vmatpush1.xpose.msra.mxu0 0.0
    %3317 = vmatprep.subr.mxu0 0.0
    %3318 = vmatpush1.xpose.msra.mxu0 0.0
    %3319 = vmatprep.subr.mxu0 0.0
    %3320 = vmatpush1.xpose.msra.mxu0 0.0
    %3321 = vmatprep.subr.mxu0 0.0
    %3322 = vmatpush1.xpose.msra.mxu0 0.0
    %3323 = vmatprep.subr.mxu0 0.0
    %3324 = vmatpush1.xpose.msra.mxu0 0.0
    %3325 = vmatprep.subr.mxu0 0.0
    %3326 = vmatpush1.xpose.msra.mxu0 0.0
    %3327 = vmatprep.subr.mxu0 0.0
    %3328 = vmatpush1.xpose.msra.mxu0 %v3295
    %3329 = vmatprep.subr.mxu0 0.0
    %3330 = vmatpush2.xpose.msra.mxu0 0.0
    %3331 = vmatprep.subr.mxu0 0.0
    %3332 = vmatpush2.xpose.msra.mxu0 0.0
    %3333 = vmatprep.subr.mxu0 0.0
    %3334 = vmatpush2.xpose.msra.mxu0 0.0
    %3335 = vmatprep.subr.mxu0 0.0
    %3336 = vmatpush2.xpose.msra.mxu0 0.0
    %3337 = vmatprep.subr.mxu0 0.0
    %3338 = vmatpush2.xpose.msra.mxu0 0.0
    %3339 = vmatprep.subr.mxu0 0.0
    %3340 = vmatpush2.xpose.msra.mxu0 0.0
    %3341 = vmatprep.subr.mxu0 0.0
    %3342 = vmatpush2.xpose.msra.mxu0 0.0
    %3343 = vmatprep.subr.mxu0 0.0
    %3344 = vmatpush2.xpose.msra.mxu0 0.0
    %3345 = vmatprep.subr.mxu0 0.0
    %3346 = vmatpush2.xpose.msra.mxu0 0.0
    %3347 = vmatprep.subr.mxu0 0.0
    %3348 = vmatpush2.xpose.msra.mxu0 0.0
    %3349 = vmatprep.subr.mxu0 0.0
    %3350 = vmatpush2.xpose.msra.mxu0 0.0
    %3351 = vmatprep.subr.mxu0 0.0
    %3352 = vmatpush2.xpose.msra.mxu0 0.0
    %3353 = vmatprep.subr.mxu0 0.0
    %3354 = vmatpush2.xpose.msra.mxu0 0.0
    %3355 = vmatprep.subr.mxu0 0.0
    %3356 = vmatpush2.xpose.msra.mxu0 0.0
    %3357 = vmatprep.subr.mxu0 0.0
    %3358 = vmatpush2.xpose.msra.mxu0 0.0
    %3359 = vmatprep.subr.mxu0 0.0
    %3360 = vmatpush2.xpose.msra.mxu0 0.0
    %3361 = vmatprep.mubr.f32.mxu0 0.0
    %3362 = vmatmul.mubr.f32.gmra.mxu0 %v3293
    %v3363 = vpop.f32.mrf.mxu0
    %v3364 = vadd.f32 0.0, %v3363
    %v3365 = vpop.f32.mrf.mxu0
    %3366 = vdwg.mxu0
    %v3367 = vmul.f32 %v2832, 0.35355338
    %v3368 = vmul.f32 %v2908, 0.35355338
    %v3369 = vmul.f32 %v2984, 0.35355338
    %v3370 = vmul.f32 %v3060, 0.35355338
    %v3371 = vmul.f32 %v3136, 0.35355338
    %v3372 = vmul.f32 %v3212, 0.35355338
    %v3373 = vmul.f32 %v3288, 0.35355338
    %v3374 = vmul.f32 %v3364, 0.35355338
    %v3375 = vadd.f32 %v3367, %v93
    %v3376 = vadd.f32 %v3368, %v94
    %v3377 = vadd.f32 %v3369, %v95
    %v3378 = vadd.f32 %v3370, %v96
    %v3379 = vadd.f32 %v3371, %v97
    %v3380 = vadd.f32 %v3372, %v98
    %v3381 = vadd.f32 %v3373, %v99
    %v3382 = vadd.f32 %v3374, %v100
    %v3383 = vsel %vm582, %v3375, -inf
    %3384 = vmax.xlane.f32.xlu0 %v3383
    %v3385 = vpop.xlane.xlu0 %3384
    %v3386 = vsel %vm582, %v3376, -inf
    %3387 = vmax.xlane.f32.xlu0 %v3386
    %v3388 = vpop.xlane.xlu0 %3387
    %v3389 = vsel %vm582, %v3377, -inf
    %3390 = vmax.xlane.f32.xlu0 %v3389
    %v3391 = vpop.xlane.xlu0 %3390
    %v3392 = vsel %vm582, %v3378, -inf
    %3393 = vmax.xlane.f32.xlu0 %v3392
    %v3394 = vpop.xlane.xlu0 %3393
    %v3395 = vsel %vm582, %v3379, -inf
    %3396 = vmax.xlane.f32.xlu0 %v3395
    %v3397 = vpop.xlane.xlu0 %3396
    %v3398 = vsel %vm582, %v3380, -inf
    %3399 = vmax.xlane.f32.xlu0 %v3398
    %v3400 = vpop.xlane.xlu0 %3399
    %v3401 = vsel %vm582, %v3381, -inf
    %3402 = vmax.xlane.f32.xlu0 %v3401
    %v3403 = vpop.xlane.xlu0 %3402
    %v3404 = vsel %vm582, %v3382, -inf
    %3405 = vmax.xlane.f32.xlu0 %v3404
    %v3406 = vpop.xlane.xlu0 %3405
    %v3407 = vsub.f32 %v3375, %v3385
    %v3408 = vsub.f32 %v3376, %v3388
    %v3409 = vsub.f32 %v3377, %v3391
    %v3410 = vsub.f32 %v3378, %v3394
    %v3411 = vsub.f32 %v3379, %v3397
    %v3412 = vsub.f32 %v3380, %v3400
    %v3413 = vsub.f32 %v3381, %v3403
    %v3414 = vsub.f32 %v3382, %v3406
    %v3415 = vmul.f32 %v3407, 1.442695
    %v3416 = vpow.pop %v3415
    %v3417 = vmul.f32 %v3408, 1.442695
    %v3418 = vpow.pop %v3417
    %v3419 = vmul.f32 %v3409, 1.442695
    %v3420 = vpow.pop %v3419
    %v3421 = vmul.f32 %v3410, 1.442695
    %v3422 = vpow.pop %v3421
    %v3423 = vmul.f32 %v3411, 1.442695
    %v3424 = vpow.pop %v3423
    %v3425 = vmul.f32 %v3412, 1.442695
    %v3426 = vpow.pop %v3425
    %v3427 = vmul.f32 %v3413, 1.442695
    %v3428 = vpow.pop %v3427
    %v3429 = vmul.f32 %v3414, 1.442695
    %v3430 = vpow.pop %v3429
    %v3431 = vsel %vm582, %v3416, 0.0
    %3432 = vadd.xlane.f32.xlu0 %v3431
    %v3433 = vpop.xlane.xlu0 %3432
    %v3434 = vsel %vm582, %v3418, 0.0
    %3435 = vadd.xlane.f32.xlu0 %v3434
    %v3436 = vpop.xlane.xlu0 %3435
    %v3437 = vsel %vm582, %v3420, 0.0
    %3438 = vadd.xlane.f32.xlu0 %v3437
    %v3439 = vpop.xlane.xlu0 %3438
    %v3440 = vsel %vm582, %v3422, 0.0
    %3441 = vadd.xlane.f32.xlu0 %v3440
    %v3442 = vpop.xlane.xlu0 %3441
    %v3443 = vsel %vm582, %v3424, 0.0
    %3444 = vadd.xlane.f32.xlu0 %v3443
    %v3445 = vpop.xlane.xlu0 %3444
    %v3446 = vsel %vm582, %v3426, 0.0
    %3447 = vadd.xlane.f32.xlu0 %v3446
    %v3448 = vpop.xlane.xlu0 %3447
    %v3449 = vsel %vm582, %v3428, 0.0
    %3450 = vadd.xlane.f32.xlu0 %v3449
    %v3451 = vpop.xlane.xlu0 %3450
    %v3452 = vsel %vm582, %v3430, 0.0
    %3453 = vadd.xlane.f32.xlu0 %v3452
    %v3454 = vpop.xlane.xlu0 %3453
    %v3455 = vrcp.pop %v3433
    %v3456 = vrcp.pop %v3436
    %v3457 = vrcp.pop %v3439
    %v3458 = vrcp.pop %v3442
    %v3459 = vrcp.pop %v3445
    %v3460 = vrcp.pop %v3448
    %v3461 = vrcp.pop %v3451
    %v3462 = vrcp.pop %v3454
    %v3463 = vmul.f32 %v3416, %v3455
    %v3464 = vmul.f32 %v3418, %v3456
    %v3465 = vmul.f32 %v3420, %v3457
    %v3466 = vmul.f32 %v3422, %v3458
    %v3467 = vmul.f32 %v3424, %v3459
    %v3468 = vmul.f32 %v3426, %v3460
    %v3469 = vmul.f32 %v3428, %v3461
    %v3470 = vmul.f32 %v3430, %v3462
    %3471 = vrot.lane.b32.xlu0 %v2737, 64
    %v3472 = vpop.permute.xlu0 %3471
    %v3475 = vsel %vm582, %v3463, 0
    %3477 = vmatprep.subr.mxu0 0.0
    %3478 = vmatpush1.msra.mxu0 0.0
    %3479 = vmatprep.subr.mxu0 0.0
    %3480 = vmatpush1.msra.mxu0 0.0
    %3481 = vmatprep.subr.mxu0 0.0
    %3482 = vmatpush1.msra.mxu0 0.0
    %3483 = vmatprep.subr.mxu0 0.0
    %3484 = vmatpush1.msra.mxu0 0.0
    %3485 = vmatprep.subr.mxu0 0.0
    %3486 = vmatpush1.msra.mxu0 0.0
    %3487 = vmatprep.subr.mxu0 0.0
    %3488 = vmatpush1.msra.mxu0 0.0
    %3489 = vmatprep.subr.mxu0 0.0
    %3490 = vmatpush1.msra.mxu0 0.0
    %3491 = vmatprep.subr.mxu0 0.0
    %3492 = vmatpush1.msra.mxu0 0.0
    %3493 = vmatprep.subr.mxu0 0.0
    %3494 = vmatpush1.msra.mxu0 0.0
    %3495 = vmatprep.subr.mxu0 0.0
    %3496 = vmatpush1.msra.mxu0 0.0
    %3497 = vmatprep.subr.mxu0 0.0
    %3498 = vmatpush1.msra.mxu0 0.0
    %3499 = vmatprep.subr.mxu0 0.0
    %3500 = vmatpush1.msra.mxu0 0.0
    %3501 = vmatprep.subr.mxu0 0.0
    %3502 = vmatpush1.msra.mxu0 0.0
    %3503 = vmatprep.subr.mxu0 0.0
    %3504 = vmatpush1.msra.mxu0 0.0
    %3505 = vmatprep.subr.mxu0 0.0
    %3506 = vmatpush1.msra.mxu0 0.0
    %3507 = vmatprep.subr.mxu0 0.0
    %3508 = vmatpush1.msra.mxu0 %v3472
    %3509 = vmatprep.subr.mxu0 0.0
    %3510 = vmatpush2.msra.mxu0 0.0
    %3511 = vmatprep.subr.mxu0 0.0
    %3512 = vmatpush2.msra.mxu0 0.0
    %3513 = vmatprep.subr.mxu0 0.0
    %3514 = vmatpush2.msra.mxu0 0.0
    %3515 = vmatprep.subr.mxu0 0.0
    %3516 = vmatpush2.msra.mxu0 0.0
    %3517 = vmatprep.subr.mxu0 0.0
    %3518 = vmatpush2.msra.mxu0 0.0
    %3519 = vmatprep.subr.mxu0 0.0
    %3520 = vmatpush2.msra.mxu0 0.0
    %3521 = vmatprep.subr.mxu0 0.0
    %3522 = vmatpush2.msra.mxu0 0.0
    %3523 = vmatprep.subr.mxu0 0.0
    %3524 = vmatpush2.msra.mxu0 0.0
    %3525 = vmatprep.subr.mxu0 0.0
    %3526 = vmatpush2.msra.mxu0 0.0
    %3527 = vmatprep.subr.mxu0 0.0
    %3528 = vmatpush2.msra.mxu0 0.0
    %3529 = vmatprep.subr.mxu0 0.0
    %3530 = vmatpush2.msra.mxu0 0.0
    %3531 = vmatprep.subr.mxu0 0.0
    %3532 = vmatpush2.msra.mxu0 0.0
    %3533 = vmatprep.subr.mxu0 0.0
    %3534 = vmatpush2.msra.mxu0 0.0
    %3535 = vmatprep.subr.mxu0 0.0
    %3536 = vmatpush2.msra.mxu0 0.0
    %3537 = vmatprep.subr.mxu0 0.0
    %3538 = vmatpush2.msra.mxu0 0.0
    %3539 = vmatprep.subr.mxu0 0.0
    %3540 = vmatpush2.msra.mxu0 0.0
    %3541 = vmatprep.mubr.f32.mxu0 0.0
    %3542 = vmatmul.mubr.f32.gmra.mxu0 %v3475
    %v3543 = vpop.f32.mrf.mxu0
    %v3544 = vadd.f32 0.0, %v3543
    %v3545 = vpop.f32.mrf.mxu0
    %3546 = vdwg.mxu0
    %3547 = vrot.lane.b32.xlu0 %v2742, 64
    %v3548 = vpop.permute.xlu0 %3547
    %v3551 = vsel %vm582, %v3464, 0
    %3553 = vmatprep.subr.mxu0 0.0
    %3554 = vmatpush1.msra.mxu0 0.0
    %3555 = vmatprep.subr.mxu0 0.0
    %3556 = vmatpush1.msra.mxu0 0.0
    %3557 = vmatprep.subr.mxu0 0.0
    %3558 = vmatpush1.msra.mxu0 0.0
    %3559 = vmatprep.subr.mxu0 0.0
    %3560 = vmatpush1.msra.mxu0 0.0
    %3561 = vmatprep.subr.mxu0 0.0
    %3562 = vmatpush1.msra.mxu0 0.0
    %3563 = vmatprep.subr.mxu0 0.0
    %3564 = vmatpush1.msra.mxu0 0.0
    %3565 = vmatprep.subr.mxu0 0.0
    %3566 = vmatpush1.msra.mxu0 0.0
    %3567 = vmatprep.subr.mxu0 0.0
    %3568 = vmatpush1.msra.mxu0 0.0
    %3569 = vmatprep.subr.mxu0 0.0
    %3570 = vmatpush1.msra.mxu0 0.0
    %3571 = vmatprep.subr.mxu0 0.0
    %3572 = vmatpush1.msra.mxu0 0.0
    %3573 = vmatprep.subr.mxu0 0.0
    %3574 = vmatpush1.msra.mxu0 0.0
    %3575 = vmatprep.subr.mxu0 0.0
    %3576 = vmatpush1.msra.mxu0 0.0
    %3577 = vmatprep.subr.mxu0 0.0
    %3578 = vmatpush1.msra.mxu0 0.0
    %3579 = vmatprep.subr.mxu0 0.0
    %3580 = vmatpush1.msra.mxu0 0.0
    %3581 = vmatprep.subr.mxu0 0.0
    %3582 = vmatpush1.msra.mxu0 0.0
    %3583 = vmatprep.subr.mxu0 0.0
    %3584 = vmatpush1.msra.mxu0 %v3548
    %3585 = vmatprep.subr.mxu0 0.0
    %3586 = vmatpush2.msra.mxu0 0.0
    %3587 = vmatprep.subr.mxu0 0.0
    %3588 = vmatpush2.msra.mxu0 0.0
    %3589 = vmatprep.subr.mxu0 0.0
    %3590 = vmatpush2.msra.mxu0 0.0
    %3591 = vmatprep.subr.mxu0 0.0
    %3592 = vmatpush2.msra.mxu0 0.0
    %3593 = vmatprep.subr.mxu0 0.0
    %3594 = vmatpush2.msra.mxu0 0.0
    %3595 = vmatprep.subr.mxu0 0.0
    %3596 = vmatpush2.msra.mxu0 0.0
    %3597 = vmatprep.subr.mxu0 0.0
    %3598 = vmatpush2.msra.mxu0 0.0
    %3599 = vmatprep.subr.mxu0 0.0
    %3600 = vmatpush2.msra.mxu0 0.0
    %3601 = vmatprep.subr.mxu0 0.0
    %3602 = vmatpush2.msra.mxu0 0.0
    %3603 = vmatprep.subr.mxu0 0.0
    %3604 = vmatpush2.msra.mxu0 0.0
    %3605 = vmatprep.subr.mxu0 0.0
    %3606 = vmatpush2.msra.mxu0 0.0
    %3607 = vmatprep.subr.mxu0 0.0
    %3608 = vmatpush2.msra.mxu0 0.0
    %3609 = vmatprep.subr.mxu0 0.0
    %3610 = vmatpush2.msra.mxu0 0.0
    %3611 = vmatprep.subr.mxu0 0.0
    %3612 = vmatpush2.msra.mxu0 0.0
    %3613 = vmatprep.subr.mxu0 0.0
    %3614 = vmatpush2.msra.mxu0 0.0
    %3615 = vmatprep.subr.mxu0 0.0
    %3616 = vmatpush2.msra.mxu0 0.0
    %3617 = vmatprep.mubr.f32.mxu0 0.0
    %3618 = vmatmul.mubr.f32.gmra.mxu0 %v3551
    %v3619 = vpop.f32.mrf.mxu0
    %v3620 = vadd.f32 0.0, %v3619
    %v3621 = vpop.f32.mrf.mxu0
    %3622 = vdwg.mxu0
    %3623 = vrot.lane.b32.xlu0 %v2748, 64
    %v3624 = vpop.permute.xlu0 %3623
    %v3627 = vsel %vm582, %v3465, 0
    %3629 = vmatprep.subr.mxu0 0.0
    %3630 = vmatpush1.msra.mxu0 0.0
    %3631 = vmatprep.subr.mxu0 0.0
    %3632 = vmatpush1.msra.mxu0 0.0
    %3633 = vmatprep.subr.mxu0 0.0
    %3634 = vmatpush1.msra.mxu0 0.0
    %3635 = vmatprep.subr.mxu0 0.0
    %3636 = vmatpush1.msra.mxu0 0.0
    %3637 = vmatprep.subr.mxu0 0.0
    %3638 = vmatpush1.msra.mxu0 0.0
    %3639 = vmatprep.subr.mxu0 0.0
    %3640 = vmatpush1.msra.mxu0 0.0
    %3641 = vmatprep.subr.mxu0 0.0
    %3642 = vmatpush1.msra.mxu0 0.0
    %3643 = vmatprep.subr.mxu0 0.0
    %3644 = vmatpush1.msra.mxu0 0.0
    %3645 = vmatprep.subr.mxu0 0.0
    %3646 = vmatpush1.msra.mxu0 0.0
    %3647 = vmatprep.subr.mxu0 0.0
    %3648 = vmatpush1.msra.mxu0 0.0
    %3649 = vmatprep.subr.mxu0 0.0
    %3650 = vmatpush1.msra.mxu0 0.0
    %3651 = vmatprep.subr.mxu0 0.0
    %3652 = vmatpush1.msra.mxu0 0.0
    %3653 = vmatprep.subr.mxu0 0.0
    %3654 = vmatpush1.msra.mxu0 0.0
    %3655 = vmatprep.subr.mxu0 0.0
    %3656 = vmatpush1.msra.mxu0 0.0
    %3657 = vmatprep.subr.mxu0 0.0
    %3658 = vmatpush1.msra.mxu0 0.0
    %3659 = vmatprep.subr.mxu0 0.0
    %3660 = vmatpush1.msra.mxu0 %v3624
    %3661 = vmatprep.subr.mxu0 0.0
    %3662 = vmatpush2.msra.mxu0 0.0
    %3663 = vmatprep.subr.mxu0 0.0
    %3664 = vmatpush2.msra.mxu0 0.0
    %3665 = vmatprep.subr.mxu0 0.0
    %3666 = vmatpush2.msra.mxu0 0.0
    %3667 = vmatprep.subr.mxu0 0.0
    %3668 = vmatpush2.msra.mxu0 0.0
    %3669 = vmatprep.subr.mxu0 0.0
    %3670 = vmatpush2.msra.mxu0 0.0
    %3671 = vmatprep.subr.mxu0 0.0
    %3672 = vmatpush2.msra.mxu0 0.0
    %3673 = vmatprep.subr.mxu0 0.0
    %3674 = vmatpush2.msra.mxu0 0.0
    %3675 = vmatprep.subr.mxu0 0.0
    %3676 = vmatpush2.msra.mxu0 0.0
    %3677 = vmatprep.subr.mxu0 0.0
    %3678 = vmatpush2.msra.mxu0 0.0
    %3679 = vmatprep.subr.mxu0 0.0
    %3680 = vmatpush2.msra.mxu0 0.0
    %3681 = vmatprep.subr.mxu0 0.0
    %3682 = vmatpush2.msra.mxu0 0.0
    %3683 = vmatprep.subr.mxu0 0.0
    %3684 = vmatpush2.msra.mxu0 0.0
    %3685 = vmatprep.subr.mxu0 0.0
    %3686 = vmatpush2.msra.mxu0 0.0
    %3687 = vmatprep.subr.mxu0 0.0
    %3688 = vmatpush2.msra.mxu0 0.0
    %3689 = vmatprep.subr.mxu0 0.0
    %3690 = vmatpush2.msra.mxu0 0.0
    %3691 = vmatprep.subr.mxu0 0.0
    %3692 = vmatpush2.msra.mxu0 0.0
    %3693 = vmatprep.mubr.f32.mxu0 0.0
    %3694 = vmatmul.mubr.f32.gmra.mxu0 %v3627
    %v3695 = vpop.f32.mrf.mxu0
    %v3696 = vadd.f32 0.0, %v3695
    %v3697 = vpop.f32.mrf.mxu0
    %3698 = vdwg.mxu0
    %3699 = vrot.lane.b32.xlu0 %v2750, 64
    %v3700 = vpop.permute.xlu0 %3699
    %v3703 = vsel %vm582, %v3466, 0
    %3705 = vmatprep.subr.mxu0 0.0
    %3706 = vmatpush1.msra.mxu0 0.0
    %3707 = vmatprep.subr.mxu0 0.0
    %3708 = vmatpush1.msra.mxu0 0.0
    %3709 = vmatprep.subr.mxu0 0.0
    %3710 = vmatpush1.msra.mxu0 0.0
    %3711 = vmatprep.subr.mxu0 0.0
    %3712 = vmatpush1.msra.mxu0 0.0
    %3713 = vmatprep.subr.mxu0 0.0
    %3714 = vmatpush1.msra.mxu0 0.0
    %3715 = vmatprep.subr.mxu0 0.0
    %3716 = vmatpush1.msra.mxu0 0.0
    %3717 = vmatprep.subr.mxu0 0.0
    %3718 = vmatpush1.msra.mxu0 0.0
    %3719 = vmatprep.subr.mxu0 0.0
    %3720 = vmatpush1.msra.mxu0 0.0
    %3721 = vmatprep.subr.mxu0 0.0
    %3722 = vmatpush1.msra.mxu0 0.0
    %3723 = vmatprep.subr.mxu0 0.0
    %3724 = vmatpush1.msra.mxu0 0.0
    %3725 = vmatprep.subr.mxu0 0.0
    %3726 = vmatpush1.msra.mxu0 0.0
    %3727 = vmatprep.subr.mxu0 0.0
    %3728 = vmatpush1.msra.mxu0 0.0
    %3729 = vmatprep.subr.mxu0 0.0
    %3730 = vmatpush1.msra.mxu0 0.0
    %3731 = vmatprep.subr.mxu0 0.0
    %3732 = vmatpush1.msra.mxu0 0.0
    %3733 = vmatprep.subr.mxu0 0.0
    %3734 = vmatpush1.msra.mxu0 0.0
    %3735 = vmatprep.subr.mxu0 0.0
    %3736 = vmatpush1.msra.mxu0 %v3700
    %3737 = vmatprep.subr.mxu0 0.0
    %3738 = vmatpush2.msra.mxu0 0.0
    %3739 = vmatprep.subr.mxu0 0.0
    %3740 = vmatpush2.msra.mxu0 0.0
    %3741 = vmatprep.subr.mxu0 0.0
    %3742 = vmatpush2.msra.mxu0 0.0
    %3743 = vmatprep.subr.mxu0 0.0
    %3744 = vmatpush2.msra.mxu0 0.0
    %3745 = vmatprep.subr.mxu0 0.0
    %3746 = vmatpush2.msra.mxu0 0.0
    %3747 = vmatprep.subr.mxu0 0.0
    %3748 = vmatpush2.msra.mxu0 0.0
    %3749 = vmatprep.subr.mxu0 0.0
    %3750 = vmatpush2.msra.mxu0 0.0
    %3751 = vmatprep.subr.mxu0 0.0
    %3752 = vmatpush2.msra.mxu0 0.0
    %3753 = vmatprep.subr.mxu0 0.0
    %3754 = vmatpush2.msra.mxu0 0.0
    %3755 = vmatprep.subr.mxu0 0.0
    %3756 = vmatpush2.msra.mxu0 0.0
    %3757 = vmatprep.subr.mxu0 0.0
    %3758 = vmatpush2.msra.mxu0 0.0
    %3759 = vmatprep.subr.mxu0 0.0
    %3760 = vmatpush2.msra.mxu0 0.0
    %3761 = vmatprep.subr.mxu0 0.0
    %3762 = vmatpush2.msra.mxu0 0.0
    %3763 = vmatprep.subr.mxu0 0.0
    %3764 = vmatpush2.msra.mxu0 0.0
    %3765 = vmatprep.subr.mxu0 0.0
    %3766 = vmatpush2.msra.mxu0 0.0
    %3767 = vmatprep.subr.mxu0 0.0
    %3768 = vmatpush2.msra.mxu0 0.0
    %3769 = vmatprep.mubr.f32.mxu0 0.0
    %3770 = vmatmul.mubr.f32.gmra.mxu0 %v3703
    %v3771 = vpop.f32.mrf.mxu0
    %v3772 = vadd.f32 0.0, %v3771
    %v3773 = vpop.f32.mrf.mxu0
    %3774 = vdwg.mxu0
    %3775 = vrot.lane.b32.xlu0 %v2752, 64
    %v3776 = vpop.permute.xlu0 %3775
    %v3779 = vsel %vm582, %v3467, 0
    %3781 = vmatprep.subr.mxu0 0.0
    %3782 = vmatpush1.msra.mxu0 0.0
    %3783 = vmatprep.subr.mxu0 0.0
    %3784 = vmatpush1.msra.mxu0 0.0
    %3785 = vmatprep.subr.mxu0 0.0
    %3786 = vmatpush1.msra.mxu0 0.0
    %3787 = vmatprep.subr.mxu0 0.0
    %3788 = vmatpush1.msra.mxu0 0.0
    %3789 = vmatprep.subr.mxu0 0.0
    %3790 = vmatpush1.msra.mxu0 0.0
    %3791 = vmatprep.subr.mxu0 0.0
    %3792 = vmatpush1.msra.mxu0 0.0
    %3793 = vmatprep.subr.mxu0 0.0
    %3794 = vmatpush1.msra.mxu0 0.0
    %3795 = vmatprep.subr.mxu0 0.0
    %3796 = vmatpush1.msra.mxu0 0.0
    %3797 = vmatprep.subr.mxu0 0.0
    %3798 = vmatpush1.msra.mxu0 0.0
    %3799 = vmatprep.subr.mxu0 0.0
    %3800 = vmatpush1.msra.mxu0 0.0
    %3801 = vmatprep.subr.mxu0 0.0
    %3802 = vmatpush1.msra.mxu0 0.0
    %3803 = vmatprep.subr.mxu0 0.0
    %3804 = vmatpush1.msra.mxu0 0.0
    %3805 = vmatprep.subr.mxu0 0.0
    %3806 = vmatpush1.msra.mxu0 0.0
    %3807 = vmatprep.subr.mxu0 0.0
    %3808 = vmatpush1.msra.mxu0 0.0
    %3809 = vmatprep.subr.mxu0 0.0
    %3810 = vmatpush1.msra.mxu0 0.0
    %3811 = vmatprep.subr.mxu0 0.0
    %3812 = vmatpush1.msra.mxu0 %v3776
    %3813 = vmatprep.subr.mxu0 0.0
    %3814 = vmatpush2.msra.mxu0 0.0
    %3815 = vmatprep.subr.mxu0 0.0
    %3816 = vmatpush2.msra.mxu0 0.0
    %3817 = vmatprep.subr.mxu0 0.0
    %3818 = vmatpush2.msra.mxu0 0.0
    %3819 = vmatprep.subr.mxu0 0.0
    %3820 = vmatpush2.msra.mxu0 0.0
    %3821 = vmatprep.subr.mxu0 0.0
    %3822 = vmatpush2.msra.mxu0 0.0
    %3823 = vmatprep.subr.mxu0 0.0
    %3824 = vmatpush2.msra.mxu0 0.0
    %3825 = vmatprep.subr.mxu0 0.0
    %3826 = vmatpush2.msra.mxu0 0.0
    %3827 = vmatprep.subr.mxu0 0.0
    %3828 = vmatpush2.msra.mxu0 0.0
    %3829 = vmatprep.subr.mxu0 0.0
    %3830 = vmatpush2.msra.mxu0 0.0
    %3831 = vmatprep.subr.mxu0 0.0
    %3832 = vmatpush2.msra.mxu0 0.0
    %3833 = vmatprep.subr.mxu0 0.0
    %3834 = vmatpush2.msra.mxu0 0.0
    %3835 = vmatprep.subr.mxu0 0.0
    %3836 = vmatpush2.msra.mxu0 0.0
    %3837 = vmatprep.subr.mxu0 0.0
    %3838 = vmatpush2.msra.mxu0 0.0
    %3839 = vmatprep.subr.mxu0 0.0
    %3840 = vmatpush2.msra.mxu0 0.0
    %3841 = vmatprep.subr.mxu0 0.0
    %3842 = vmatpush2.msra.mxu0 0.0
    %3843 = vmatprep.subr.mxu0 0.0
    %3844 = vmatpush2.msra.mxu0 0.0
    %3845 = vmatprep.mubr.f32.mxu0 0.0
    %3846 = vmatmul.mubr.f32.gmra.mxu0 %v3779
    %v3847 = vpop.f32.mrf.mxu0
    %v3848 = vadd.f32 0.0, %v3847
    %v3849 = vpop.f32.mrf.mxu0
    %3850 = vdwg.mxu0
    %3851 = vrot.lane.b32.xlu0 %v2754, 64
    %v3852 = vpop.permute.xlu0 %3851
    %v3855 = vsel %vm582, %v3468, 0
    %3857 = vmatprep.subr.mxu0 0.0
    %3858 = vmatpush1.msra.mxu0 0.0
    %3859 = vmatprep.subr.mxu0 0.0
    %3860 = vmatpush1.msra.mxu0 0.0
    %3861 = vmatprep.subr.mxu0 0.0
    %3862 = vmatpush1.msra.mxu0 0.0
    %3863 = vmatprep.subr.mxu0 0.0
    %3864 = vmatpush1.msra.mxu0 0.0
    %3865 = vmatprep.subr.mxu0 0.0
    %3866 = vmatpush1.msra.mxu0 0.0
    %3867 = vmatprep.subr.mxu0 0.0
    %3868 = vmatpush1.msra.mxu0 0.0
    %3869 = vmatprep.subr.mxu0 0.0
    %3870 = vmatpush1.msra.mxu0 0.0
    %3871 = vmatprep.subr.mxu0 0.0
    %3872 = vmatpush1.msra.mxu0 0.0
    %3873 = vmatprep.subr.mxu0 0.0
    %3874 = vmatpush1.msra.mxu0 0.0
    %3875 = vmatprep.subr.mxu0 0.0
    %3876 = vmatpush1.msra.mxu0 0.0
    %3877 = vmatprep.subr.mxu0 0.0
    %3878 = vmatpush1.msra.mxu0 0.0
    %3879 = vmatprep.subr.mxu0 0.0
    %3880 = vmatpush1.msra.mxu0 0.0
    %3881 = vmatprep.subr.mxu0 0.0
    %3882 = vmatpush1.msra.mxu0 0.0
    %3883 = vmatprep.subr.mxu0 0.0
    %3884 = vmatpush1.msra.mxu0 0.0
    %3885 = vmatprep.subr.mxu0 0.0
    %3886 = vmatpush1.msra.mxu0 0.0
    %3887 = vmatprep.subr.mxu0 0.0
    %3888 = vmatpush1.msra.mxu0 %v3852
    %3889 = vmatprep.subr.mxu0 0.0
    %3890 = vmatpush2.msra.mxu0 0.0
    %3891 = vmatprep.subr.mxu0 0.0
    %3892 = vmatpush2.msra.mxu0 0.0
    %3893 = vmatprep.subr.mxu0 0.0
    %3894 = vmatpush2.msra.mxu0 0.0
    %3895 = vmatprep.subr.mxu0 0.0
    %3896 = vmatpush2.msra.mxu0 0.0
    %3897 = vmatprep.subr.mxu0 0.0
    %3898 = vmatpush2.msra.mxu0 0.0
    %3899 = vmatprep.subr.mxu0 0.0
    %3900 = vmatpush2.msra.mxu0 0.0
    %3901 = vmatprep.subr.mxu0 0.0
    %3902 = vmatpush2.msra.mxu0 0.0
    %3903 = vmatprep.subr.mxu0 0.0
    %3904 = vmatpush2.msra.mxu0 0.0
    %3905 = vmatprep.subr.mxu0 0.0
    %3906 = vmatpush2.msra.mxu0 0.0
    %3907 = vmatprep.subr.mxu0 0.0
    %3908 = vmatpush2.msra.mxu0 0.0
    %3909 = vmatprep.subr.mxu0 0.0
    %3910 = vmatpush2.msra.mxu0 0.0
    %3911 = vmatprep.subr.mxu0 0.0
    %3912 = vmatpush2.msra.mxu0 0.0
    %3913 = vmatprep.subr.mxu0 0.0
    %3914 = vmatpush2.msra.mxu0 0.0
    %3915 = vmatprep.subr.mxu0 0.0
    %3916 = vmatpush2.msra.mxu0 0.0
    %3917 = vmatprep.subr.mxu0 0.0
    %3918 = vmatpush2.msra.mxu0 0.0
    %3919 = vmatprep.subr.mxu0 0.0
    %3920 = vmatpush2.msra.mxu0 0.0
    %3921 = vmatprep.mubr.f32.mxu0 0.0
    %3922 = vmatmul.mubr.f32.gmra.mxu0 %v3855
    %v3923 = vpop.f32.mrf.mxu0
    %v3924 = vadd.f32 0.0, %v3923
    %v3925 = vpop.f32.mrf.mxu0
    %3926 = vdwg.mxu0
    %3927 = vrot.lane.b32.xlu0 %v2756, 64
    %v3928 = vpop.permute.xlu0 %3927
    %v3931 = vsel %vm582, %v3469, 0
    %3933 = vmatprep.subr.mxu0 0.0
    %3934 = vmatpush1.msra.mxu0 0.0
    %3935 = vmatprep.subr.mxu0 0.0
    %3936 = vmatpush1.msra.mxu0 0.0
    %3937 = vmatprep.subr.mxu0 0.0
    %3938 = vmatpush1.msra.mxu0 0.0
    %3939 = vmatprep.subr.mxu0 0.0
    %3940 = vmatpush1.msra.mxu0 0.0
    %3941 = vmatprep.subr.mxu0 0.0
    %3942 = vmatpush1.msra.mxu0 0.0
    %3943 = vmatprep.subr.mxu0 0.0
    %3944 = vmatpush1.msra.mxu0 0.0
    %3945 = vmatprep.subr.mxu0 0.0
    %3946 = vmatpush1.msra.mxu0 0.0
    %3947 = vmatprep.subr.mxu0 0.0
    %3948 = vmatpush1.msra.mxu0 0.0
    %3949 = vmatprep.subr.mxu0 0.0
    %3950 = vmatpush1.msra.mxu0 0.0
    %3951 = vmatprep.subr.mxu0 0.0
    %3952 = vmatpush1.msra.mxu0 0.0
    %3953 = vmatprep.subr.mxu0 0.0
    %3954 = vmatpush1.msra.mxu0 0.0
    %3955 = vmatprep.subr.mxu0 0.0
    %3956 = vmatpush1.msra.mxu0 0.0
    %3957 = vmatprep.subr.mxu0 0.0
    %3958 = vmatpush1.msra.mxu0 0.0
    %3959 = vmatprep.subr.mxu0 0.0
    %3960 = vmatpush1.msra.mxu0 0.0
    %3961 = vmatprep.subr.mxu0 0.0
    %3962 = vmatpush1.msra.mxu0 0.0
    %3963 = vmatprep.subr.mxu0 0.0
    %3964 = vmatpush1.msra.mxu0 %v3928
    %3965 = vmatprep.subr.mxu0 0.0
    %3966 = vmatpush2.msra.mxu0 0.0
    %3967 = vmatprep.subr.mxu0 0.0
    %3968 = vmatpush2.msra.mxu0 0.0
    %3969 = vmatprep.subr.mxu0 0.0
    %3970 = vmatpush2.msra.mxu0 0.0
    %3971 = vmatprep.subr.mxu0 0.0
    %3972 = vmatpush2.msra.mxu0 0.0
    %3973 = vmatprep.subr.mxu0 0.0
    %3974 = vmatpush2.msra.mxu0 0.0
    %3975 = vmatprep.subr.mxu0 0.0
    %3976 = vmatpush2.msra.mxu0 0.0
    %3977 = vmatprep.subr.mxu0 0.0
    %3978 = vmatpush2.msra.mxu0 0.0
    %3979 = vmatprep.subr.mxu0 0.0
    %3980 = vmatpush2.msra.mxu0 0.0
    %3981 = vmatprep.subr.mxu0 0.0
    %3982 = vmatpush2.msra.mxu0 0.0
    %3983 = vmatprep.subr.mxu0 0.0
    %3984 = vmatpush2.msra.mxu0 0.0
    %3985 = vmatprep.subr.mxu0 0.0
    %3986 = vmatpush2.msra.mxu0 0.0
    %3987 = vmatprep.subr.mxu0 0.0
    %3988 = vmatpush2.msra.mxu0 0.0
    %3989 = vmatprep.subr.mxu0 0.0
    %3990 = vmatpush2.msra.mxu0 0.0
    %3991 = vmatprep.subr.mxu0 0.0
    %3992 = vmatpush2.msra.mxu0 0.0
    %3993 = vmatprep.subr.mxu0 0.0
    %3994 = vmatpush2.msra.mxu0 0.0
    %3995 = vmatprep.subr.mxu0 0.0
    %3996 = vmatpush2.msra.mxu0 0.0
    %3997 = vmatprep.mubr.f32.mxu0 0.0
    %3998 = vmatmul.mubr.f32.gmra.mxu0 %v3931
    %v3999 = vpop.f32.mrf.mxu0
    %v4000 = vadd.f32 0.0, %v3999
    %v4001 = vpop.f32.mrf.mxu0
    %4002 = vdwg.mxu0
    %4003 = vrot.lane.b32.xlu0 %v2758, 64
    %v4004 = vpop.permute.xlu0 %4003
    %v4007 = vsel %vm582, %v3470, 0
    %4009 = vmatprep.subr.mxu0 0.0
    %4010 = vmatpush1.msra.mxu0 0.0
    %4011 = vmatprep.subr.mxu0 0.0
    %4012 = vmatpush1.msra.mxu0 0.0
    %4013 = vmatprep.subr.mxu0 0.0
    %4014 = vmatpush1.msra.mxu0 0.0
    %4015 = vmatprep.subr.mxu0 0.0
    %4016 = vmatpush1.msra.mxu0 0.0
    %4017 = vmatprep.subr.mxu0 0.0
    %4018 = vmatpush1.msra.mxu0 0.0
    %4019 = vmatprep.subr.mxu0 0.0
    %4020 = vmatpush1.msra.mxu0 0.0
    %4021 = vmatprep.subr.mxu0 0.0
    %4022 = vmatpush1.msra.mxu0 0.0
    %4023 = vmatprep.subr.mxu0 0.0
    %4024 = vmatpush1.msra.mxu0 0.0
    %4025 = vmatprep.subr.mxu0 0.0
    %4026 = vmatpush1.msra.mxu0 0.0
    %4027 = vmatprep.subr.mxu0 0.0
    %4028 = vmatpush1.msra.mxu0 0.0
    %4029 = vmatprep.subr.mxu0 0.0
    %4030 = vmatpush1.msra.mxu0 0.0
    %4031 = vmatprep.subr.mxu0 0.0
    %4032 = vmatpush1.msra.mxu0 0.0
    %4033 = vmatprep.subr.mxu0 0.0
    %4034 = vmatpush1.msra.mxu0 0.0
    %4035 = vmatprep.subr.mxu0 0.0
    %4036 = vmatpush1.msra.mxu0 0.0
    %4037 = vmatprep.subr.mxu0 0.0
    %4038 = vmatpush1.msra.mxu0 0.0
    %4039 = vmatprep.subr.mxu0 0.0
    %4040 = vmatpush1.msra.mxu0 %v4004
    %4041 = vmatprep.subr.mxu0 0.0
    %4042 = vmatpush2.msra.mxu0 0.0
    %4043 = vmatprep.subr.mxu0 0.0
    %4044 = vmatpush2.msra.mxu0 0.0
    %4045 = vmatprep.subr.mxu0 0.0
    %4046 = vmatpush2.msra.mxu0 0.0
    %4047 = vmatprep.subr.mxu0 0.0
    %4048 = vmatpush2.msra.mxu0 0.0
    %4049 = vmatprep.subr.mxu0 0.0
    %4050 = vmatpush2.msra.mxu0 0.0
    %4051 = vmatprep.subr.mxu0 0.0
    %4052 = vmatpush2.msra.mxu0 0.0
    %4053 = vmatprep.subr.mxu0 0.0
    %4054 = vmatpush2.msra.mxu0 0.0
    %4055 = vmatprep.subr.mxu0 0.0
    %4056 = vmatpush2.msra.mxu0 0.0
    %4057 = vmatprep.subr.mxu0 0.0
    %4058 = vmatpush2.msra.mxu0 0.0
    %4059 = vmatprep.subr.mxu0 0.0
    %4060 = vmatpush2.msra.mxu0 0.0
    %4061 = vmatprep.subr.mxu0 0.0
    %4062 = vmatpush2.msra.mxu0 0.0
    %4063 = vmatprep.subr.mxu0 0.0
    %4064 = vmatpush2.msra.mxu0 0.0
    %4065 = vmatprep.subr.mxu0 0.0
    %4066 = vmatpush2.msra.mxu0 0.0
    %4067 = vmatprep.subr.mxu0 0.0
    %4068 = vmatpush2.msra.mxu0 0.0
    %4069 = vmatprep.subr.mxu0 0.0
    %4070 = vmatpush2.msra.mxu0 0.0
    %4071 = vmatprep.subr.mxu0 0.0
    %4072 = vmatpush2.msra.mxu0 0.0
    %4073 = vmatprep.mubr.f32.mxu0 0.0
    %4074 = vmatmul.mubr.f32.gmra.mxu0 %v4007
    %v4075 = vpop.f32.mrf.mxu0
    %v4076 = vadd.f32 0.0, %v4075
    %v4077 = vpop.f32.mrf.mxu0
    %4078 = vdwg.mxu0
    %4081 = vrot.lane.b32.xlu0 %v3696, 8
    %v4082 = vpop.permute.xlu0 %4081
    %4083 = vrot.lane.b32.xlu0 %v3772, 8
    %v4084 = vpop.permute.xlu0 %4083
    %4089 = vrot.lane.b32.xlu0 %v3848, 16
    %v4090 = vpop.permute.xlu0 %4089
    %4091 = vrot.lane.b32.xlu0 %v3924, 16
    %v4092 = vpop.permute.xlu0 %4091
    %4097 = vrot.lane.b32.xlu0 %v4000, 24
    %v4098 = vpop.permute.xlu0 %4097
    %4099 = vrot.lane.b32.xlu0 %v4076, 24
    %v4100 = vpop.permute.xlu0 %4099
    %v4103 = vsel %vm582, %v3544, %v4082
    %v4104 = vsel %vm582, %v3620, %v4084
    %v4105 = vsel %vm1927, %v4103, %v4090
    %v4106 = vsel %vm1927, %v4104, %v4092
    %v4107 = vsel %vm1930, %v4105, %v4098
    %v4108 = vsel %vm1930, %v4106, %v4100
    %v4110 = vsel %vm148, %v4107, 0
    %v4113 = vsel %vm148, %v4108, 0
    %4115 = vmatprep.subr.mxu0 0.0
    %4116 = vmatpush1.msra.mxu0 0.0
    %4117 = vmatprep.subr.mxu0 0.0
    %4118 = vmatpush1.msra.mxu0 0.0
    %4119 = vmatprep.subr.mxu0 0.0
    %4120 = vmatpush1.msra.mxu0 0.0
    %4121 = vmatprep.subr.mxu0 0.0
    %4122 = vmatpush1.msra.mxu0 0.0
    %4123 = vmatprep.subr.mxu0 0.0
    %4124 = vmatpush1.msra.mxu0 0.0
    %4125 = vmatprep.subr.mxu0 0.0
    %4126 = vmatpush1.msra.mxu0 0.0
    %4127 = vmatprep.subr.mxu0 0.0
    %4128 = vmatpush1.msra.mxu0 0.0
    %4129 = vmatprep.subr.mxu0 0.0
    %4130 = vmatpush1.msra.mxu0 0.0
    %4131 = vmatprep.subr.mxu0 0.0
    %4132 = vmatpush1.msra.mxu0 0.0
    %4133 = vmatprep.subr.mxu0 0.0
    %4134 = vmatpush1.msra.mxu0 0.0
    %4135 = vmatprep.subr.mxu0 0.0
    %4136 = vmatpush1.msra.mxu0 0.0
    %4137 = vmatprep.subr.mxu0 0.0
    %4138 = vmatpush1.msra.mxu0 0.0
    %4139 = vmatprep.subr.mxu0 0.0
    %4140 = vmatpush1.msra.mxu0 %v2283
    %4141 = vmatprep.subr.mxu0 0.0
    %4142 = vmatpush1.msra.mxu0 %v2282
    %4143 = vmatprep.subr.mxu0 0.0
    %4144 = vmatpush1.msra.mxu0 %v2281
    %4145 = vmatprep.subr.mxu0 0.0
    %4146 = vmatpush1.msra.mxu0 %v2280
    %4147 = vmatprep.subr.mxu0 0.0
    %4148 = vmatpush2.msra.mxu0 0.0
    %4149 = vmatprep.subr.mxu0 0.0
    %4150 = vmatpush2.msra.mxu0 0.0
    %4151 = vmatprep.subr.mxu0 0.0
    %4152 = vmatpush2.msra.mxu0 0.0
    %4153 = vmatprep.subr.mxu0 0.0
    %4154 = vmatpush2.msra.mxu0 0.0
    %4155 = vmatprep.subr.mxu0 0.0
    %4156 = vmatpush2.msra.mxu0 0.0
    %4157 = vmatprep.subr.mxu0 0.0
    %4158 = vmatpush2.msra.mxu0 0.0
    %4159 = vmatprep.subr.mxu0 0.0
    %4160 = vmatpush2.msra.mxu0 0.0
    %4161 = vmatprep.subr.mxu0 0.0
    %4162 = vmatpush2.msra.mxu0 0.0
    %4163 = vmatprep.subr.mxu0 0.0
    %4164 = vmatpush2.msra.mxu0 0.0
    %4165 = vmatprep.subr.mxu0 0.0
    %4166 = vmatpush2.msra.mxu0 0.0
    %4167 = vmatprep.subr.mxu0 0.0
    %4168 = vmatpush2.msra.mxu0 0.0
    %4169 = vmatprep.subr.mxu0 0.0
    %4170 = vmatpush2.msra.mxu0 0.0
    %4171 = vmatprep.subr.mxu0 0.0
    %4172 = vmatpush2.msra.mxu0 0.0
    %4173 = vmatprep.subr.mxu0 0.0
    %4174 = vmatpush2.msra.mxu0 0.0
    %4175 = vmatprep.subr.mxu0 0.0
    %4176 = vmatpush2.msra.mxu0 0.0
    %4177 = vmatprep.subr.mxu0 0.0
    %4178 = vmatpush2.msra.mxu0 0.0
    %4179 = vmatprep.mubr.f32.mxu0 0.0
    %4180 = vmatmul.mubr.f32.gmra.mxu0 %v4110
    %v4181 = vpop.f32.mrf.mxu0
    %v4182 = vadd.f32 0.0, %v4181
    %v4183 = vpop.f32.mrf.mxu0
    %4184 = vmatprep.mubr.f32.mxu0 0.0
    %4185 = vmatmul.mubr.f32.gmra.mxu0 %v4113
    %v4186 = vpop.f32.mrf.mxu0
    %v4187 = vadd.f32 0.0, %v4186
    %v4188 = vpop.f32.mrf.mxu0
    %4189 = vdwg.mxu0
    %v4190 = vadd.f32 %v2266, %v4182
    %v4191 = vadd.f32 %v2267, %v4187
    %v4193 = vlaneseq
    %v4194 = vshrl.u32 %v4193, 7
    %v4195 = vsub.s32 0, %v4194
    %v4196 = vrot.slane %v2285, %v4195
    %v4198 = vadd.f32 %v4190, %v4196
    %v4199 = vadd.f32 %v4191, %v4196
    %v4200 = vsel %vm148, %v4198, 0.0
    %4201 = vadd.xlane.f32.xlu0 %v4200
    %v4202 = vpop.xlane.xlu0 %4201
    %v4203 = vsel %vm148, %v4199, 0.0
    %4204 = vadd.xlane.f32.xlu0 %v4203
    %v4205 = vpop.xlane.xlu0 %4204
    %v4206 = vmul.f32 %v4202, %v442
    %v4207 = vmul.f32 %v4205, %v442
    %v4208 = vsub.f32 %v4198, %v4206
    %v4209 = vsub.f32 %v4199, %v4207
    %v4210 = vmul.f32 %v4208, %v4208
    %v4211 = vmul.f32 %v4209, %v4209
    %v4212 = vsel %vm148, %v4210, 0.0
    %4213 = vadd.xlane.f32.xlu0 %v4212
    %v4214 = vpop.xlane.xlu0 %4213
    %v4215 = vsel %vm148, %v4211, 0.0
    %4216 = vadd.xlane.f32.xlu0 %v4215
    %v4217 = vpop.xlane.xlu0 %4216
    %v4218 = vmul.f32 %v4214, %v442
    %v4219 = vmul.f32 %v4217, %v442
    %v4220 = vadd.f32 %v4218, 1e-05
    %v4221 = vadd.f32 %v4219, 1e-05
    %v4222 = vrsqrt.pop %v4220
    %v4223 = vrsqrt.pop %v4221
    %v4224 = vmul.f32 %v4208, %v4222
    %v4225 = vmul.f32 %v4209, %v4223
    %v4227 = vlaneseq
    %v4228 = vshrl.u32 %v4227, 7
    %v4229 = vsub.s32 0, %v4228
    %v4230 = vrot.slane %v2287, %v4229
    %v4232 = vmul.f32 %v4224, %v4230
    %v4233 = vmul.f32 %v4225, %v4230
    %v4235 = vlaneseq
    %v4236 = vshrl.u32 %v4235, 7
    %v4237 = vsub.s32 0, %v4236
    %v4238 = vrot.slane %v2289, %v4237
    %v4240 = vadd.f32 %v4232, %v4238
    %v4241 = vadd.f32 %v4233, %v4238
    %v4243 = vlaneseq
    %v4244 = vshrl.u32 %v4243, 7
    %v4245 = vsub.s32 0, %v4244
    %v4246 = vrot.slane %v2296, %v4245
    %v4249 = vsel %vm148, %v4240, 0
    %v4252 = vsel %vm148, %v4241, 0
    %4254 = vmatprep.subr.mxu0 0.0
    %4255 = vmatpush1.msra.mxu0 0.0
    %4256 = vmatprep.subr.mxu0 0.0
    %4257 = vmatpush1.msra.mxu0 0.0
    %4258 = vmatprep.subr.mxu0 0.0
    %4259 = vmatpush1.msra.mxu0 0.0
    %4260 = vmatprep.subr.mxu0 0.0
    %4261 = vmatpush1.msra.mxu0 0.0
    %4262 = vmatprep.subr.mxu0 0.0
    %4263 = vmatpush1.msra.mxu0 0.0
    %4264 = vmatprep.subr.mxu0 0.0
    %4265 = vmatpush1.msra.mxu0 0.0
    %4266 = vmatprep.subr.mxu0 0.0
    %4267 = vmatpush1.msra.mxu0 0.0
    %4268 = vmatprep.subr.mxu0 0.0
    %4269 = vmatpush1.msra.mxu0 0.0
    %4270 = vmatprep.subr.mxu0 0.0
    %4271 = vmatpush1.msra.mxu0 0.0
    %4272 = vmatprep.subr.mxu0 0.0
    %4273 = vmatpush1.msra.mxu0 0.0
    %4274 = vmatprep.subr.mxu0 0.0
    %4275 = vmatpush1.msra.mxu0 0.0
    %4276 = vmatprep.subr.mxu0 0.0
    %4277 = vmatpush1.msra.mxu0 0.0
    %4278 = vmatprep.subr.mxu0 0.0
    %4279 = vmatpush1.msra.mxu0 %v2294
    %4280 = vmatprep.subr.mxu0 0.0
    %4281 = vmatpush1.msra.mxu0 %v2293
    %4282 = vmatprep.subr.mxu0 0.0
    %4283 = vmatpush1.msra.mxu0 %v2292
    %4284 = vmatprep.subr.mxu0 0.0
    %4285 = vmatpush1.msra.mxu0 %v2291
    %4286 = vmatprep.subr.mxu0 0.0
    %4287 = vmatpush2.msra.mxu0 0.0
    %4288 = vmatprep.subr.mxu0 0.0
    %4289 = vmatpush2.msra.mxu0 0.0
    %4290 = vmatprep.subr.mxu0 0.0
    %4291 = vmatpush2.msra.mxu0 0.0
    %4292 = vmatprep.subr.mxu0 0.0
    %4293 = vmatpush2.msra.mxu0 0.0
    %4294 = vmatprep.subr.mxu0 0.0
    %4295 = vmatpush2.msra.mxu0 0.0
    %4296 = vmatprep.subr.mxu0 0.0
    %4297 = vmatpush2.msra.mxu0 0.0
    %4298 = vmatprep.subr.mxu0 0.0
    %4299 = vmatpush2.msra.mxu0 0.0
    %4300 = vmatprep.subr.mxu0 0.0
    %4301 = vmatpush2.msra.mxu0 0.0
    %4302 = vmatprep.subr.mxu0 0.0
    %4303 = vmatpush2.msra.mxu0 0.0
    %4304 = vmatprep.subr.mxu0 0.0
    %4305 = vmatpush2.msra.mxu0 0.0
    %4306 = vmatprep.subr.mxu0 0.0
    %4307 = vmatpush2.msra.mxu0 0.0
    %4308 = vmatprep.subr.mxu0 0.0
    %4309 = vmatpush2.msra.mxu0 0.0
    %4310 = vmatprep.subr.mxu0 0.0
    %4311 = vmatpush2.msra.mxu0 0.0
    %4312 = vmatprep.subr.mxu0 0.0
    %4313 = vmatpush2.msra.mxu0 0.0
    %4314 = vmatprep.subr.mxu0 0.0
    %4315 = vmatpush2.msra.mxu0 0.0
    %4316 = vmatprep.subr.mxu0 0.0
    %4317 = vmatpush2.msra.mxu0 0.0
    %4318 = vmatprep.mubr.f32.mxu0 0.0
    %4319 = vmatmul.mubr.f32.gmra.mxu0 %v4249
    %v4320 = vpop.f32.mrf.mxu0
    %v4321 = vadd.f32 %v4246, %v4320
    %v4322 = vpop.f32.mrf.mxu0
    %4323 = vmatprep.mubr.f32.mxu0 0.0
    %4324 = vmatmul.mubr.f32.gmra.mxu0 %v4252
    %v4325 = vpop.f32.mrf.mxu0
    %v4326 = vadd.f32 %v4246, %v4325
    %v4327 = vpop.f32.mrf.mxu0
    %4328 = vdwg.mxu0
    %v4329 = vmul.f32 %v4321, 0.5
    %v4330 = vmul.f32 %v4326, 0.5
    %v4331 = vmul.f32 %v4321, 0.044715
    %v4332 = vmul.f32 %v4326, 0.044715
    %v4333 = vmul.f32 %v4331, %v4321
    %v4334 = vmul.f32 %v4332, %v4326
    %v4335 = vmul.f32 %v4333, %v4321
    %v4336 = vmul.f32 %v4334, %v4326
    %v4337 = vadd.f32 %v4321, %v4335
    %v4338 = vadd.f32 %v4326, %v4336
    %v4339 = vmul.f32 %v4337, 0.7978846
    %v4340 = vmul.f32 %v4338, 0.7978846
    %v4341 = vtanh.pop %v4339
    %v4342 = vtanh.pop %v4340
    %v4343 = vadd.f32 %v4341, 1.0
    %v4344 = vadd.f32 %v4342, 1.0
    %v4345 = vmul.f32 %v4329, %v4343
    %v4346 = vmul.f32 %v4330, %v4344
    %4347 = vmatprep.subr.mxu0 0.0
    %4348 = vmatpush1.msra.mxu0 %v2313
    %4349 = vmatprep.subr.mxu0 0.0
    %4350 = vmatpush1.msra.mxu0 %v2312
    %4351 = vmatprep.subr.mxu0 0.0
    %4352 = vmatpush1.msra.mxu0 %v2311
    %4353 = vmatprep.subr.mxu0 0.0
    %4354 = vmatpush1.msra.mxu0 %v2310
    %4355 = vmatprep.subr.mxu0 0.0
    %4356 = vmatpush1.msra.mxu0 %v2309
    %4357 = vmatprep.subr.mxu0 0.0
    %4358 = vmatpush1.msra.mxu0 %v2308
    %4359 = vmatprep.subr.mxu0 0.0
    %4360 = vmatpush1.msra.mxu0 %v2307
    %4361 = vmatprep.subr.mxu0 0.0
    %4362 = vmatpush1.msra.mxu0 %v2306
    %4363 = vmatprep.subr.mxu0 0.0
    %4364 = vmatpush1.msra.mxu0 %v2305
    %4365 = vmatprep.subr.mxu0 0.0
    %4366 = vmatpush1.msra.mxu0 %v2304
    %4367 = vmatprep.subr.mxu0 0.0
    %4368 = vmatpush1.msra.mxu0 %v2303
    %4369 = vmatprep.subr.mxu0 0.0
    %4370 = vmatpush1.msra.mxu0 %v2302
    %4371 = vmatprep.subr.mxu0 0.0
    %4372 = vmatpush1.msra.mxu0 %v2301
    %4373 = vmatprep.subr.mxu0 0.0
    %4374 = vmatpush1.msra.mxu0 %v2300
    %4375 = vmatprep.subr.mxu0 0.0
    %4376 = vmatpush1.msra.mxu0 %v2299
    %4377 = vmatprep.subr.mxu0 0.0
    %4378 = vmatpush1.msra.mxu0 %v2298
    %4379 = vmatprep.subr.mxu0 0.0
    %4380 = vmatpush2.msra.mxu0 0.0
    %4381 = vmatprep.subr.mxu0 0.0
    %4382 = vmatpush2.msra.mxu0 0.0
    %4383 = vmatprep.subr.mxu0 0.0
    %4384 = vmatpush2.msra.mxu0 0.0
    %4385 = vmatprep.subr.mxu0 0.0
    %4386 = vmatpush2.msra.mxu0 0.0
    %4387 = vmatprep.subr.mxu0 0.0
    %4388 = vmatpush2.msra.mxu0 0.0
    %4389 = vmatprep.subr.mxu0 0.0
    %4390 = vmatpush2.msra.mxu0 0.0
    %4391 = vmatprep.subr.mxu0 0.0
    %4392 = vmatpush2.msra.mxu0 0.0
    %4393 = vmatprep.subr.mxu0 0.0
    %4394 = vmatpush2.msra.mxu0 0.0
    %4395 = vmatprep.subr.mxu0 0.0
    %4396 = vmatpush2.msra.mxu0 0.0
    %4397 = vmatprep.subr.mxu0 0.0
    %4398 = vmatpush2.msra.mxu0 0.0
    %4399 = vmatprep.subr.mxu0 0.0
    %4400 = vmatpush2.msra.mxu0 0.0
    %4401 = vmatprep.subr.mxu0 0.0
    %4402 = vmatpush2.msra.mxu0 0.0
    %4403 = vmatprep.subr.mxu0 0.0
    %4404 = vmatpush2.msra.mxu0 0.0
    %4405 = vmatprep.subr.mxu0 0.0
    %4406 = vmatpush2.msra.mxu0 0.0
    %4407 = vmatprep.subr.mxu0 0.0
    %4408 = vmatpush2.msra.mxu0 0.0
    %4409 = vmatprep.subr.mxu0 0.0
    %4410 = vmatpush2.msra.mxu0 0.0
    %4411 = vmatprep.mubr.f32.mxu0 0.0
    %4412 = vmatmul.mubr.f32.gmra.mxu0 %v4345
    %v4413 = vpop.f32.mrf.mxu0
    %v4414 = vadd.f32 0.0, %v4413
    %v4415 = vpop.f32.mrf.mxu0
    %4416 = vmatprep.mubr.f32.mxu0 0.0
    %4417 = vmatmul.mubr.f32.gmra.mxu0 %v4346
    %v4418 = vpop.f32.mrf.mxu0
    %v4419 = vadd.f32 0.0, %v4418
    %v4420 = vpop.f32.mrf.mxu0
    %4421 = vdwg.mxu0
    %v4422 = vadd.f32 %v4198, %v4414
    %v4423 = vadd.f32 %v4199, %v4419
    %v4425 = vlaneseq
    %v4426 = vshrl.u32 %v4425, 7
    %v4427 = vsub.s32 0, %v4426
    %v4428 = vrot.slane %v2315, %v4427
    %v4430 = vadd.f32 %v4422, %v4428
    %v4431 = vadd.f32 %v4423, %v4428
    %4433 = vset.pattern.permute.xlu0 0
    %4434 = vperm.xlu0 %4433, %v2512
    %v4435 = vpop.permute.xlu0 %4434
    %4438 = vset.pattern.permute.xlu0 0
    %4439 = vperm.xlu0 %4438, %v2615
    %v4440 = vpop.permute.xlu0 %4439
    %v4442 = vmul.f32 %v4430, %v4435
    %v4443 = vmul.f32 %v4431, %v4440
    %v4444 = vld [vmem:[%s16] sm:$0x1]
    %v4445 = vld [vmem:[%s17] sm:$0x1]
    %v4446 = vld [vmem:[%s18] sm:$0xff]
    %v4447 = vld [vmem:[%s18 + $0x8] sm:$0xff]
    %v4448 = vld [vmem:[%s18 + $0x10] sm:$0xff]
    %v4449 = vld [vmem:[%s18 + $0x18] sm:$0xff]
    %v4450 = vld [vmem:[%s18 + $0x20] sm:$0xff]
    %v4451 = vld [vmem:[%s18 + $0x28] sm:$0xff]
    %v4452 = vld [vmem:[%s18 + $0x30] sm:$0xff]
    %v4453 = vld [vmem:[%s18 + $0x38] sm:$0xff]
    %v4454 = vsel %vm148, %v4442, 0.0
    %4455 = vadd.xlane.f32.xlu0 %v4454
    %v4456 = vpop.xlane.xlu0 %4455
    %v4457 = vsel %vm148, %v4443, 0.0
    %4458 = vadd.xlane.f32.xlu0 %v4457
    %v4459 = vpop.xlane.xlu0 %4458
    %v4460 = vmul.f32 %v4456, %v442
    %v4461 = vmul.f32 %v4459, %v442
    %v4462 = vsub.f32 %v4442, %v4460
    %v4463 = vsub.f32 %v4443, %v4461
    %v4464 = vmul.f32 %v4462, %v4462
    %v4465 = vmul.f32 %v4463, %v4463
    %v4466 = vsel %vm148, %v4464, 0.0
    %4467 = vadd.xlane.f32.xlu0 %v4466
    %v4468 = vpop.xlane.xlu0 %4467
    %v4469 = vsel %vm148, %v4465, 0.0
    %4470 = vadd.xlane.f32.xlu0 %v4469
    %v4471 = vpop.xlane.xlu0 %4470
    %v4472 = vmul.f32 %v4468, %v442
    %v4473 = vmul.f32 %v4471, %v442
    %v4474 = vadd.f32 %v4472, 1e-05
    %v4475 = vadd.f32 %v4473, 1e-05
    %v4476 = vrsqrt.pop %v4474
    %v4477 = vrsqrt.pop %v4475
    %v4478 = vmul.f32 %v4462, %v4476
    %v4479 = vmul.f32 %v4463, %v4477
    %v4481 = vlaneseq
    %v4482 = vshrl.u32 %v4481, 7
    %v4483 = vsub.s32 0, %v4482
    %v4484 = vrot.slane %v4444, %v4483
    %v4486 = vmul.f32 %v4478, %v4484
    %v4487 = vmul.f32 %v4479, %v4484
    %v4489 = vlaneseq
    %v4490 = vshrl.u32 %v4489, 7
    %v4491 = vsub.s32 0, %v4490
    %v4492 = vrot.slane %v4445, %v4491
    %v4494 = vadd.f32 %v4486, %v4492
    %v4495 = vadd.f32 %v4487, %v4492
    %v4497 = vsel %vm148, %v4494, 0
    %v4500 = vsel %vm148, %v4495, 0
    %4502 = vmatprep.subr.mxu0 0.0
    %4503 = vmatpush1.msra.mxu0 0.0
    %4504 = vmatprep.subr.mxu0 0.0
    %4505 = vmatpush1.msra.mxu0 0.0
    %4506 = vmatprep.subr.mxu0 0.0
    %4507 = vmatpush1.msra.mxu0 0.0
    %4508 = vmatprep.subr.mxu0 0.0
    %4509 = vmatpush1.msra.mxu0 0.0
    %4510 = vmatprep.subr.mxu0 0.0
    %4511 = vmatpush1.msra.mxu0 0.0
    %4512 = vmatprep.subr.mxu0 0.0
    %4513 = vmatpush1.msra.mxu0 0.0
    %4514 = vmatprep.subr.mxu0 0.0
    %4515 = vmatpush1.msra.mxu0 0.0
    %4516 = vmatprep.subr.mxu0 0.0
    %4517 = vmatpush1.msra.mxu0 0.0
    %4518 = vmatprep.subr.mxu0 0.0
    %4519 = vmatpush1.msra.mxu0 0.0
    %4520 = vmatprep.subr.mxu0 0.0
    %4521 = vmatpush1.msra.mxu0 0.0
    %4522 = vmatprep.subr.mxu0 0.0
    %4523 = vmatpush1.msra.mxu0 0.0
    %4524 = vmatprep.subr.mxu0 0.0
    %4525 = vmatpush1.msra.mxu0 0.0
    %4526 = vmatprep.subr.mxu0 %v4453
    %4527 = vmatpush1.msra.mxu0 %v4452
    %4528 = vmatprep.subr.mxu0 %v4451
    %4529 = vmatpush1.msra.mxu0 %v4450
    %4530 = vmatprep.subr.mxu0 %v4449
    %4531 = vmatpush1.msra.mxu0 %v4448
    %4532 = vmatprep.subr.mxu0 %v4447
    %4533 = vmatpush1.msra.mxu0 %v4446
    %4534 = vmatprep.subr.mxu0 0.0
    %4535 = vmatpush2.msra.mxu0 0.0
    %4536 = vmatprep.subr.mxu0 0.0
    %4537 = vmatpush2.msra.mxu0 0.0
    %4538 = vmatprep.subr.mxu0 0.0
    %4539 = vmatpush2.msra.mxu0 0.0
    %4540 = vmatprep.subr.mxu0 0.0
    %4541 = vmatpush2.msra.mxu0 0.0
    %4542 = vmatprep.subr.mxu0 0.0
    %4543 = vmatpush2.msra.mxu0 0.0
    %4544 = vmatprep.subr.mxu0 0.0
    %4545 = vmatpush2.msra.mxu0 0.0
    %4546 = vmatprep.subr.mxu0 0.0
    %4547 = vmatpush2.msra.mxu0 0.0
    %4548 = vmatprep.subr.mxu0 0.0
    %4549 = vmatpush2.msra.mxu0 0.0
    %4550 = vmatprep.subr.mxu0 0.0
    %4551 = vmatpush2.msra.mxu0 0.0
    %4552 = vmatprep.subr.mxu0 0.0
    %4553 = vmatpush2.msra.mxu0 0.0
    %4554 = vmatprep.subr.mxu0 0.0
    %4555 = vmatpush2.msra.mxu0 0.0
    %4556 = vmatprep.subr.mxu0 0.0
    %4557 = vmatpush2.msra.mxu0 0.0
    %4558 = vmatprep.subr.mxu0 0.0
    %4559 = vmatpush2.msra.mxu0 0.0
    %4560 = vmatprep.subr.mxu0 0.0
    %4561 = vmatpush2.msra.mxu0 0.0
    %4562 = vmatprep.subr.mxu0 0.0
    %4563 = vmatpush2.msra.mxu0 0.0
    %4564 = vmatprep.subr.mxu0 0.0
    %4565 = vmatpush2.msra.mxu0 0.0
    %4566 = vmatprep.mubr.f32.mxu0 0.0
    %4567 = vmatmul.mubr.f32.gmra.mxu0 %v4497
    %v4568 = vpop.f32.mrf.mxu0
    %v4569 = vadd.f32 0.0, %v4568
    %v4570 = vpop.f32.mrf.mxu0
    %v4571 = vadd.f32 0.0, %v4570
    %4572 = vmatprep.mubr.f32.mxu0 0.0
    %4573 = vmatmul.mubr.f32.gmra.mxu0 %v4500
    %v4574 = vpop.f32.mrf.mxu0
    %v4575 = vadd.f32 0.0, %v4574
    %v4576 = vpop.f32.mrf.mxu0
    %v4577 = vadd.f32 0.0, %v4576
    %4578 = vdwg.mxu0
    %4579 = vst [vmem:[#allocation7] sm:$0xff] %v4569
    %4580 = vst [vmem:[#allocation7 + $0x8] sm:$0xff] %v4571
    %4581 = vst [vmem:[#allocation7 + $0x10] sm:$0xff] %v4575
    %4582 = vst [vmem:[#allocation7 + $0x18] sm:$0xff] %v4577
    // Predicated region
    $region86: #{tpu_custom_call.1} parent=1 // pred_check
      _
    $region87: #{tpu_custom_call.1} parent=1 // pred_check_branch
      %4584 = sbr.rel (0) target = $region89
    $region88: #{tpu_custom_call.1} parent=1 // pred_region
      %s4586 = ssub.s32 512, 512
      %4587 = vsyncadd [#allocation4], %s4586
      %s4588 = sshll.u32 [#allocation7], 4
      %s4589 = int_to_ptr.vmem [resolvable:$true] %s4588
      %4594 = dma.vmem_to_hbm [thread:$0]  %s4589, 512, %s19, [#allocation4], 256, 256, 16
    $region89: #{tpu_custom_call.1} parent=1 // pred_fallthru
      _
    // Predicated region
    $region90: #{tpu_custom_call.1} parent=1 // pred_check
      _
    $region91: #{tpu_custom_call.1} parent=1 // pred_check_branch
      %4596 = sbr.rel (0) target = $region93
    $region92: #{tpu_custom_call.1} parent=1 // pred_region
      %4597 = dma.done [#allocation4], 512
    $region93: #{tpu_custom_call.1} parent=1 // pred_fallthru
      _
    %4598 = vsyncpa [#allocation3], 1
    %4599 = vsyncpa [#allocation6], 1
    %4600 = vsyncpa [#allocation4], 1

</llo_original>
